<compile_context>
chip_gen: v6e
topology: v6e:2x2x1
jax: 0.10.0
libtpu: 0.0.40
codegen_flags: <defaults>
</compile_context>

<pallas_src>
import jax
import jax.numpy as jnp
from jax.experimental import pallas as pl
from jax.experimental.pallas import tpu as pltpu

EPS = 1e-5                      # nn.BatchNorm2d default eps
MXU_DTYPE = jnp.bfloat16        # matmul operand dtype (jnp.float32 for bit-closer numerics)


# ------------------------------ fused kernel ------------------------------- #
def resblock_kernel(xpad_ref, w1_ref, g1_ref, b1_ref, w2_ref, g2_ref, b2_ref,
                    o_ref, pad_scr):
    # xpad_ref : (N, H+2, W+2, CP) f32   spatially zero-padded NHWC input
    # w*_ref   : (9, CP, CP)       bf16  conv weights, [kh*3+kw][cin, cout]
    # g*/b*    : (1, CP)           f32   BN gamma / beta
    # o_ref    : (N*H*W, CP)       f32
    # pad_scr  : (N, H+2, W+2, CP) f32   VMEM scratch (padded conv2 input)
    N, HP, WP, CP = xpad_ref.shape
    H, W = HP - 2, WP - 2
    M = N * H * W

    def conv3x3(src_bf, w_ref):
        # src_bf: (N, H+2, W+2, CP) bf16 value in VMEM; 9 shifted MXU matmuls.
        acc = jnp.zeros((M, CP), jnp.float32)
        for kh in range(3):
            rows = src_bf[:, kh:kh + H]                       # (N, H, W+2, CP)
            for kw in range(3):
                patch = rows[:, :, kw:kw + W, :].reshape(M, CP)
                acc = acc + jnp.dot(patch, w_ref[kh * 3 + kw],
                                    preferred_element_type=jnp.float32)
        return acc

    def bn(x2d, g_ref, b_ref):
        # training-mode BatchNorm, one-pass batch stats (biased variance), f32.
        mean = jnp.mean(x2d, axis=0, keepdims=True)
        msq = jnp.mean(x2d * x2d, axis=0, keepdims=True)
        var = jnp.maximum(msq - mean * mean, 0.0)
        return (x2d - mean) * jax.lax.rsqrt(var + EPS) * g_ref[...] + b_ref[...]

    xp = xpad_ref[...]
    residual = xp[:, 1:1 + H, 1:1 + W, :].reshape(M, CP)

    # conv1 -> bn1 -> relu   (conv bias exactly cancelled by batch-stat BN)
    h = jnp.maximum(bn(conv3x3(xp.astype(MXU_DTYPE), w1_ref), g1_ref, b1_ref), 0.0)

    # zero-pad the intermediate spatially in VMEM scratch for conv2's im2col
    pad_scr[...] = jnp.zeros(pad_scr.shape, pad_scr.dtype)
    pad_scr[:, 1:1 + H, 1:1 + W, :] = h.reshape(N, H, W, CP)

    # conv2 -> bn2 -> +residual -> relu
    y = bn(conv3x3(pad_scr[...].astype(MXU_DTYPE), w2_ref), g2_ref, b2_ref) + residual
    o_ref[...] = jnp.maximum(y, 0.0)


# ------------------------------ host wrappers ------------------------------ #
def _round_up(x, m):
    return ((x + m - 1) // m) * m


def _prep_conv_weight(w_oihw, cp):
    """PyTorch (Cout, Cin, 3, 3) -> (9, CP, CP) bf16, [kh*3+kw][cin, cout]."""
    cout, cin = w_oihw.shape[0], w_oihw.shape[1]
    w = jnp.transpose(w_oihw, (2, 3, 1, 0))                       # (3,3,Cin,Cout)
    w = jnp.pad(w, ((0, 0), (0, 0), (0, cp - cin), (0, cp - cout)))
    return w.reshape(9, cp, cp).astype(MXU_DTYPE)


def _prep_bn_vec(v, cp, pad_value):
    return jnp.pad(v, (0, cp - v.shape[0]), constant_values=pad_value).reshape(1, cp)


def resblock_forward(x_nchw, params):
    N, C, H, W = x_nchw.shape
    CP = _round_up(max(C, 128), 128)        # lane-dense channel dim
    M = N * H * W

    x = jnp.transpose(x_nchw, (0, 2, 3, 1)).astype(jnp.float32)          # NHWC
    xpad = jnp.pad(x, ((0, 0), (1, 1), (1, 1), (0, CP - C)))             # spatial + channel pad

    w1 = _prep_conv_weight(params["conv1_w"], CP)
    w2 = _prep_conv_weight(params["conv2_w"], CP)
    g1 = _prep_bn_vec(params["bn1_g"], CP, 1.0)
    b1 = _prep_bn_vec(params["bn1_b"], CP, 0.0)
    g2 = _prep_bn_vec(params["bn2_g"], CP, 1.0)
    b2 = _prep_bn_vec(params["bn2_b"], CP, 0.0)

    out2d = pl.pallas_call(
        resblock_kernel,
        out_shape=jax.ShapeDtypeStruct((M, CP), jnp.float32),
        grid=(1,),
        in_specs=[
            pl.BlockSpec((N, H + 2, W + 2, CP), lambda i: (0, 0, 0, 0)),
            pl.BlockSpec((9, CP, CP), lambda i: (0, 0, 0)),
            pl.BlockSpec((1, CP), lambda i: (0, 0)),
            pl.BlockSpec((1, CP), lambda i: (0, 0)),
            pl.BlockSpec((9, CP, CP), lambda i: (0, 0, 0)),
            pl.BlockSpec((1, CP), lambda i: (0, 0)),
            pl.BlockSpec((1, CP), lambda i: (0, 0)),
        ],
        out_specs=pl.BlockSpec((M, CP), lambda i: (0, 0)),
        scratch_shapes=[pltpu.VMEM((N, H + 2, W + 2, CP), jnp.float32)],
        compiler_params=pltpu.CompilerParams(
            dimension_semantics=("arbitrary",)),
    )(xpad, w1, g1, b1, w2, g2, b2)

    out = out2d[:, :C].reshape(N, H, W, C)
    return jnp.transpose(out, (0, 3, 1, 2))                              # back to NCHW


# ------------------------ pure-JAX f32 reference ---------------------------- #
def resblock_reference(x, p):
    def bn(t, g, b):
        mean = jnp.mean(t, axis=(0, 2, 3), keepdims=True)
        var = jnp.mean((t - mean) ** 2, axis=(0, 2, 3), keepdims=True)
        return (t - mean) * jax.lax.rsqrt(var + EPS) * g.reshape(1, -1, 1, 1) \
            + b.reshape(1, -1, 1, 1)

    def conv(t, w, b):
        y = jax.lax.conv_general_dilated(
            t, w, window_strides=(1, 1), padding="SAME",
            dimension_numbers=("NCHW", "OIHW", "NCHW"))
        return y + b.reshape(1, -1, 1, 1)   # bias kept here; cancelled by batch-stat BN

    residual = x
    h = jax.nn.relu(bn(conv(x, p["conv1_w"], p["conv1_b"]), p["bn1_g"], p["bn1_b"]))
    y = bn(conv(h, p["conv2_w"], p["conv2_b"]), p["bn2_g"], p["bn2_b"]) + residual
    return jax.nn.relu(y)


# ----------------------------------- main ----------------------------------- #
if __name__ == "__main__":
    NUM_HIDDEN = 32
    N, H, W = 2, 8, 8

    key = jax.random.PRNGKey(0)
    ks = jax.random.split(key, 5)
    params = {
        "conv1_w": 0.1 * jax.random.normal(ks[0], (NUM_HIDDEN, NUM_HIDDEN, 3, 3), jnp.float32),
        "conv1_b": 0.1 * jax.random.normal(ks[1], (NUM_HIDDEN,), jnp.float32),
        "conv2_w": 0.1 * jax.random.normal(ks[2], (NUM_HIDDEN, NUM_HIDDEN, 3, 3), jnp.float32),
        "conv2_b": 0.1 * jax.random.normal(ks[3], (NUM_HIDDEN,), jnp.float32),
        "bn1_g": jnp.ones((NUM_HIDDEN,), jnp.float32),
        "bn1_b": jnp.zeros((NUM_HIDDEN,), jnp.float32),
        "bn2_g": jnp.ones((NUM_HIDDEN,), jnp.float32),
        "bn2_b": jnp.zeros((NUM_HIDDEN,), jnp.float32),
    }
    x = jax.random.normal(ks[4], (N, NUM_HIDDEN, H, W), jnp.float32)

    out = jax.jit(resblock_forward)(x, params)
    out = jax.block_until_ready(out)

    ref = resblock_reference(x, params)

    assert out.shape == (N, NUM_HIDDEN, H, W), out.shape
    assert bool(jnp.all(jnp.isfinite(out)))
    max_err = float(jnp.max(jnp.abs(out - ref)))
    assert max_err < 0.15, f"mismatch vs f32 reference: max abs err = {max_err}"
    print("KERNEL_OK")
</pallas_src>

<mosaic_0001>
module attributes {stable_mosaic.version = 11 : i64} {
  func.func @resblock_kernel(%arg0: i32, %arg1: memref<2x10x10x128xf32, #tpu.memory_space<vmem>>, %arg2: memref<9x128x128xbf16, #tpu.memory_space<vmem>>, %arg3: memref<1x128xf32, #tpu.memory_space<vmem>>, %arg4: memref<1x128xf32, #tpu.memory_space<vmem>>, %arg5: memref<9x128x128xbf16, #tpu.memory_space<vmem>>, %arg6: memref<1x128xf32, #tpu.memory_space<vmem>>, %arg7: memref<1x128xf32, #tpu.memory_space<vmem>>, %arg8: memref<128x128xf32, #tpu.memory_space<vmem>>, %arg9: memref<2x10x10x128xf32, #tpu.memory_space<vmem>>) attributes {dimension_semantics = [#tpu.dimension_semantics<arbitrary>], iteration_bounds = array<i64: 1>, scalar_prefetch = 0 : i64, scratch_operands = 1 : i64, tpu.core_type = #tpu.core_type<tc>, window_params = [{pipeline_mode = #tpu.pipeline_mode<synchronous>, transform_indices = @transform_0, window_bounds = array<i64: 2, 10, 10, 128>}, {pipeline_mode = #tpu.pipeline_mode<synchronous>, transform_indices = @transform_1, window_bounds = array<i64: 9, 128, 128>}, {pipeline_mode = #tpu.pipeline_mode<synchronous>, transform_indices = @transform_2, window_bounds = array<i64: 1, 128>}, {pipeline_mode = #tpu.pipeline_mode<synchronous>, transform_indices = @transform_3, window_bounds = array<i64: 1, 128>}, {pipeline_mode = #tpu.pipeline_mode<synchronous>, transform_indices = @transform_4, window_bounds = array<i64: 9, 128, 128>}, {pipeline_mode = #tpu.pipeline_mode<synchronous>, transform_indices = @transform_5, window_bounds = array<i64: 1, 128>}, {pipeline_mode = #tpu.pipeline_mode<synchronous>, transform_indices = @transform_6, window_bounds = array<i64: 1, 128>}, {pipeline_mode = #tpu.pipeline_mode<synchronous>, transform_indices = @transform_7, window_bounds = array<i64: 128, 128>}]} {
    %c0 = arith.constant 0 : index
    %c0_0 = arith.constant 0 : index
    %c0_1 = arith.constant 0 : index
    %c0_2 = arith.constant 0 : index
    %0 = vector.load %arg1[%c0, %c0_0, %c0_1, %c0_2] : memref<2x10x10x128xf32, #tpu.memory_space<vmem>>, vector<2x10x10x128xf32>
    %1 = vector.extract_strided_slice %0 {offsets = [0, 1, 1, 0], sizes = [2, 8, 8, 128], strides = [1, 1, 1, 1]} : vector<2x10x10x128xf32> to vector<2x8x8x128xf32>
    %2 = vector.shape_cast %1 : vector<2x8x8x128xf32> to vector<128x128xf32>
    %3 = arith.truncf %0 : vector<2x10x10x128xf32> to vector<2x10x10x128xbf16>
    %cst = arith.constant 0.000000e+00 : f32
    %4 = vector.broadcast %cst : f32 to vector<128x128xf32>
    %5 = vector.extract_strided_slice %3 {offsets = [0, 0, 0, 0], sizes = [2, 8, 10, 128], strides = [1, 1, 1, 1]} : vector<2x10x10x128xbf16> to vector<2x8x10x128xbf16>
    %6 = vector.extract_strided_slice %5 {offsets = [0, 0, 0, 0], sizes = [2, 8, 8, 128], strides = [1, 1, 1, 1]} : vector<2x8x10x128xbf16> to vector<2x8x8x128xbf16>
    %7 = vector.shape_cast %6 : vector<2x8x8x128xbf16> to vector<128x128xbf16>
    %c0_3 = arith.constant 0 : index
    %c0_4 = arith.constant 0 : index
    %c0_5 = arith.constant 0 : index
    %8 = vector.load %arg2[%c0_3, %c0_4, %c0_5] : memref<9x128x128xbf16, #tpu.memory_space<vmem>>, vector<1x128x128xbf16>
    %9 = vector.shape_cast %8 : vector<1x128x128xbf16> to vector<128x128xbf16>
    %cst_6 = arith.constant dense<0.000000e+00> : vector<128x128xf32>
    %10 = tpu.matmul %7, %9, %cst_6 {dimension_numbers = #tpu.dot_dimension_numbers<[1], [0], [0], [1], [0, 0, 1, 1], [], []>} : vector<128x128xbf16>, vector<128x128xbf16>, vector<128x128xf32> -> vector<128x128xf32>
    %11 = arith.addf %4, %10 : vector<128x128xf32>
    %12 = vector.extract_strided_slice %5 {offsets = [0, 0, 1, 0], sizes = [2, 8, 8, 128], strides = [1, 1, 1, 1]} : vector<2x8x10x128xbf16> to vector<2x8x8x128xbf16>
    %13 = vector.shape_cast %12 : vector<2x8x8x128xbf16> to vector<128x128xbf16>
    %c1 = arith.constant 1 : index
    %c0_7 = arith.constant 0 : index
    %c0_8 = arith.constant 0 : index
    %14 = vector.load %arg2[%c1, %c0_7, %c0_8] : memref<9x128x128xbf16, #tpu.memory_space<vmem>>, vector<1x128x128xbf16>
    %15 = vector.shape_cast %14 : vector<1x128x128xbf16> to vector<128x128xbf16>
    %cst_9 = arith.constant dense<0.000000e+00> : vector<128x128xf32>
    %16 = tpu.matmul %13, %15, %cst_9 {dimension_numbers = #tpu.dot_dimension_numbers<[1], [0], [0], [1], [0, 0, 1, 1], [], []>} : vector<128x128xbf16>, vector<128x128xbf16>, vector<128x128xf32> -> vector<128x128xf32>
    %17 = arith.addf %11, %16 : vector<128x128xf32>
    %18 = vector.extract_strided_slice %5 {offsets = [0, 0, 2, 0], sizes = [2, 8, 8, 128], strides = [1, 1, 1, 1]} : vector<2x8x10x128xbf16> to vector<2x8x8x128xbf16>
    %19 = vector.shape_cast %18 : vector<2x8x8x128xbf16> to vector<128x128xbf16>
    %c2 = arith.constant 2 : index
    %c0_10 = arith.constant 0 : index
    %c0_11 = arith.constant 0 : index
    %20 = vector.load %arg2[%c2, %c0_10, %c0_11] : memref<9x128x128xbf16, #tpu.memory_space<vmem>>, vector<1x128x128xbf16>
    %21 = vector.shape_cast %20 : vector<1x128x128xbf16> to vector<128x128xbf16>
    %cst_12 = arith.constant dense<0.000000e+00> : vector<128x128xf32>
    %22 = tpu.matmul %19, %21, %cst_12 {dimension_numbers = #tpu.dot_dimension_numbers<[1], [0], [0], [1], [0, 0, 1, 1], [], []>} : vector<128x128xbf16>, vector<128x128xbf16>, vector<128x128xf32> -> vector<128x128xf32>
    %23 = arith.addf %17, %22 : vector<128x128xf32>
    %24 = vector.extract_strided_slice %3 {offsets = [0, 1, 0, 0], sizes = [2, 8, 10, 128], strides = [1, 1, 1, 1]} : vector<2x10x10x128xbf16> to vector<2x8x10x128xbf16>
    %25 = vector.extract_strided_slice %24 {offsets = [0, 0, 0, 0], sizes = [2, 8, 8, 128], strides = [1, 1, 1, 1]} : vector<2x8x10x128xbf16> to vector<2x8x8x128xbf16>
    %26 = vector.shape_cast %25 : vector<2x8x8x128xbf16> to vector<128x128xbf16>
    %c3 = arith.constant 3 : index
    %c0_13 = arith.constant 0 : index
    %c0_14 = arith.constant 0 : index
    %27 = vector.load %arg2[%c3, %c0_13, %c0_14] : memref<9x128x128xbf16, #tpu.memory_space<vmem>>, vector<1x128x128xbf16>
    %28 = vector.shape_cast %27 : vector<1x128x128xbf16> to vector<128x128xbf16>
    %cst_15 = arith.constant dense<0.000000e+00> : vector<128x128xf32>
    %29 = tpu.matmul %26, %28, %cst_15 {dimension_numbers = #tpu.dot_dimension_numbers<[1], [0], [0], [1], [0, 0, 1, 1], [], []>} : vector<128x128xbf16>, vector<128x128xbf16>, vector<128x128xf32> -> vector<128x128xf32>
    %30 = arith.addf %23, %29 : vector<128x128xf32>
    %31 = vector.extract_strided_slice %24 {offsets = [0, 0, 1, 0], sizes = [2, 8, 8, 128], strides = [1, 1, 1, 1]} : vector<2x8x10x128xbf16> to vector<2x8x8x128xbf16>
    %32 = vector.shape_cast %31 : vector<2x8x8x128xbf16> to vector<128x128xbf16>
    %c4 = arith.constant 4 : index
    %c0_16 = arith.constant 0 : index
    %c0_17 = arith.constant 0 : index
    %33 = vector.load %arg2[%c4, %c0_16, %c0_17] : memref<9x128x128xbf16, #tpu.memory_space<vmem>>, vector<1x128x128xbf16>
    %34 = vector.shape_cast %33 : vector<1x128x128xbf16> to vector<128x128xbf16>
    %cst_18 = arith.constant dense<0.000000e+00> : vector<128x128xf32>
    %35 = tpu.matmul %32, %34, %cst_18 {dimension_numbers = #tpu.dot_dimension_numbers<[1], [0], [0], [1], [0, 0, 1, 1], [], []>} : vector<128x128xbf16>, vector<128x128xbf16>, vector<128x128xf32> -> vector<128x128xf32>
    %36 = arith.addf %30, %35 : vector<128x128xf32>
    %37 = vector.extract_strided_slice %24 {offsets = [0, 0, 2, 0], sizes = [2, 8, 8, 128], strides = [1, 1, 1, 1]} : vector<2x8x10x128xbf16> to vector<2x8x8x128xbf16>
    %38 = vector.shape_cast %37 : vector<2x8x8x128xbf16> to vector<128x128xbf16>
    %c5 = arith.constant 5 : index
    %c0_19 = arith.constant 0 : index
    %c0_20 = arith.constant 0 : index
    %39 = vector.load %arg2[%c5, %c0_19, %c0_20] : memref<9x128x128xbf16, #tpu.memory_space<vmem>>, vector<1x128x128xbf16>
    %40 = vector.shape_cast %39 : vector<1x128x128xbf16> to vector<128x128xbf16>
    %cst_21 = arith.constant dense<0.000000e+00> : vector<128x128xf32>
    %41 = tpu.matmul %38, %40, %cst_21 {dimension_numbers = #tpu.dot_dimension_numbers<[1], [0], [0], [1], [0, 0, 1, 1], [], []>} : vector<128x128xbf16>, vector<128x128xbf16>, vector<128x128xf32> -> vector<128x128xf32>
    %42 = arith.addf %36, %41 : vector<128x128xf32>
    %43 = vector.extract_strided_slice %3 {offsets = [0, 2, 0, 0], sizes = [2, 8, 10, 128], strides = [1, 1, 1, 1]} : vector<2x10x10x128xbf16> to vector<2x8x10x128xbf16>
    %44 = vector.extract_strided_slice %43 {offsets = [0, 0, 0, 0], sizes = [2, 8, 8, 128], strides = [1, 1, 1, 1]} : vector<2x8x10x128xbf16> to vector<2x8x8x128xbf16>
    %45 = vector.shape_cast %44 : vector<2x8x8x128xbf16> to vector<128x128xbf16>
    %c6 = arith.constant 6 : index
    %c0_22 = arith.constant 0 : index
    %c0_23 = arith.constant 0 : index
    %46 = vector.load %arg2[%c6, %c0_22, %c0_23] : memref<9x128x128xbf16, #tpu.memory_space<vmem>>, vector<1x128x128xbf16>
    %47 = vector.shape_cast %46 : vector<1x128x128xbf16> to vector<128x128xbf16>
    %cst_24 = arith.constant dense<0.000000e+00> : vector<128x128xf32>
    %48 = tpu.matmul %45, %47, %cst_24 {dimension_numbers = #tpu.dot_dimension_numbers<[1], [0], [0], [1], [0, 0, 1, 1], [], []>} : vector<128x128xbf16>, vector<128x128xbf16>, vector<128x128xf32> -> vector<128x128xf32>
    %49 = arith.addf %42, %48 : vector<128x128xf32>
    %50 = vector.extract_strided_slice %43 {offsets = [0, 0, 1, 0], sizes = [2, 8, 8, 128], strides = [1, 1, 1, 1]} : vector<2x8x10x128xbf16> to vector<2x8x8x128xbf16>
    %51 = vector.shape_cast %50 : vector<2x8x8x128xbf16> to vector<128x128xbf16>
    %c7 = arith.constant 7 : index
    %c0_25 = arith.constant 0 : index
    %c0_26 = arith.constant 0 : index
    %52 = vector.load %arg2[%c7, %c0_25, %c0_26] : memref<9x128x128xbf16, #tpu.memory_space<vmem>>, vector<1x128x128xbf16>
    %53 = vector.shape_cast %52 : vector<1x128x128xbf16> to vector<128x128xbf16>
    %cst_27 = arith.constant dense<0.000000e+00> : vector<128x128xf32>
    %54 = tpu.matmul %51, %53, %cst_27 {dimension_numbers = #tpu.dot_dimension_numbers<[1], [0], [0], [1], [0, 0, 1, 1], [], []>} : vector<128x128xbf16>, vector<128x128xbf16>, vector<128x128xf32> -> vector<128x128xf32>
    %55 = arith.addf %49, %54 : vector<128x128xf32>
    %56 = vector.extract_strided_slice %43 {offsets = [0, 0, 2, 0], sizes = [2, 8, 8, 128], strides = [1, 1, 1, 1]} : vector<2x8x10x128xbf16> to vector<2x8x8x128xbf16>
    %57 = vector.shape_cast %56 : vector<2x8x8x128xbf16> to vector<128x128xbf16>
    %c8 = arith.constant 8 : index
    %c0_28 = arith.constant 0 : index
    %c0_29 = arith.constant 0 : index
    %58 = vector.load %arg2[%c8, %c0_28, %c0_29] : memref<9x128x128xbf16, #tpu.memory_space<vmem>>, vector<1x128x128xbf16>
    %59 = vector.shape_cast %58 : vector<1x128x128xbf16> to vector<128x128xbf16>
    %cst_30 = arith.constant dense<0.000000e+00> : vector<128x128xf32>
    %60 = tpu.matmul %57, %59, %cst_30 {dimension_numbers = #tpu.dot_dimension_numbers<[1], [0], [0], [1], [0, 0, 1, 1], [], []>} : vector<128x128xbf16>, vector<128x128xbf16>, vector<128x128xf32> -> vector<128x128xf32>
    %61 = arith.addf %55, %60 : vector<128x128xf32>
    %cst_31 = arith.constant dense<0.000000e+00> : vector<128xf32>
    %62 = vector.multi_reduction <add>, %61, %cst_31 [0] : vector<128x128xf32> to vector<128xf32>
    %63 = vector.shape_cast %62 : vector<128xf32> to vector<1x128xf32>
    %cst_32 = arith.constant 1.280000e+02 : f32
    %64 = vector.broadcast %cst_32 : f32 to vector<1x128xf32>
    %65 = arith.divf %63, %64 : vector<1x128xf32>
    %66 = arith.mulf %61, %61 : vector<128x128xf32>
    %cst_33 = arith.constant dense<0.000000e+00> : vector<128xf32>
    %67 = vector.multi_reduction <add>, %66, %cst_33 [0] : vector<128x128xf32> to vector<128xf32>
    %68 = vector.shape_cast %67 : vector<128xf32> to vector<1x128xf32>
    %cst_34 = arith.constant 1.280000e+02 : f32
    %69 = vector.broadcast %cst_34 : f32 to vector<1x128xf32>
    %70 = arith.divf %68, %69 : vector<1x128xf32>
    %71 = arith.mulf %65, %65 : vector<1x128xf32>
    %72 = arith.subf %70, %71 : vector<1x128xf32>
    %cst_35 = arith.constant 0.000000e+00 : f32
    %73 = vector.broadcast %cst_35 : f32 to vector<1x128xf32>
    %74 = arith.maximumf %72, %73 : vector<1x128xf32>
    %75 = vector.broadcast %65 : vector<1x128xf32> to vector<128x128xf32>
    %76 = arith.subf %61, %75 : vector<128x128xf32>
    %cst_36 = arith.constant 9.99999974E-6 : f32
    %77 = vector.broadcast %cst_36 : f32 to vector<1x128xf32>
    %78 = arith.addf %74, %77 : vector<1x128xf32>
    %79 = math.rsqrt %78 : vector<1x128xf32>
    %80 = vector.broadcast %79 : vector<1x128xf32> to vector<128x128xf32>
    %81 = arith.mulf %76, %80 : vector<128x128xf32>
    %c0_37 = arith.constant 0 : index
    %c0_38 = arith.constant 0 : index
    %82 = vector.load %arg3[%c0_37, %c0_38] : memref<1x128xf32, #tpu.memory_space<vmem>>, vector<1x128xf32>
    %83 = vector.broadcast %82 : vector<1x128xf32> to vector<128x128xf32>
    %84 = arith.mulf %81, %83 : vector<128x128xf32>
    %c0_39 = arith.constant 0 : index
    %c0_40 = arith.constant 0 : index
    %85 = vector.load %arg4[%c0_39, %c0_40] : memref<1x128xf32, #tpu.memory_space<vmem>>, vector<1x128xf32>
    %86 = vector.broadcast %85 : vector<1x128xf32> to vector<128x128xf32>
    %87 = arith.addf %84, %86 : vector<128x128xf32>
    %cst_41 = arith.constant 0.000000e+00 : f32
    %88 = vector.broadcast %cst_41 : f32 to vector<128x128xf32>
    %89 = arith.maximumf %87, %88 : vector<128x128xf32>
    %cst_42 = arith.constant 0.000000e+00 : f32
    %90 = vector.broadcast %cst_42 : f32 to vector<2x10x10x128xf32>
    %c0_43 = arith.constant 0 : index
    %c0_44 = arith.constant 0 : index
    %c0_45 = arith.constant 0 : index
    %c0_46 = arith.constant 0 : index
    %91 = vector.load %arg9[%c0_43, %c0_44, %c0_45, %c0_46] : memref<2x10x10x128xf32, #tpu.memory_space<vmem>>, vector<2x10x10x128xf32>
    tpu.vector_store %arg9[%c0_43, %c0_44, %c0_45, %c0_46], %90 {strides = array<i32>} : memref<2x10x10x128xf32, #tpu.memory_space<vmem>>, vector<2x10x10x128xf32>,
    %92 = vector.shape_cast %89 : vector<128x128xf32> to vector<2x8x8x128xf32>
    %c0_47 = arith.constant 0 : index
    %c1_48 = arith.constant 1 : index
    %c1_49 = arith.constant 1 : index
    %c0_50 = arith.constant 0 : index
    %93 = vector.load %arg9[%c0_47, %c1_48, %c1_49, %c0_50] : memref<2x10x10x128xf32, #tpu.memory_space<vmem>>, vector<2x8x8x128xf32>
    tpu.vector_store %arg9[%c0_47, %c1_48, %c1_49, %c0_50], %92 {strides = array<i32>} : memref<2x10x10x128xf32, #tpu.memory_space<vmem>>, vector<2x8x8x128xf32>,
    %c0_51 = arith.constant 0 : index
    %c0_52 = arith.constant 0 : index
    %c0_53 = arith.constant 0 : index
    %c0_54 = arith.constant 0 : index
    %94 = vector.load %arg9[%c0_51, %c0_52, %c0_53, %c0_54] : memref<2x10x10x128xf32, #tpu.memory_space<vmem>>, vector<2x10x10x128xf32>
    %95 = arith.truncf %94 : vector<2x10x10x128xf32> to vector<2x10x10x128xbf16>
    %cst_55 = arith.constant 0.000000e+00 : f32
    %96 = vector.broadcast %cst_55 : f32 to vector<128x128xf32>
    %97 = vector.extract_strided_slice %95 {offsets = [0, 0, 0, 0], sizes = [2, 8, 10, 128], strides = [1, 1, 1, 1]} : vector<2x10x10x128xbf16> to vector<2x8x10x128xbf16>
    %98 = vector.extract_strided_slice %97 {offsets = [0, 0, 0, 0], sizes = [2, 8, 8, 128], strides = [1, 1, 1, 1]} : vector<2x8x10x128xbf16> to vector<2x8x8x128xbf16>
    %99 = vector.shape_cast %98 : vector<2x8x8x128xbf16> to vector<128x128xbf16>
    %c0_56 = arith.constant 0 : index
    %c0_57 = arith.constant 0 : index
    %c0_58 = arith.constant 0 : index
    %100 = vector.load %arg5[%c0_56, %c0_57, %c0_58] : memref<9x128x128xbf16, #tpu.memory_space<vmem>>, vector<1x128x128xbf16>
    %101 = vector.shape_cast %100 : vector<1x128x128xbf16> to vector<128x128xbf16>
    %cst_59 = arith.constant dense<0.000000e+00> : vector<128x128xf32>
    %102 = tpu.matmul %99, %101, %cst_59 {dimension_numbers = #tpu.dot_dimension_numbers<[1], [0], [0], [1], [0, 0, 1, 1], [], []>} : vector<128x128xbf16>, vector<128x128xbf16>, vector<128x128xf32> -> vector<128x128xf32>
    %103 = arith.addf %96, %102 : vector<128x128xf32>
    %104 = vector.extract_strided_slice %97 {offsets = [0, 0, 1, 0], sizes = [2, 8, 8, 128], strides = [1, 1, 1, 1]} : vector<2x8x10x128xbf16> to vector<2x8x8x128xbf16>
    %105 = vector.shape_cast %104 : vector<2x8x8x128xbf16> to vector<128x128xbf16>
    %c1_60 = arith.constant 1 : index
    %c0_61 = arith.constant 0 : index
    %c0_62 = arith.constant 0 : index
    %106 = vector.load %arg5[%c1_60, %c0_61, %c0_62] : memref<9x128x128xbf16, #tpu.memory_space<vmem>>, vector<1x128x128xbf16>
    %107 = vector.shape_cast %106 : vector<1x128x128xbf16> to vector<128x128xbf16>
    %cst_63 = arith.constant dense<0.000000e+00> : vector<128x128xf32>
    %108 = tpu.matmul %105, %107, %cst_63 {dimension_numbers = #tpu.dot_dimension_numbers<[1], [0], [0], [1], [0, 0, 1, 1], [], []>} : vector<128x128xbf16>, vector<128x128xbf16>, vector<128x128xf32> -> vector<128x128xf32>
    %109 = arith.addf %103, %108 : vector<128x128xf32>
    %110 = vector.extract_strided_slice %97 {offsets = [0, 0, 2, 0], sizes = [2, 8, 8, 128], strides = [1, 1, 1, 1]} : vector<2x8x10x128xbf16> to vector<2x8x8x128xbf16>
    %111 = vector.shape_cast %110 : vector<2x8x8x128xbf16> to vector<128x128xbf16>
    %c2_64 = arith.constant 2 : index
    %c0_65 = arith.constant 0 : index
    %c0_66 = arith.constant 0 : index
    %112 = vector.load %arg5[%c2_64, %c0_65, %c0_66] : memref<9x128x128xbf16, #tpu.memory_space<vmem>>, vector<1x128x128xbf16>
    %113 = vector.shape_cast %112 : vector<1x128x128xbf16> to vector<128x128xbf16>
    %cst_67 = arith.constant dense<0.000000e+00> : vector<128x128xf32>
    %114 = tpu.matmul %111, %113, %cst_67 {dimension_numbers = #tpu.dot_dimension_numbers<[1], [0], [0], [1], [0, 0, 1, 1], [], []>} : vector<128x128xbf16>, vector<128x128xbf16>, vector<128x128xf32> -> vector<128x128xf32>
    %115 = arith.addf %109, %114 : vector<128x128xf32>
    %116 = vector.extract_strided_slice %95 {offsets = [0, 1, 0, 0], sizes = [2, 8, 10, 128], strides = [1, 1, 1, 1]} : vector<2x10x10x128xbf16> to vector<2x8x10x128xbf16>
    %117 = vector.extract_strided_slice %116 {offsets = [0, 0, 0, 0], sizes = [2, 8, 8, 128], strides = [1, 1, 1, 1]} : vector<2x8x10x128xbf16> to vector<2x8x8x128xbf16>
    %118 = vector.shape_cast %117 : vector<2x8x8x128xbf16> to vector<128x128xbf16>
    %c3_68 = arith.constant 3 : index
    %c0_69 = arith.constant 0 : index
    %c0_70 = arith.constant 0 : index
    %119 = vector.load %arg5[%c3_68, %c0_69, %c0_70] : memref<9x128x128xbf16, #tpu.memory_space<vmem>>, vector<1x128x128xbf16>
    %120 = vector.shape_cast %119 : vector<1x128x128xbf16> to vector<128x128xbf16>
    %cst_71 = arith.constant dense<0.000000e+00> : vector<128x128xf32>
    %121 = tpu.matmul %118, %120, %cst_71 {dimension_numbers = #tpu.dot_dimension_numbers<[1], [0], [0], [1], [0, 0, 1, 1], [], []>} : vector<128x128xbf16>, vector<128x128xbf16>, vector<128x128xf32> -> vector<128x128xf32>
    %122 = arith.addf %115, %121 : vector<128x128xf32>
    %123 = vector.extract_strided_slice %116 {offsets = [0, 0, 1, 0], sizes = [2, 8, 8, 128], strides = [1, 1, 1, 1]} : vector<2x8x10x128xbf16> to vector<2x8x8x128xbf16>
    %124 = vector.shape_cast %123 : vector<2x8x8x128xbf16> to vector<128x128xbf16>
    %c4_72 = arith.constant 4 : index
    %c0_73 = arith.constant 0 : index
    %c0_74 = arith.constant 0 : index
    %125 = vector.load %arg5[%c4_72, %c0_73, %c0_74] : memref<9x128x128xbf16, #tpu.memory_space<vmem>>, vector<1x128x128xbf16>
    %126 = vector.shape_cast %125 : vector<1x128x128xbf16> to vector<128x128xbf16>
    %cst_75 = arith.constant dense<0.000000e+00> : vector<128x128xf32>
    %127 = tpu.matmul %124, %126, %cst_75 {dimension_numbers = #tpu.dot_dimension_numbers<[1], [0], [0], [1], [0, 0, 1, 1], [], []>} : vector<128x128xbf16>, vector<128x128xbf16>, vector<128x128xf32> -> vector<128x128xf32>
    %128 = arith.addf %122, %127 : vector<128x128xf32>
    %129 = vector.extract_strided_slice %116 {offsets = [0, 0, 2, 0], sizes = [2, 8, 8, 128], strides = [1, 1, 1, 1]} : vector<2x8x10x128xbf16> to vector<2x8x8x128xbf16>
    %130 = vector.shape_cast %129 : vector<2x8x8x128xbf16> to vector<128x128xbf16>
    %c5_76 = arith.constant 5 : index
    %c0_77 = arith.constant 0 : index
    %c0_78 = arith.constant 0 : index
    %131 = vector.load %arg5[%c5_76, %c0_77, %c0_78] : memref<9x128x128xbf16, #tpu.memory_space<vmem>>, vector<1x128x128xbf16>
    %132 = vector.shape_cast %131 : vector<1x128x128xbf16> to vector<128x128xbf16>
    %cst_79 = arith.constant dense<0.000000e+00> : vector<128x128xf32>
    %133 = tpu.matmul %130, %132, %cst_79 {dimension_numbers = #tpu.dot_dimension_numbers<[1], [0], [0], [1], [0, 0, 1, 1], [], []>} : vector<128x128xbf16>, vector<128x128xbf16>, vector<128x128xf32> -> vector<128x128xf32>
    %134 = arith.addf %128, %133 : vector<128x128xf32>
    %135 = vector.extract_strided_slice %95 {offsets = [0, 2, 0, 0], sizes = [2, 8, 10, 128], strides = [1, 1, 1, 1]} : vector<2x10x10x128xbf16> to vector<2x8x10x128xbf16>
    %136 = vector.extract_strided_slice %135 {offsets = [0, 0, 0, 0], sizes = [2, 8, 8, 128], strides = [1, 1, 1, 1]} : vector<2x8x10x128xbf16> to vector<2x8x8x128xbf16>
    %137 = vector.shape_cast %136 : vector<2x8x8x128xbf16> to vector<128x128xbf16>
    %c6_80 = arith.constant 6 : index
    %c0_81 = arith.constant 0 : index
    %c0_82 = arith.constant 0 : index
    %138 = vector.load %arg5[%c6_80, %c0_81, %c0_82] : memref<9x128x128xbf16, #tpu.memory_space<vmem>>, vector<1x128x128xbf16>
    %139 = vector.shape_cast %138 : vector<1x128x128xbf16> to vector<128x128xbf16>
    %cst_83 = arith.constant dense<0.000000e+00> : vector<128x128xf32>
    %140 = tpu.matmul %137, %139, %cst_83 {dimension_numbers = #tpu.dot_dimension_numbers<[1], [0], [0], [1], [0, 0, 1, 1], [], []>} : vector<128x128xbf16>, vector<128x128xbf16>, vector<128x128xf32> -> vector<128x128xf32>
    %141 = arith.addf %134, %140 : vector<128x128xf32>
    %142 = vector.extract_strided_slice %135 {offsets = [0, 0, 1, 0], sizes = [2, 8, 8, 128], strides = [1, 1, 1, 1]} : vector<2x8x10x128xbf16> to vector<2x8x8x128xbf16>
    %143 = vector.shape_cast %142 : vector<2x8x8x128xbf16> to vector<128x128xbf16>
    %c7_84 = arith.constant 7 : index
    %c0_85 = arith.constant 0 : index
    %c0_86 = arith.constant 0 : index
    %144 = vector.load %arg5[%c7_84, %c0_85, %c0_86] : memref<9x128x128xbf16, #tpu.memory_space<vmem>>, vector<1x128x128xbf16>
    %145 = vector.shape_cast %144 : vector<1x128x128xbf16> to vector<128x128xbf16>
    %cst_87 = arith.constant dense<0.000000e+00> : vector<128x128xf32>
    %146 = tpu.matmul %143, %145, %cst_87 {dimension_numbers = #tpu.dot_dimension_numbers<[1], [0], [0], [1], [0, 0, 1, 1], [], []>} : vector<128x128xbf16>, vector<128x128xbf16>, vector<128x128xf32> -> vector<128x128xf32>
    %147 = arith.addf %141, %146 : vector<128x128xf32>
    %148 = vector.extract_strided_slice %135 {offsets = [0, 0, 2, 0], sizes = [2, 8, 8, 128], strides = [1, 1, 1, 1]} : vector<2x8x10x128xbf16> to vector<2x8x8x128xbf16>
    %149 = vector.shape_cast %148 : vector<2x8x8x128xbf16> to vector<128x128xbf16>
    %c8_88 = arith.constant 8 : index
    %c0_89 = arith.constant 0 : index
    %c0_90 = arith.constant 0 : index
    %150 = vector.load %arg5[%c8_88, %c0_89, %c0_90] : memref<9x128x128xbf16, #tpu.memory_space<vmem>>, vector<1x128x128xbf16>
    %151 = vector.shape_cast %150 : vector<1x128x128xbf16> to vector<128x128xbf16>
    %cst_91 = arith.constant dense<0.000000e+00> : vector<128x128xf32>
    %152 = tpu.matmul %149, %151, %cst_91 {dimension_numbers = #tpu.dot_dimension_numbers<[1], [0], [0], [1], [0, 0, 1, 1], [], []>} : vector<128x128xbf16>, vector<128x128xbf16>, vector<128x128xf32> -> vector<128x128xf32>
    %153 = arith.addf %147, %152 : vector<128x128xf32>
    %cst_92 = arith.constant dense<0.000000e+00> : vector<128xf32>
    %154 = vector.multi_reduction <add>, %153, %cst_92 [0] : vector<128x128xf32> to vector<128xf32>
    %155 = vector.shape_cast %154 : vector<128xf32> to vector<1x128xf32>
    %cst_93 = arith.constant 1.280000e+02 : f32
    %156 = vector.broadcast %cst_93 : f32 to vector<1x128xf32>
    %157 = arith.divf %155, %156 : vector<1x128xf32>
    %158 = arith.mulf %153, %153 : vector<128x128xf32>
    %cst_94 = arith.constant dense<0.000000e+00> : vector<128xf32>
    %159 = vector.multi_reduction <add>, %158, %cst_94 [0] : vector<128x128xf32> to vector<128xf32>
    %160 = vector.shape_cast %159 : vector<128xf32> to vector<1x128xf32>
    %cst_95 = arith.constant 1.280000e+02 : f32
    %161 = vector.broadcast %cst_95 : f32 to vector<1x128xf32>
    %162 = arith.divf %160, %161 : vector<1x128xf32>
    %163 = arith.mulf %157, %157 : vector<1x128xf32>
    %164 = arith.subf %162, %163 : vector<1x128xf32>
    %cst_96 = arith.constant 0.000000e+00 : f32
    %165 = vector.broadcast %cst_96 : f32 to vector<1x128xf32>
    %166 = arith.maximumf %164, %165 : vector<1x128xf32>
    %167 = vector.broadcast %157 : vector<1x128xf32> to vector<128x128xf32>
    %168 = arith.subf %153, %167 : vector<128x128xf32>
    %cst_97 = arith.constant 9.99999974E-6 : f32
    %169 = vector.broadcast %cst_97 : f32 to vector<1x128xf32>
    %170 = arith.addf %166, %169 : vector<1x128xf32>
    %171 = math.rsqrt %170 : vector<1x128xf32>
    %172 = vector.broadcast %171 : vector<1x128xf32> to vector<128x128xf32>
    %173 = arith.mulf %168, %172 : vector<128x128xf32>
    %c0_98 = arith.constant 0 : index
    %c0_99 = arith.constant 0 : index
    %174 = vector.load %arg6[%c0_98, %c0_99] : memref<1x128xf32, #tpu.memory_space<vmem>>, vector<1x128xf32>
    %175 = vector.broadcast %174 : vector<1x128xf32> to vector<128x128xf32>
    %176 = arith.mulf %173, %175 : vector<128x128xf32>
    %c0_100 = arith.constant 0 : index
    %c0_101 = arith.constant 0 : index
    %177 = vector.load %arg7[%c0_100, %c0_101] : memref<1x128xf32, #tpu.memory_space<vmem>>, vector<1x128xf32>
    %178 = vector.broadcast %177 : vector<1x128xf32> to vector<128x128xf32>
    %179 = arith.addf %176, %178 : vector<128x128xf32>
    %180 = arith.addf %179, %2 : vector<128x128xf32>
    %cst_102 = arith.constant 0.000000e+00 : f32
    %181 = vector.broadcast %cst_102 : f32 to vector<128x128xf32>
    %182 = arith.maximumf %180, %181 : vector<128x128xf32>
    %c0_103 = arith.constant 0 : index
    %c0_104 = arith.constant 0 : index
    %183 = vector.load %arg8[%c0_103, %c0_104] : memref<128x128xf32, #tpu.memory_space<vmem>>, vector<128x128xf32>
    tpu.vector_store %arg8[%c0_103, %c0_104], %182 {strides = array<i32>} : memref<128x128xf32, #tpu.memory_space<vmem>>, vector<128x128xf32>,
    return
  }
  func.func @transform_0(%arg0: i32) -> (i32, i32, i32, i32) {
    %c0_i32 = arith.constant 0 : i32
    %c0_i32_0 = arith.constant 0 : i32
    %c0_i32_1 = arith.constant 0 : i32
    %c0_i32_2 = arith.constant 0 : i32
    %c0_i32_3 = arith.constant 0 : i32
    return %c0_i32, %c0_i32_0, %c0_i32_1, %c0_i32_2 : i32, i32, i32, i32
  }
  func.func @transform_1(%arg0: i32) -> (i32, i32, i32) {
    %c0_i32 = arith.constant 0 : i32
    %c0_i32_0 = arith.constant 0 : i32
    %c0_i32_1 = arith.constant 0 : i32
    %c0_i32_2 = arith.constant 0 : i32
    return %c0_i32, %c0_i32_0, %c0_i32_1 : i32, i32, i32
  }
  func.func @transform_2(%arg0: i32) -> (i32, i32) {
    %c0_i32 = arith.constant 0 : i32
    %c0_i32_0 = arith.constant 0 : i32
    %c0_i32_1 = arith.constant 0 : i32
    return %c0_i32, %c0_i32_0 : i32, i32
  }
  func.func @transform_3(%arg0: i32) -> (i32, i32) {
    %c0_i32 = arith.constant 0 : i32
    %c0_i32_0 = arith.constant 0 : i32
    %c0_i32_1 = arith.constant 0 : i32
    return %c0_i32, %c0_i32_0 : i32, i32
  }
  func.func @transform_4(%arg0: i32) -> (i32, i32, i32) {
    %c0_i32 = arith.constant 0 : i32
    %c0_i32_0 = arith.constant 0 : i32
    %c0_i32_1 = arith.constant 0 : i32
    %c0_i32_2 = arith.constant 0 : i32
    return %c0_i32, %c0_i32_0, %c0_i32_1 : i32, i32, i32
  }
  func.func @transform_5(%arg0: i32) -> (i32, i32) {
    %c0_i32 = arith.constant 0 : i32
    %c0_i32_0 = arith.constant 0 : i32
    %c0_i32_1 = arith.constant 0 : i32
    return %c0_i32, %c0_i32_0 : i32, i32
  }
  func.func @transform_6(%arg0: i32) -> (i32, i32) {
    %c0_i32 = arith.constant 0 : i32
    %c0_i32_0 = arith.constant 0 : i32
    %c0_i32_1 = arith.constant 0 : i32
    return %c0_i32, %c0_i32_0 : i32, i32
  }
  func.func @transform_7(%arg0: i32) -> (i32, i32) {
    %c0_i32 = arith.constant 0 : i32
    %c0_i32_0 = arith.constant 0 : i32
    %c0_i32_1 = arith.constant 0 : i32
    return %c0_i32, %c0_i32_0 : i32, i32
  }
}

</mosaic_0001>

<llo_original>
// kernel: resblock_forward.1
$region0: #{resblock_forward.1}
  #allocation0 [shape = 'u32[]', space=smem, size = 0x4, offset = 0x4, fixed_abs, tag = 'smem constant byte address 0x4 - core index']
  #allocation1 [shape = 'u32[144,128]{1,0:T(1,128)}', space=vmem, size = 0x12000, scoped, tag = 'internal scratch']
  #allocation2 [shape = 'f32[2,10,10,128]{3,2,1,0:T(8,128)}', space=vmem, size = 0x28000, scoped, tag = 'scratch operand']
  %s0 = inlined_call_operand.vmem [shape: f32[2,10,10,128], index: 0, kind: input, shape index: {}]
  %s1 = inlined_call_operand.vmem [shape: bf16[9,128,128], index: 1, kind: input, shape index: {}]
  %s2 = inlined_call_operand.vmem [shape: f32[1,128], index: 2, kind: input, shape index: {}]
  %s3 = inlined_call_operand.vmem [shape: f32[1,128], index: 3, kind: input, shape index: {}]
  %s4 = inlined_call_operand.vmem [shape: bf16[9,128,128], index: 4, kind: input, shape index: {}]
  %s5 = inlined_call_operand.vmem [shape: f32[1,128], index: 5, kind: input, shape index: {}]
  %s6 = inlined_call_operand.vmem [shape: f32[1,128], index: 6, kind: input, shape index: {}]
  %s7 = inlined_call_operand.hbm [shape: f32[128,128], index: 7, kind: output, shape index: {}]
  %s8 = sld [smem:[#allocation0]]
  $region38: #{resblock_forward.1} parent=0
    _
  %s10 = ssub.s32 1, %s8
  %s11 = scalar_select 0, %s10, %s8
  $region1: #{resblock_forward.1} parent=0
    #allocation3 [shape = 'u8[65536]{0}', space=vmem, size = 0x10000, scoped, tag = 'output window, operand 0, single buffered']
    #allocation4 [shape = 's32[1]{0}', space=sflag, size = 0x4, scoped, tag = 'scoped memory for resblock_forward.1']
    %12 = vsyncpa [#allocation4], 0
    // Predicated region
    $region2: #{resblock_forward.1} parent=1 // pred_check
      _
    $region3: #{resblock_forward.1} parent=1 // pred_check_branch
      %14 = sbr.rel (0) target = $region5
    $region4: #{resblock_forward.1} parent=1 // pred_region
      _
    $region5: #{resblock_forward.1} parent=1 // pred_fallthru
      _
    // Predicated region
    $region6: #{resblock_forward.1} parent=1 // pred_check
      _
    $region7: #{resblock_forward.1} parent=1 // pred_check_branch
      %16 = sbr.rel (0) target = $region9
    $region8: #{resblock_forward.1} parent=1 // pred_region
      _
    $region9: #{resblock_forward.1} parent=1 // pred_fallthru
      _
    // Predicated region
    $region10: #{resblock_forward.1} parent=1 // pred_check
      _
    $region11: #{resblock_forward.1} parent=1 // pred_check_branch
      %18 = sbr.rel (0) target = $region13
    $region12: #{resblock_forward.1} parent=1 // pred_region
      _
    $region13: #{resblock_forward.1} parent=1 // pred_fallthru
      _
    // Predicated region
    $region14: #{resblock_forward.1} parent=1 // pred_check
      _
    $region15: #{resblock_forward.1} parent=1 // pred_check_branch
      %20 = sbr.rel (0) target = $region17
    $region16: #{resblock_forward.1} parent=1 // pred_region
      _
    $region17: #{resblock_forward.1} parent=1 // pred_fallthru
      _
    // Predicated region
    $region18: #{resblock_forward.1} parent=1 // pred_check
      _
    $region19: #{resblock_forward.1} parent=1 // pred_check_branch
      %22 = sbr.rel (0) target = $region21
    $region20: #{resblock_forward.1} parent=1 // pred_region
      _
    $region21: #{resblock_forward.1} parent=1 // pred_fallthru
      _
    // Predicated region
    $region22: #{resblock_forward.1} parent=1 // pred_check
      _
    $region23: #{resblock_forward.1} parent=1 // pred_check_branch
      %24 = sbr.rel (0) target = $region25
    $region24: #{resblock_forward.1} parent=1 // pred_region
      _
    $region25: #{resblock_forward.1} parent=1 // pred_fallthru
      _
    // Predicated region
    $region26: #{resblock_forward.1} parent=1 // pred_check
      _
    $region27: #{resblock_forward.1} parent=1 // pred_check_branch
      %26 = sbr.rel (0) target = $region29
    $region28: #{resblock_forward.1} parent=1 // pred_region
      _
    $region29: #{resblock_forward.1} parent=1 // pred_fallthru
      _
    %v28 = vld [vmem:[%s0] sm:$0xff]
    %v29 = vld [vmem:[%s0 + $0x8] sm:$0x3]
    %v30 = vld [vmem:[%s0 + $0x10] sm:$0xff]
    %v31 = vld [vmem:[%s0 + $0x18] sm:$0x3]
    %v32 = vld [vmem:[%s0 + $0x20] sm:$0xff]
    %v33 = vld [vmem:[%s0 + $0x28] sm:$0x3]
    %v34 = vld [vmem:[%s0 + $0x30] sm:$0xff]
    %v35 = vld [vmem:[%s0 + $0x38] sm:$0x3]
    %v36 = vld [vmem:[%s0 + $0x40] sm:$0xff]
    %v37 = vld [vmem:[%s0 + $0x48] sm:$0x3]
    %v38 = vld [vmem:[%s0 + $0x50] sm:$0xff]
    %v39 = vld [vmem:[%s0 + $0x58] sm:$0x3]
    %v40 = vld [vmem:[%s0 + $0x60] sm:$0xff]
    %v41 = vld [vmem:[%s0 + $0x68] sm:$0x3]
    %v42 = vld [vmem:[%s0 + $0x70] sm:$0xff]
    %v43 = vld [vmem:[%s0 + $0x78] sm:$0x3]
    %v44 = vld [vmem:[%s0 + $0x80] sm:$0xff]
    %v45 = vld [vmem:[%s0 + $0x88] sm:$0x3]
    %v46 = vld [vmem:[%s0 + $0x90] sm:$0xff]
    %v47 = vld [vmem:[%s0 + $0x98] sm:$0x3]
    %v48 = vld [vmem:[%s0 + $0xa0] sm:$0xff]
    %v49 = vld [vmem:[%s0 + $0xa8] sm:$0x3]
    %v50 = vld [vmem:[%s0 + $0xb0] sm:$0xff]
    %v51 = vld [vmem:[%s0 + $0xb8] sm:$0x3]
    %v52 = vld [vmem:[%s0 + $0xc0] sm:$0xff]
    %v53 = vld [vmem:[%s0 + $0xc8] sm:$0x3]
    %v54 = vld [vmem:[%s0 + $0xd0] sm:$0xff]
    %v55 = vld [vmem:[%s0 + $0xd8] sm:$0x3]
    %v56 = vld [vmem:[%s0 + $0xe0] sm:$0xff]
    %v57 = vld [vmem:[%s0 + $0xe8] sm:$0x3]
    %v58 = vld [vmem:[%s0 + $0xf0] sm:$0xff]
    %v59 = vld [vmem:[%s0 + $0xf8] sm:$0x3]
    %v60 = vld [vmem:[%s0 + $0x100] sm:$0xff]
    %v61 = vld [vmem:[%s0 + $0x108] sm:$0x3]
    %v62 = vld [vmem:[%s0 + $0x110] sm:$0xff]
    %v63 = vld [vmem:[%s0 + $0x118] sm:$0x3]
    %v64 = vld [vmem:[%s0 + $0x120] sm:$0xff]
    %v65 = vld [vmem:[%s0 + $0x128] sm:$0x3]
    %v66 = vld [vmem:[%s0 + $0x130] sm:$0xff]
    %v67 = vld [vmem:[%s0 + $0x138] sm:$0x3]
    %vm100 = vcmask 1046528
    %v101 = vrot.slane %v30, 1
    %v102 = vrot.slane %v31, 1
    %v103 = vsel %vm100, %v101, %v102
    %v104 = vrot.slane %v32, 1
    %v105 = vrot.slane %v33, 1
    %v106 = vsel %vm100, %v104, %v105
    %v107 = vrot.slane %v34, 1
    %v108 = vrot.slane %v35, 1
    %v109 = vsel %vm100, %v107, %v108
    %v110 = vrot.slane %v36, 1
    %v111 = vrot.slane %v37, 1
    %v112 = vsel %vm100, %v110, %v111
    %v113 = vrot.slane %v38, 1
    %v114 = vrot.slane %v39, 1
    %v115 = vsel %vm100, %v113, %v114
    %v116 = vrot.slane %v40, 1
    %v117 = vrot.slane %v41, 1
    %v118 = vsel %vm100, %v116, %v117
    %v119 = vrot.slane %v42, 1
    %v120 = vrot.slane %v43, 1
    %v121 = vsel %vm100, %v119, %v120
    %v122 = vrot.slane %v44, 1
    %v123 = vrot.slane %v45, 1
    %v124 = vsel %vm100, %v122, %v123
    %v125 = vrot.slane %v50, 1
    %v126 = vrot.slane %v51, 1
    %v127 = vsel %vm100, %v125, %v126
    %v128 = vrot.slane %v52, 1
    %v129 = vrot.slane %v53, 1
    %v130 = vsel %vm100, %v128, %v129
    %v131 = vrot.slane %v54, 1
    %v132 = vrot.slane %v55, 1
    %v133 = vsel %vm100, %v131, %v132
    %v134 = vrot.slane %v56, 1
    %v135 = vrot.slane %v57, 1
    %v136 = vsel %vm100, %v134, %v135
    %v137 = vrot.slane %v58, 1
    %v138 = vrot.slane %v59, 1
    %v139 = vsel %vm100, %v137, %v138
    %v140 = vrot.slane %v60, 1
    %v141 = vrot.slane %v61, 1
    %v142 = vsel %vm100, %v140, %v141
    %v143 = vrot.slane %v62, 1
    %v144 = vrot.slane %v63, 1
    %v145 = vsel %vm100, %v143, %v144
    %v146 = vrot.slane %v64, 1
    %v147 = vrot.slane %v65, 1
    %v148 = vsel %vm100, %v146, %v147
    %v165 = vpack.c.bf16 %v29, %v28
    %v166 = vpack.c.bf16 %v31, %v30
    %v167 = vpack.c.bf16 %v33, %v32
    %v168 = vpack.c.bf16 %v35, %v34
    %v169 = vpack.c.bf16 %v37, %v36
    %v170 = vpack.c.bf16 %v39, %v38
    %v171 = vpack.c.bf16 %v41, %v40
    %v172 = vpack.c.bf16 %v43, %v42
    %v173 = vpack.c.bf16 %v45, %v44
    %v174 = vpack.c.bf16 %v47, %v46
    %v175 = vpack.c.bf16 %v49, %v48
    %v176 = vpack.c.bf16 %v51, %v50
    %v177 = vpack.c.bf16 %v53, %v52
    %v178 = vpack.c.bf16 %v55, %v54
    %v179 = vpack.c.bf16 %v57, %v56
    %v180 = vpack.c.bf16 %v59, %v58
    %v181 = vpack.c.bf16 %v61, %v60
    %v182 = vpack.c.bf16 %v63, %v62
    %v183 = vpack.c.bf16 %v65, %v64
    %v184 = vpack.c.bf16 %v67, %v66
    %v185 = vld [vmem:[%s1] sm:$0xf]
    %v186 = vld [vmem:[%s1 + $0x4] sm:$0xf]
    %v187 = vld [vmem:[%s1 + $0x8] sm:$0xf]
    %v188 = vld [vmem:[%s1 + $0xc] sm:$0xf]
    %v189 = vld [vmem:[%s1 + $0x10] sm:$0xf]
    %v190 = vld [vmem:[%s1 + $0x14] sm:$0xf]
    %v191 = vld [vmem:[%s1 + $0x18] sm:$0xf]
    %v192 = vld [vmem:[%s1 + $0x1c] sm:$0xf]
    %v193 = vld [vmem:[%s1 + $0x20] sm:$0xf]
    %v194 = vld [vmem:[%s1 + $0x24] sm:$0xf]
    %v195 = vld [vmem:[%s1 + $0x28] sm:$0xf]
    %v196 = vld [vmem:[%s1 + $0x2c] sm:$0xf]
    %v197 = vld [vmem:[%s1 + $0x30] sm:$0xf]
    %v198 = vld [vmem:[%s1 + $0x34] sm:$0xf]
    %v199 = vld [vmem:[%s1 + $0x38] sm:$0xf]
    %v200 = vld [vmem:[%s1 + $0x3c] sm:$0xf]
    %v217 = vunpack.c.l.b16 %v165
    %v218 = vunpack.c.h.b16 %v165
    %v219 = vunpack.c.l.b16 %v166
    %v220 = vunpack.c.h.b16 %v166
    %v221 = vunpack.c.l.b16 %v167
    %v222 = vunpack.c.h.b16 %v167
    %v223 = vunpack.c.l.b16 %v168
    %v224 = vunpack.c.h.b16 %v168
    %v225 = vunpack.c.l.b16 %v169
    %v226 = vunpack.c.h.b16 %v169
    %v227 = vunpack.c.l.b16 %v170
    %v228 = vunpack.c.h.b16 %v170
    %v229 = vunpack.c.l.b16 %v171
    %v230 = vunpack.c.h.b16 %v171
    %v231 = vunpack.c.l.b16 %v172
    %v232 = vunpack.c.h.b16 %v172
    %v233 = vunpack.c.l.b16 %v175
    %v234 = vunpack.c.h.b16 %v175
    %v235 = vunpack.c.l.b16 %v176
    %v236 = vunpack.c.h.b16 %v176
    %v237 = vunpack.c.l.b16 %v177
    %v238 = vunpack.c.h.b16 %v177
    %v239 = vunpack.c.l.b16 %v178
    %v240 = vunpack.c.h.b16 %v178
    %v241 = vunpack.c.l.b16 %v179
    %v242 = vunpack.c.h.b16 %v179
    %v243 = vunpack.c.l.b16 %v180
    %v244 = vunpack.c.h.b16 %v180
    %v245 = vunpack.c.l.b16 %v181
    %v246 = vunpack.c.h.b16 %v181
    %v247 = vunpack.c.l.b16 %v182
    %v248 = vunpack.c.h.b16 %v182
    %v249 = vpack.c.b16 %v217, %v217
    %v250 = vpack.c.b16 %v218, %v218
    %v251 = vpack.c.b16 %v219, %v219
    %v252 = vpack.c.b16 %v220, %v220
    %v253 = vpack.c.b16 %v221, %v221
    %v254 = vpack.c.b16 %v222, %v222
    %v255 = vpack.c.b16 %v223, %v223
    %v256 = vpack.c.b16 %v224, %v224
    %v257 = vpack.c.b16 %v225, %v225
    %v258 = vpack.c.b16 %v226, %v226
    %v259 = vpack.c.b16 %v227, %v227
    %v260 = vpack.c.b16 %v228, %v228
    %v261 = vpack.c.b16 %v229, %v229
    %v262 = vpack.c.b16 %v230, %v230
    %v263 = vpack.c.b16 %v231, %v231
    %v264 = vpack.c.b16 %v232, %v232
    %v265 = vpack.c.b16 %v233, %v233
    %v266 = vpack.c.b16 %v234, %v234
    %v267 = vpack.c.b16 %v235, %v235
    %v268 = vpack.c.b16 %v236, %v236
    %v269 = vpack.c.b16 %v237, %v237
    %v270 = vpack.c.b16 %v238, %v238
    %v271 = vpack.c.b16 %v239, %v239
    %v272 = vpack.c.b16 %v240, %v240
    %v273 = vpack.c.b16 %v241, %v241
    %v274 = vpack.c.b16 %v242, %v242
    %v275 = vpack.c.b16 %v243, %v243
    %v276 = vpack.c.b16 %v244, %v244
    %v277 = vpack.c.b16 %v245, %v245
    %v278 = vpack.c.b16 %v246, %v246
    %v279 = vpack.c.b16 %v247, %v247
    %v280 = vpack.c.b16 %v248, %v248
    %vm281 = vsmask.f32 3328
    %vm282 = vsmask.f32 7440
    %vm283 = vmor %vm281, %vm282
    %v285 = vshrl.u32 %v249, 16
    %v287 = vrot.slane %v285, 4
    %v288 = vshll.u32 %v249, 16
    %v290 = vrot.slane %v288, 5
    %v291 = vor.u32 %v287, %v290
    %v292 = vrot.slane %v291, 4
    %v294 = vshll.u32 %v250, 16
    %v296 = vrot.slane %v294, 5
    %v297 = vsel %vm283, %v292, %v296
    %v299 = vshrl.u32 %v251, 16
    %v301 = vrot.slane %v299, 4
    %v302 = vshll.u32 %v251, 16
    %v304 = vrot.slane %v302, 5
    %v305 = vor.u32 %v301, %v304
    %v306 = vrot.slane %v305, 4
    %v308 = vshll.u32 %v252, 16
    %v310 = vrot.slane %v308, 5
    %v311 = vsel %vm283, %v306, %v310
    %v313 = vshrl.u32 %v253, 16
    %v315 = vrot.slane %v313, 4
    %v316 = vshll.u32 %v253, 16
    %v318 = vrot.slane %v316, 5
    %v319 = vor.u32 %v315, %v318
    %v320 = vrot.slane %v319, 4
    %v322 = vshll.u32 %v254, 16
    %v324 = vrot.slane %v322, 5
    %v325 = vsel %vm283, %v320, %v324
    %v327 = vshrl.u32 %v255, 16
    %v329 = vrot.slane %v327, 4
    %v330 = vshll.u32 %v255, 16
    %v332 = vrot.slane %v330, 5
    %v333 = vor.u32 %v329, %v332
    %v334 = vrot.slane %v333, 4
    %v336 = vshll.u32 %v256, 16
    %v338 = vrot.slane %v336, 5
    %v339 = vsel %vm283, %v334, %v338
    %v341 = vshrl.u32 %v257, 16
    %v343 = vrot.slane %v341, 4
    %v344 = vshll.u32 %v257, 16
    %v346 = vrot.slane %v344, 5
    %v347 = vor.u32 %v343, %v346
    %v348 = vrot.slane %v347, 4
    %v350 = vshll.u32 %v258, 16
    %v352 = vrot.slane %v350, 5
    %v353 = vsel %vm283, %v348, %v352
    %v355 = vshrl.u32 %v259, 16
    %v357 = vrot.slane %v355, 4
    %v358 = vshll.u32 %v259, 16
    %v360 = vrot.slane %v358, 5
    %v361 = vor.u32 %v357, %v360
    %v362 = vrot.slane %v361, 4
    %v364 = vshll.u32 %v260, 16
    %v366 = vrot.slane %v364, 5
    %v367 = vsel %vm283, %v362, %v366
    %v369 = vshrl.u32 %v261, 16
    %v371 = vrot.slane %v369, 4
    %v372 = vshll.u32 %v261, 16
    %v374 = vrot.slane %v372, 5
    %v375 = vor.u32 %v371, %v374
    %v376 = vrot.slane %v375, 4
    %v378 = vshll.u32 %v262, 16
    %v380 = vrot.slane %v378, 5
    %v381 = vsel %vm283, %v376, %v380
    %v383 = vshrl.u32 %v263, 16
    %v385 = vrot.slane %v383, 4
    %v386 = vshll.u32 %v263, 16
    %v388 = vrot.slane %v386, 5
    %v389 = vor.u32 %v385, %v388
    %v390 = vrot.slane %v389, 4
    %v392 = vshll.u32 %v264, 16
    %v394 = vrot.slane %v392, 5
    %v395 = vsel %vm283, %v390, %v394
    %v397 = vshrl.u32 %v265, 16
    %v399 = vrot.slane %v397, 4
    %v400 = vshll.u32 %v265, 16
    %v402 = vrot.slane %v400, 5
    %v403 = vor.u32 %v399, %v402
    %v404 = vrot.slane %v403, 4
    %v406 = vshll.u32 %v266, 16
    %v408 = vrot.slane %v406, 5
    %v409 = vsel %vm283, %v404, %v408
    %v411 = vshrl.u32 %v267, 16
    %v413 = vrot.slane %v411, 4
    %v414 = vshll.u32 %v267, 16
    %v416 = vrot.slane %v414, 5
    %v417 = vor.u32 %v413, %v416
    %v418 = vrot.slane %v417, 4
    %v420 = vshll.u32 %v268, 16
    %v422 = vrot.slane %v420, 5
    %v423 = vsel %vm283, %v418, %v422
    %v425 = vshrl.u32 %v269, 16
    %v427 = vrot.slane %v425, 4
    %v428 = vshll.u32 %v269, 16
    %v430 = vrot.slane %v428, 5
    %v431 = vor.u32 %v427, %v430
    %v432 = vrot.slane %v431, 4
    %v434 = vshll.u32 %v270, 16
    %v436 = vrot.slane %v434, 5
    %v437 = vsel %vm283, %v432, %v436
    %v439 = vshrl.u32 %v271, 16
    %v441 = vrot.slane %v439, 4
    %v442 = vshll.u32 %v271, 16
    %v444 = vrot.slane %v442, 5
    %v445 = vor.u32 %v441, %v444
    %v446 = vrot.slane %v445, 4
    %v448 = vshll.u32 %v272, 16
    %v450 = vrot.slane %v448, 5
    %v451 = vsel %vm283, %v446, %v450
    %v453 = vshrl.u32 %v273, 16
    %v455 = vrot.slane %v453, 4
    %v456 = vshll.u32 %v273, 16
    %v458 = vrot.slane %v456, 5
    %v459 = vor.u32 %v455, %v458
    %v460 = vrot.slane %v459, 4
    %v462 = vshll.u32 %v274, 16
    %v464 = vrot.slane %v462, 5
    %v465 = vsel %vm283, %v460, %v464
    %v467 = vshrl.u32 %v275, 16
    %v469 = vrot.slane %v467, 4
    %v470 = vshll.u32 %v275, 16
    %v472 = vrot.slane %v470, 5
    %v473 = vor.u32 %v469, %v472
    %v474 = vrot.slane %v473, 4
    %v476 = vshll.u32 %v276, 16
    %v478 = vrot.slane %v476, 5
    %v479 = vsel %vm283, %v474, %v478
    %v481 = vshrl.u32 %v277, 16
    %v483 = vrot.slane %v481, 4
    %v484 = vshll.u32 %v277, 16
    %v486 = vrot.slane %v484, 5
    %v487 = vor.u32 %v483, %v486
    %v488 = vrot.slane %v487, 4
    %v490 = vshll.u32 %v278, 16
    %v492 = vrot.slane %v490, 5
    %v493 = vsel %vm283, %v488, %v492
    %v495 = vshrl.u32 %v279, 16
    %v497 = vrot.slane %v495, 4
    %v498 = vshll.u32 %v279, 16
    %v500 = vrot.slane %v498, 5
    %v501 = vor.u32 %v497, %v500
    %v502 = vrot.slane %v501, 4
    %v504 = vshll.u32 %v280, 16
    %v506 = vrot.slane %v504, 5
    %v507 = vsel %vm283, %v502, %v506
    %s508 = scalar_lea.vmem %s1, 64
    %v509 = vld [vmem:[%s508] sm:$0xf]
    %v510 = vld [vmem:[%s508 + $0x4] sm:$0xf]
    %v511 = vld [vmem:[%s508 + $0x8] sm:$0xf]
    %v512 = vld [vmem:[%s508 + $0xc] sm:$0xf]
    %v513 = vld [vmem:[%s508 + $0x10] sm:$0xf]
    %v514 = vld [vmem:[%s508 + $0x14] sm:$0xf]
    %v515 = vld [vmem:[%s508 + $0x18] sm:$0xf]
    %v516 = vld [vmem:[%s508 + $0x1c] sm:$0xf]
    %v517 = vld [vmem:[%s508 + $0x20] sm:$0xf]
    %v518 = vld [vmem:[%s508 + $0x24] sm:$0xf]
    %v519 = vld [vmem:[%s508 + $0x28] sm:$0xf]
    %v520 = vld [vmem:[%s508 + $0x2c] sm:$0xf]
    %v521 = vld [vmem:[%s508 + $0x30] sm:$0xf]
    %v522 = vld [vmem:[%s508 + $0x34] sm:$0xf]
    %v523 = vld [vmem:[%s508 + $0x38] sm:$0xf]
    %v524 = vld [vmem:[%s508 + $0x3c] sm:$0xf]
    %v525 = vunpack.c.l.b16 %v297
    %v526 = vunpack.c.l.b16 %v311
    %v527 = vunpack.c.l.b16 %v325
    %v528 = vunpack.c.l.b16 %v339
    %v529 = vunpack.c.l.b16 %v353
    %v530 = vunpack.c.l.b16 %v367
    %v531 = vunpack.c.l.b16 %v381
    %v532 = vunpack.c.l.b16 %v395
    %v533 = vunpack.c.l.b16 %v409
    %v534 = vunpack.c.l.b16 %v423
    %v535 = vunpack.c.l.b16 %v437
    %v536 = vunpack.c.l.b16 %v451
    %v537 = vunpack.c.l.b16 %v465
    %v538 = vunpack.c.l.b16 %v479
    %v539 = vunpack.c.l.b16 %v493
    %v540 = vunpack.c.l.b16 %v507
    %v541 = vpack.c.b16 %v526, %v525
    %v542 = vpack.c.b16 %v528, %v527
    %v543 = vpack.c.b16 %v530, %v529
    %v544 = vpack.c.b16 %v532, %v531
    %v545 = vpack.c.b16 %v534, %v533
    %v546 = vpack.c.b16 %v536, %v535
    %v547 = vpack.c.b16 %v538, %v537
    %v548 = vpack.c.b16 %v540, %v539
    %v573 = vunpack.c.l.b16 %v509
    %v574 = vunpack.c.l.b16 %v510
    %v575 = vunpack.c.l.b16 %v511
    %v576 = vunpack.c.l.b16 %v512
    %v577 = vunpack.c.l.b16 %v513
    %v578 = vunpack.c.l.b16 %v514
    %v579 = vunpack.c.l.b16 %v515
    %v580 = vunpack.c.l.b16 %v516
    %v581 = vunpack.c.l.b16 %v517
    %v582 = vunpack.c.l.b16 %v518
    %v583 = vunpack.c.l.b16 %v519
    %v584 = vunpack.c.l.b16 %v520
    %v585 = vunpack.c.l.b16 %v521
    %v586 = vunpack.c.l.b16 %v522
    %v587 = vunpack.c.l.b16 %v523
    %v588 = vunpack.c.l.b16 %v524
    %v589 = vpack.c.b16 %v574, %v573
    %v590 = vpack.c.b16 %v576, %v575
    %v591 = vpack.c.b16 %v578, %v577
    %v592 = vpack.c.b16 %v580, %v579
    %v593 = vpack.c.b16 %v582, %v581
    %v594 = vpack.c.b16 %v584, %v583
    %v595 = vpack.c.b16 %v586, %v585
    %v596 = vpack.c.b16 %v588, %v587
    %605 = vmatprep.subr.bf16.mxu0 0
    %606 = vmatpush1.bf16.msra.mxu0 %v596
    %607 = vmatprep.subr.bf16.mxu0 0
    %608 = vmatpush1.bf16.msra.mxu0 %v595
    %609 = vmatprep.subr.bf16.mxu0 0
    %610 = vmatpush1.bf16.msra.mxu0 %v594
    %611 = vmatprep.subr.bf16.mxu0 0
    %612 = vmatpush1.bf16.msra.mxu0 %v593
    %613 = vmatprep.subr.bf16.mxu0 0
    %614 = vmatpush1.bf16.msra.mxu0 %v592
    %615 = vmatprep.subr.bf16.mxu0 0
    %616 = vmatpush1.bf16.msra.mxu0 %v591
    %617 = vmatprep.subr.bf16.mxu0 0
    %618 = vmatpush1.bf16.msra.mxu0 %v590
    %619 = vmatprep.subr.bf16.mxu0 0
    %620 = vmatpush1.bf16.msra.mxu0 %v589
    %621 = vmatprep.subr.bf16.mxu0 0
    %622 = vmatpush2.bf16.msra.mxu0 0
    %623 = vmatprep.subr.bf16.mxu0 0
    %624 = vmatpush2.bf16.msra.mxu0 0
    %625 = vmatprep.subr.bf16.mxu0 0
    %626 = vmatpush2.bf16.msra.mxu0 0
    %627 = vmatprep.subr.bf16.mxu0 0
    %628 = vmatpush2.bf16.msra.mxu0 0
    %629 = vmatprep.subr.bf16.mxu0 0
    %630 = vmatpush2.bf16.msra.mxu0 0
    %631 = vmatprep.subr.bf16.mxu0 0
    %632 = vmatpush2.bf16.msra.mxu0 0
    %633 = vmatprep.subr.bf16.mxu0 0
    %634 = vmatpush2.bf16.msra.mxu0 0
    %635 = vmatprep.subr.bf16.mxu0 0
    %636 = vmatpush2.bf16.msra.mxu0 0
    %637 = vmatprep.mubr.bf16.mxu0 0
    %638 = vmatmul.mubr.bf16.gmra.mxu0 %v541
    %v639 = vpop.f32.mrf.mxu0
    %v640 = vadd.f32 0.0, %v639
    %v641 = vpop.f32.mrf.mxu0
    %v642 = vpop.f32.mrf.mxu0
    %v643 = vadd.f32 0.0, %v642
    %v644 = vpop.f32.mrf.mxu0
    %645 = vmatprep.mubr.bf16.mxu0 0
    %646 = vmatmul.mubr.bf16.gmra.mxu0 %v542
    %v647 = vpop.f32.mrf.mxu0
    %v648 = vadd.f32 0.0, %v647
    %v649 = vpop.f32.mrf.mxu0
    %v650 = vpop.f32.mrf.mxu0
    %v651 = vadd.f32 0.0, %v650
    %v652 = vpop.f32.mrf.mxu0
    %653 = vmatprep.mubr.bf16.mxu0 0
    %654 = vmatmul.mubr.bf16.gmra.mxu0 %v543
    %v655 = vpop.f32.mrf.mxu0
    %v656 = vadd.f32 0.0, %v655
    %v657 = vpop.f32.mrf.mxu0
    %v658 = vpop.f32.mrf.mxu0
    %v659 = vadd.f32 0.0, %v658
    %v660 = vpop.f32.mrf.mxu0
    %661 = vmatprep.mubr.bf16.mxu0 0
    %662 = vmatmul.mubr.bf16.gmra.mxu0 %v544
    %v663 = vpop.f32.mrf.mxu0
    %v664 = vadd.f32 0.0, %v663
    %v665 = vpop.f32.mrf.mxu0
    %v666 = vpop.f32.mrf.mxu0
    %v667 = vadd.f32 0.0, %v666
    %v668 = vpop.f32.mrf.mxu0
    %669 = vmatprep.mubr.bf16.mxu0 0
    %670 = vmatmul.mubr.bf16.gmra.mxu0 %v545
    %v671 = vpop.f32.mrf.mxu0
    %v672 = vadd.f32 0.0, %v671
    %v673 = vpop.f32.mrf.mxu0
    %v674 = vpop.f32.mrf.mxu0
    %v675 = vadd.f32 0.0, %v674
    %v676 = vpop.f32.mrf.mxu0
    %677 = vmatprep.mubr.bf16.mxu0 0
    %678 = vmatmul.mubr.bf16.gmra.mxu0 %v546
    %v679 = vpop.f32.mrf.mxu0
    %v680 = vadd.f32 0.0, %v679
    %v681 = vpop.f32.mrf.mxu0
    %v682 = vpop.f32.mrf.mxu0
    %v683 = vadd.f32 0.0, %v682
    %v684 = vpop.f32.mrf.mxu0
    %685 = vmatprep.mubr.bf16.mxu0 0
    %686 = vmatmul.mubr.bf16.gmra.mxu0 %v547
    %v687 = vpop.f32.mrf.mxu0
    %v688 = vadd.f32 0.0, %v687
    %v689 = vpop.f32.mrf.mxu0
    %v690 = vpop.f32.mrf.mxu0
    %v691 = vadd.f32 0.0, %v690
    %v692 = vpop.f32.mrf.mxu0
    %693 = vmatprep.mubr.bf16.mxu0 0
    %694 = vmatmul.mubr.bf16.gmra.mxu0 %v548
    %v695 = vpop.f32.mrf.mxu0
    %v696 = vadd.f32 0.0, %v695
    %v697 = vpop.f32.mrf.mxu0
    %v698 = vpop.f32.mrf.mxu0
    %v699 = vadd.f32 0.0, %v698
    %v700 = vpop.f32.mrf.mxu0
    %701 = vdwg.mxu0
    %v702 = vpack.c.b16 %v219, %v217
    %v703 = vpack.c.b16 %v223, %v221
    %v704 = vpack.c.b16 %v227, %v225
    %v705 = vpack.c.b16 %v231, %v229
    %v706 = vpack.c.b16 %v235, %v233
    %v707 = vpack.c.b16 %v239, %v237
    %v708 = vpack.c.b16 %v243, %v241
    %v709 = vpack.c.b16 %v247, %v245
    %v734 = vunpack.c.l.b16 %v185
    %v735 = vunpack.c.l.b16 %v186
    %v736 = vunpack.c.l.b16 %v187
    %v737 = vunpack.c.l.b16 %v188
    %v738 = vunpack.c.l.b16 %v189
    %v739 = vunpack.c.l.b16 %v190
    %v740 = vunpack.c.l.b16 %v191
    %v741 = vunpack.c.l.b16 %v192
    %v742 = vunpack.c.l.b16 %v193
    %v743 = vunpack.c.l.b16 %v194
    %v744 = vunpack.c.l.b16 %v195
    %v745 = vunpack.c.l.b16 %v196
    %v746 = vunpack.c.l.b16 %v197
    %v747 = vunpack.c.l.b16 %v198
    %v748 = vunpack.c.l.b16 %v199
    %v749 = vunpack.c.l.b16 %v200
    %v750 = vpack.c.b16 %v735, %v734
    %v751 = vpack.c.b16 %v737, %v736
    %v752 = vpack.c.b16 %v739, %v738
    %v753 = vpack.c.b16 %v741, %v740
    %v754 = vpack.c.b16 %v743, %v742
    %v755 = vpack.c.b16 %v745, %v744
    %v756 = vpack.c.b16 %v747, %v746
    %v757 = vpack.c.b16 %v749, %v748
    %766 = vmatprep.subr.bf16.mxu0 0
    %767 = vmatpush1.bf16.msra.mxu0 %v757
    %768 = vmatprep.subr.bf16.mxu0 0
    %769 = vmatpush1.bf16.msra.mxu0 %v756
    %770 = vmatprep.subr.bf16.mxu0 0
    %771 = vmatpush1.bf16.msra.mxu0 %v755
    %772 = vmatprep.subr.bf16.mxu0 0
    %773 = vmatpush1.bf16.msra.mxu0 %v754
    %774 = vmatprep.subr.bf16.mxu0 0
    %775 = vmatpush1.bf16.msra.mxu0 %v753
    %776 = vmatprep.subr.bf16.mxu0 0
    %777 = vmatpush1.bf16.msra.mxu0 %v752
    %778 = vmatprep.subr.bf16.mxu0 0
    %779 = vmatpush1.bf16.msra.mxu0 %v751
    %780 = vmatprep.subr.bf16.mxu0 0
    %781 = vmatpush1.bf16.msra.mxu0 %v750
    %782 = vmatprep.subr.bf16.mxu0 0
    %783 = vmatpush2.bf16.msra.mxu0 0
    %784 = vmatprep.subr.bf16.mxu0 0
    %785 = vmatpush2.bf16.msra.mxu0 0
    %786 = vmatprep.subr.bf16.mxu0 0
    %787 = vmatpush2.bf16.msra.mxu0 0
    %788 = vmatprep.subr.bf16.mxu0 0
    %789 = vmatpush2.bf16.msra.mxu0 0
    %790 = vmatprep.subr.bf16.mxu0 0
    %791 = vmatpush2.bf16.msra.mxu0 0
    %792 = vmatprep.subr.bf16.mxu0 0
    %793 = vmatpush2.bf16.msra.mxu0 0
    %794 = vmatprep.subr.bf16.mxu0 0
    %795 = vmatpush2.bf16.msra.mxu0 0
    %796 = vmatprep.subr.bf16.mxu0 0
    %797 = vmatpush2.bf16.msra.mxu0 0
    %798 = vmatprep.mubr.bf16.mxu0 0
    %799 = vmatmul.mubr.bf16.gmra.mxu0 %v702
    %v800 = vpop.f32.mrf.mxu0
    %v801 = vadd.f32 %v640, %v800
    %v802 = vpop.f32.mrf.mxu0
    %v803 = vpop.f32.mrf.mxu0
    %v804 = vadd.f32 %v643, %v803
    %v805 = vpop.f32.mrf.mxu0
    %806 = vmatprep.mubr.bf16.mxu0 0
    %807 = vmatmul.mubr.bf16.gmra.mxu0 %v703
    %v808 = vpop.f32.mrf.mxu0
    %v809 = vadd.f32 %v648, %v808
    %v810 = vpop.f32.mrf.mxu0
    %v811 = vpop.f32.mrf.mxu0
    %v812 = vadd.f32 %v651, %v811
    %v813 = vpop.f32.mrf.mxu0
    %814 = vmatprep.mubr.bf16.mxu0 0
    %815 = vmatmul.mubr.bf16.gmra.mxu0 %v704
    %v816 = vpop.f32.mrf.mxu0
    %v817 = vadd.f32 %v656, %v816
    %v818 = vpop.f32.mrf.mxu0
    %v819 = vpop.f32.mrf.mxu0
    %v820 = vadd.f32 %v659, %v819
    %v821 = vpop.f32.mrf.mxu0
    %822 = vmatprep.mubr.bf16.mxu0 0
    %823 = vmatmul.mubr.bf16.gmra.mxu0 %v705
    %v824 = vpop.f32.mrf.mxu0
    %v825 = vadd.f32 %v664, %v824
    %v826 = vpop.f32.mrf.mxu0
    %v827 = vpop.f32.mrf.mxu0
    %v828 = vadd.f32 %v667, %v827
    %v829 = vpop.f32.mrf.mxu0
    %830 = vmatprep.mubr.bf16.mxu0 0
    %831 = vmatmul.mubr.bf16.gmra.mxu0 %v706
    %v832 = vpop.f32.mrf.mxu0
    %v833 = vadd.f32 %v672, %v832
    %v834 = vpop.f32.mrf.mxu0
    %v835 = vpop.f32.mrf.mxu0
    %v836 = vadd.f32 %v675, %v835
    %v837 = vpop.f32.mrf.mxu0
    %838 = vmatprep.mubr.bf16.mxu0 0
    %839 = vmatmul.mubr.bf16.gmra.mxu0 %v707
    %v840 = vpop.f32.mrf.mxu0
    %v841 = vadd.f32 %v680, %v840
    %v842 = vpop.f32.mrf.mxu0
    %v843 = vpop.f32.mrf.mxu0
    %v844 = vadd.f32 %v683, %v843
    %v845 = vpop.f32.mrf.mxu0
    %846 = vmatprep.mubr.bf16.mxu0 0
    %847 = vmatmul.mubr.bf16.gmra.mxu0 %v708
    %v848 = vpop.f32.mrf.mxu0
    %v849 = vadd.f32 %v688, %v848
    %v850 = vpop.f32.mrf.mxu0
    %v851 = vpop.f32.mrf.mxu0
    %v852 = vadd.f32 %v691, %v851
    %v853 = vpop.f32.mrf.mxu0
    %854 = vmatprep.mubr.bf16.mxu0 0
    %855 = vmatmul.mubr.bf16.gmra.mxu0 %v709
    %v856 = vpop.f32.mrf.mxu0
    %v857 = vadd.f32 %v696, %v856
    %v858 = vpop.f32.mrf.mxu0
    %v859 = vpop.f32.mrf.mxu0
    %v860 = vadd.f32 %v699, %v859
    %v861 = vpop.f32.mrf.mxu0
    %862 = vdwg.mxu0
    %vm863 = vcmask 1042432
    %vm864 = vcmask 1046532
    %vm865 = vmor %vm863, %vm864
    %v866 = vrot.slane %v249, 5
    %v867 = vrot.slane %v866, 4
    %v868 = vrot.slane %v250, 5
    %v869 = vsel %vm865, %v867, %v868
    %v870 = vrot.slane %v251, 5
    %v871 = vrot.slane %v870, 4
    %v872 = vrot.slane %v252, 5
    %v873 = vsel %vm865, %v871, %v872
    %v874 = vrot.slane %v253, 5
    %v875 = vrot.slane %v874, 4
    %v876 = vrot.slane %v254, 5
    %v877 = vsel %vm865, %v875, %v876
    %v878 = vrot.slane %v255, 5
    %v879 = vrot.slane %v878, 4
    %v880 = vrot.slane %v256, 5
    %v881 = vsel %vm865, %v879, %v880
    %v882 = vrot.slane %v257, 5
    %v883 = vrot.slane %v882, 4
    %v884 = vrot.slane %v258, 5
    %v885 = vsel %vm865, %v883, %v884
    %v886 = vrot.slane %v259, 5
    %v887 = vrot.slane %v886, 4
    %v888 = vrot.slane %v260, 5
    %v889 = vsel %vm865, %v887, %v888
    %v890 = vrot.slane %v261, 5
    %v891 = vrot.slane %v890, 4
    %v892 = vrot.slane %v262, 5
    %v893 = vsel %vm865, %v891, %v892
    %v894 = vrot.slane %v263, 5
    %v895 = vrot.slane %v894, 4
    %v896 = vrot.slane %v264, 5
    %v897 = vsel %vm865, %v895, %v896
    %v898 = vrot.slane %v265, 5
    %v899 = vrot.slane %v898, 4
    %v900 = vrot.slane %v266, 5
    %v901 = vsel %vm865, %v899, %v900
    %v902 = vrot.slane %v267, 5
    %v903 = vrot.slane %v902, 4
    %v904 = vrot.slane %v268, 5
    %v905 = vsel %vm865, %v903, %v904
    %v906 = vrot.slane %v269, 5
    %v907 = vrot.slane %v906, 4
    %v908 = vrot.slane %v270, 5
    %v909 = vsel %vm865, %v907, %v908
    %v910 = vrot.slane %v271, 5
    %v911 = vrot.slane %v910, 4
    %v912 = vrot.slane %v272, 5
    %v913 = vsel %vm865, %v911, %v912
    %v914 = vrot.slane %v273, 5
    %v915 = vrot.slane %v914, 4
    %v916 = vrot.slane %v274, 5
    %v917 = vsel %vm865, %v915, %v916
    %v918 = vrot.slane %v275, 5
    %v919 = vrot.slane %v918, 4
    %v920 = vrot.slane %v276, 5
    %v921 = vsel %vm865, %v919, %v920
    %v922 = vrot.slane %v277, 5
    %v923 = vrot.slane %v922, 4
    %v924 = vrot.slane %v278, 5
    %v925 = vsel %vm865, %v923, %v924
    %v926 = vrot.slane %v279, 5
    %v927 = vrot.slane %v926, 4
    %v928 = vrot.slane %v280, 5
    %v929 = vsel %vm865, %v927, %v928
    %s930 = scalar_lea.vmem %s1, 128
    %v931 = vld [vmem:[%s930] sm:$0xf]
    %v932 = vld [vmem:[%s930 + $0x4] sm:$0xf]
    %v933 = vld [vmem:[%s930 + $0x8] sm:$0xf]
    %v934 = vld [vmem:[%s930 + $0xc] sm:$0xf]
    %v935 = vld [vmem:[%s930 + $0x10] sm:$0xf]
    %v936 = vld [vmem:[%s930 + $0x14] sm:$0xf]
    %v937 = vld [vmem:[%s930 + $0x18] sm:$0xf]
    %v938 = vld [vmem:[%s930 + $0x1c] sm:$0xf]
    %v939 = vld [vmem:[%s930 + $0x20] sm:$0xf]
    %v940 = vld [vmem:[%s930 + $0x24] sm:$0xf]
    %v941 = vld [vmem:[%s930 + $0x28] sm:$0xf]
    %v942 = vld [vmem:[%s930 + $0x2c] sm:$0xf]
    %v943 = vld [vmem:[%s930 + $0x30] sm:$0xf]
    %v944 = vld [vmem:[%s930 + $0x34] sm:$0xf]
    %v945 = vld [vmem:[%s930 + $0x38] sm:$0xf]
    %v946 = vld [vmem:[%s930 + $0x3c] sm:$0xf]
    %v947 = vunpack.c.l.b16 %v869
    %v948 = vunpack.c.l.b16 %v873
    %v949 = vunpack.c.l.b16 %v877
    %v950 = vunpack.c.l.b16 %v881
    %v951 = vunpack.c.l.b16 %v885
    %v952 = vunpack.c.l.b16 %v889
    %v953 = vunpack.c.l.b16 %v893
    %v954 = vunpack.c.l.b16 %v897
    %v955 = vunpack.c.l.b16 %v901
    %v956 = vunpack.c.l.b16 %v905
    %v957 = vunpack.c.l.b16 %v909
    %v958 = vunpack.c.l.b16 %v913
    %v959 = vunpack.c.l.b16 %v917
    %v960 = vunpack.c.l.b16 %v921
    %v961 = vunpack.c.l.b16 %v925
    %v962 = vunpack.c.l.b16 %v929
    %v963 = vpack.c.b16 %v948, %v947
    %v964 = vpack.c.b16 %v950, %v949
    %v965 = vpack.c.b16 %v952, %v951
    %v966 = vpack.c.b16 %v954, %v953
    %v967 = vpack.c.b16 %v956, %v955
    %v968 = vpack.c.b16 %v958, %v957
    %v969 = vpack.c.b16 %v960, %v959
    %v970 = vpack.c.b16 %v962, %v961
    %v995 = vunpack.c.l.b16 %v931
    %v996 = vunpack.c.l.b16 %v932
    %v997 = vunpack.c.l.b16 %v933
    %v998 = vunpack.c.l.b16 %v934
    %v999 = vunpack.c.l.b16 %v935
    %v1000 = vunpack.c.l.b16 %v936
    %v1001 = vunpack.c.l.b16 %v937
    %v1002 = vunpack.c.l.b16 %v938
    %v1003 = vunpack.c.l.b16 %v939
    %v1004 = vunpack.c.l.b16 %v940
    %v1005 = vunpack.c.l.b16 %v941
    %v1006 = vunpack.c.l.b16 %v942
    %v1007 = vunpack.c.l.b16 %v943
    %v1008 = vunpack.c.l.b16 %v944
    %v1009 = vunpack.c.l.b16 %v945
    %v1010 = vunpack.c.l.b16 %v946
    %v1011 = vpack.c.b16 %v996, %v995
    %v1012 = vpack.c.b16 %v998, %v997
    %v1013 = vpack.c.b16 %v1000, %v999
    %v1014 = vpack.c.b16 %v1002, %v1001
    %v1015 = vpack.c.b16 %v1004, %v1003
    %v1016 = vpack.c.b16 %v1006, %v1005
    %v1017 = vpack.c.b16 %v1008, %v1007
    %v1018 = vpack.c.b16 %v1010, %v1009
    %1027 = vmatprep.subr.bf16.mxu0 0
    %1028 = vmatpush1.bf16.msra.mxu0 %v1018
    %1029 = vmatprep.subr.bf16.mxu0 0
    %1030 = vmatpush1.bf16.msra.mxu0 %v1017
    %1031 = vmatprep.subr.bf16.mxu0 0
    %1032 = vmatpush1.bf16.msra.mxu0 %v1016
    %1033 = vmatprep.subr.bf16.mxu0 0
    %1034 = vmatpush1.bf16.msra.mxu0 %v1015
    %1035 = vmatprep.subr.bf16.mxu0 0
    %1036 = vmatpush1.bf16.msra.mxu0 %v1014
    %1037 = vmatprep.subr.bf16.mxu0 0
    %1038 = vmatpush1.bf16.msra.mxu0 %v1013
    %1039 = vmatprep.subr.bf16.mxu0 0
    %1040 = vmatpush1.bf16.msra.mxu0 %v1012
    %1041 = vmatprep.subr.bf16.mxu0 0
    %1042 = vmatpush1.bf16.msra.mxu0 %v1011
    %1043 = vmatprep.subr.bf16.mxu0 0
    %1044 = vmatpush2.bf16.msra.mxu0 0
    %1045 = vmatprep.subr.bf16.mxu0 0
    %1046 = vmatpush2.bf16.msra.mxu0 0
    %1047 = vmatprep.subr.bf16.mxu0 0
    %1048 = vmatpush2.bf16.msra.mxu0 0
    %1049 = vmatprep.subr.bf16.mxu0 0
    %1050 = vmatpush2.bf16.msra.mxu0 0
    %1051 = vmatprep.subr.bf16.mxu0 0
    %1052 = vmatpush2.bf16.msra.mxu0 0
    %1053 = vmatprep.subr.bf16.mxu0 0
    %1054 = vmatpush2.bf16.msra.mxu0 0
    %1055 = vmatprep.subr.bf16.mxu0 0
    %1056 = vmatpush2.bf16.msra.mxu0 0
    %1057 = vmatprep.subr.bf16.mxu0 0
    %1058 = vmatpush2.bf16.msra.mxu0 0
    %1059 = vmatprep.mubr.bf16.mxu0 0
    %1060 = vmatmul.mubr.bf16.gmra.mxu0 %v963
    %v1061 = vpop.f32.mrf.mxu0
    %v1062 = vadd.f32 0.0, %v1061
    %v1063 = vpop.f32.mrf.mxu0
    %v1064 = vpop.f32.mrf.mxu0
    %v1065 = vadd.f32 0.0, %v1064
    %v1066 = vpop.f32.mrf.mxu0
    %1067 = vmatprep.mubr.bf16.mxu0 0
    %1068 = vmatmul.mubr.bf16.gmra.mxu0 %v964
    %v1069 = vpop.f32.mrf.mxu0
    %v1070 = vadd.f32 0.0, %v1069
    %v1071 = vpop.f32.mrf.mxu0
    %v1072 = vpop.f32.mrf.mxu0
    %v1073 = vadd.f32 0.0, %v1072
    %v1074 = vpop.f32.mrf.mxu0
    %1075 = vmatprep.mubr.bf16.mxu0 0
    %1076 = vmatmul.mubr.bf16.gmra.mxu0 %v965
    %v1077 = vpop.f32.mrf.mxu0
    %v1078 = vadd.f32 0.0, %v1077
    %v1079 = vpop.f32.mrf.mxu0
    %v1080 = vpop.f32.mrf.mxu0
    %v1081 = vadd.f32 0.0, %v1080
    %v1082 = vpop.f32.mrf.mxu0
    %1083 = vmatprep.mubr.bf16.mxu0 0
    %1084 = vmatmul.mubr.bf16.gmra.mxu0 %v966
    %v1085 = vpop.f32.mrf.mxu0
    %v1086 = vadd.f32 0.0, %v1085
    %v1087 = vpop.f32.mrf.mxu0
    %v1088 = vpop.f32.mrf.mxu0
    %v1089 = vadd.f32 0.0, %v1088
    %v1090 = vpop.f32.mrf.mxu0
    %1091 = vmatprep.mubr.bf16.mxu0 0
    %1092 = vmatmul.mubr.bf16.gmra.mxu0 %v967
    %v1093 = vpop.f32.mrf.mxu0
    %v1094 = vadd.f32 0.0, %v1093
    %v1095 = vpop.f32.mrf.mxu0
    %v1096 = vpop.f32.mrf.mxu0
    %v1097 = vadd.f32 0.0, %v1096
    %v1098 = vpop.f32.mrf.mxu0
    %1099 = vmatprep.mubr.bf16.mxu0 0
    %1100 = vmatmul.mubr.bf16.gmra.mxu0 %v968
    %v1101 = vpop.f32.mrf.mxu0
    %v1102 = vadd.f32 0.0, %v1101
    %v1103 = vpop.f32.mrf.mxu0
    %v1104 = vpop.f32.mrf.mxu0
    %v1105 = vadd.f32 0.0, %v1104
    %v1106 = vpop.f32.mrf.mxu0
    %1107 = vmatprep.mubr.bf16.mxu0 0
    %1108 = vmatmul.mubr.bf16.gmra.mxu0 %v969
    %v1109 = vpop.f32.mrf.mxu0
    %v1110 = vadd.f32 0.0, %v1109
    %v1111 = vpop.f32.mrf.mxu0
    %v1112 = vpop.f32.mrf.mxu0
    %v1113 = vadd.f32 0.0, %v1112
    %v1114 = vpop.f32.mrf.mxu0
    %1115 = vmatprep.mubr.bf16.mxu0 0
    %1116 = vmatmul.mubr.bf16.gmra.mxu0 %v970
    %v1117 = vpop.f32.mrf.mxu0
    %v1118 = vadd.f32 0.0, %v1117
    %v1119 = vpop.f32.mrf.mxu0
    %v1120 = vpop.f32.mrf.mxu0
    %v1121 = vadd.f32 0.0, %v1120
    %v1122 = vpop.f32.mrf.mxu0
    %1123 = vdwg.mxu0
    %v1124 = vadd.f32 %v801, %v1062
    %v1125 = vadd.f32 %v804, %v1065
    %v1126 = vadd.f32 %v809, %v1070
    %v1127 = vadd.f32 %v812, %v1073
    %v1128 = vadd.f32 %v817, %v1078
    %v1129 = vadd.f32 %v820, %v1081
    %v1130 = vadd.f32 %v825, %v1086
    %v1131 = vadd.f32 %v828, %v1089
    %v1132 = vadd.f32 %v833, %v1094
    %v1133 = vadd.f32 %v836, %v1097
    %v1134 = vadd.f32 %v841, %v1102
    %v1135 = vadd.f32 %v844, %v1105
    %v1136 = vadd.f32 %v849, %v1110
    %v1137 = vadd.f32 %v852, %v1113
    %v1138 = vadd.f32 %v857, %v1118
    %v1139 = vadd.f32 %v860, %v1121
    %s1140 = scalar_lea.vmem %s1, 192
    %v1141 = vld [vmem:[%s1140] sm:$0xf]
    %v1142 = vld [vmem:[%s1140 + $0x4] sm:$0xf]
    %v1143 = vld [vmem:[%s1140 + $0x8] sm:$0xf]
    %v1144 = vld [vmem:[%s1140 + $0xc] sm:$0xf]
    %v1145 = vld [vmem:[%s1140 + $0x10] sm:$0xf]
    %v1146 = vld [vmem:[%s1140 + $0x14] sm:$0xf]
    %v1147 = vld [vmem:[%s1140 + $0x18] sm:$0xf]
    %v1148 = vld [vmem:[%s1140 + $0x1c] sm:$0xf]
    %v1149 = vld [vmem:[%s1140 + $0x20] sm:$0xf]
    %v1150 = vld [vmem:[%s1140 + $0x24] sm:$0xf]
    %v1151 = vld [vmem:[%s1140 + $0x28] sm:$0xf]
    %v1152 = vld [vmem:[%s1140 + $0x2c] sm:$0xf]
    %v1153 = vld [vmem:[%s1140 + $0x30] sm:$0xf]
    %v1154 = vld [vmem:[%s1140 + $0x34] sm:$0xf]
    %v1155 = vld [vmem:[%s1140 + $0x38] sm:$0xf]
    %v1156 = vld [vmem:[%s1140 + $0x3c] sm:$0xf]
    %v1159 = vunpack.c.l.b16 %v173
    %v1160 = vunpack.c.l.b16 %v183
    %v1161 = vpack.c.b16 %v221, %v219
    %v1162 = vpack.c.b16 %v225, %v223
    %v1163 = vpack.c.b16 %v229, %v227
    %v1164 = vpack.c.b16 %v1159, %v231
    %v1165 = vpack.c.b16 %v237, %v235
    %v1166 = vpack.c.b16 %v241, %v239
    %v1167 = vpack.c.b16 %v245, %v243
    %v1168 = vpack.c.b16 %v1160, %v247
    %v1193 = vunpack.c.l.b16 %v1141
    %v1194 = vunpack.c.l.b16 %v1142
    %v1195 = vunpack.c.l.b16 %v1143
    %v1196 = vunpack.c.l.b16 %v1144
    %v1197 = vunpack.c.l.b16 %v1145
    %v1198 = vunpack.c.l.b16 %v1146
    %v1199 = vunpack.c.l.b16 %v1147
    %v1200 = vunpack.c.l.b16 %v1148
    %v1201 = vunpack.c.l.b16 %v1149
    %v1202 = vunpack.c.l.b16 %v1150
    %v1203 = vunpack.c.l.b16 %v1151
    %v1204 = vunpack.c.l.b16 %v1152
    %v1205 = vunpack.c.l.b16 %v1153
    %v1206 = vunpack.c.l.b16 %v1154
    %v1207 = vunpack.c.l.b16 %v1155
    %v1208 = vunpack.c.l.b16 %v1156
    %v1209 = vpack.c.b16 %v1194, %v1193
    %v1210 = vpack.c.b16 %v1196, %v1195
    %v1211 = vpack.c.b16 %v1198, %v1197
    %v1212 = vpack.c.b16 %v1200, %v1199
    %v1213 = vpack.c.b16 %v1202, %v1201
    %v1214 = vpack.c.b16 %v1204, %v1203
    %v1215 = vpack.c.b16 %v1206, %v1205
    %v1216 = vpack.c.b16 %v1208, %v1207
    %1225 = vmatprep.subr.bf16.mxu0 0
    %1226 = vmatpush1.bf16.msra.mxu0 %v1216
    %1227 = vmatprep.subr.bf16.mxu0 0
    %1228 = vmatpush1.bf16.msra.mxu0 %v1215
    %1229 = vmatprep.subr.bf16.mxu0 0
    %1230 = vmatpush1.bf16.msra.mxu0 %v1214
    %1231 = vmatprep.subr.bf16.mxu0 0
    %1232 = vmatpush1.bf16.msra.mxu0 %v1213
    %1233 = vmatprep.subr.bf16.mxu0 0
    %1234 = vmatpush1.bf16.msra.mxu0 %v1212
    %1235 = vmatprep.subr.bf16.mxu0 0
    %1236 = vmatpush1.bf16.msra.mxu0 %v1211
    %1237 = vmatprep.subr.bf16.mxu0 0
    %1238 = vmatpush1.bf16.msra.mxu0 %v1210
    %1239 = vmatprep.subr.bf16.mxu0 0
    %1240 = vmatpush1.bf16.msra.mxu0 %v1209
    %1241 = vmatprep.subr.bf16.mxu0 0
    %1242 = vmatpush2.bf16.msra.mxu0 0
    %1243 = vmatprep.subr.bf16.mxu0 0
    %1244 = vmatpush2.bf16.msra.mxu0 0
    %1245 = vmatprep.subr.bf16.mxu0 0
    %1246 = vmatpush2.bf16.msra.mxu0 0
    %1247 = vmatprep.subr.bf16.mxu0 0
    %1248 = vmatpush2.bf16.msra.mxu0 0
    %1249 = vmatprep.subr.bf16.mxu0 0
    %1250 = vmatpush2.bf16.msra.mxu0 0
    %1251 = vmatprep.subr.bf16.mxu0 0
    %1252 = vmatpush2.bf16.msra.mxu0 0
    %1253 = vmatprep.subr.bf16.mxu0 0
    %1254 = vmatpush2.bf16.msra.mxu0 0
    %1255 = vmatprep.subr.bf16.mxu0 0
    %1256 = vmatpush2.bf16.msra.mxu0 0
    %1257 = vmatprep.mubr.bf16.mxu0 0
    %1258 = vmatmul.mubr.bf16.gmra.mxu0 %v1161
    %v1259 = vpop.f32.mrf.mxu0
    %v1260 = vadd.f32 0.0, %v1259
    %v1261 = vpop.f32.mrf.mxu0
    %v1262 = vpop.f32.mrf.mxu0
    %v1263 = vadd.f32 0.0, %v1262
    %v1264 = vpop.f32.mrf.mxu0
    %1265 = vmatprep.mubr.bf16.mxu0 0
    %1266 = vmatmul.mubr.bf16.gmra.mxu0 %v1162
    %v1267 = vpop.f32.mrf.mxu0
    %v1268 = vadd.f32 0.0, %v1267
    %v1269 = vpop.f32.mrf.mxu0
    %v1270 = vpop.f32.mrf.mxu0
    %v1271 = vadd.f32 0.0, %v1270
    %v1272 = vpop.f32.mrf.mxu0
    %1273 = vmatprep.mubr.bf16.mxu0 0
    %1274 = vmatmul.mubr.bf16.gmra.mxu0 %v1163
    %v1275 = vpop.f32.mrf.mxu0
    %v1276 = vadd.f32 0.0, %v1275
    %v1277 = vpop.f32.mrf.mxu0
    %v1278 = vpop.f32.mrf.mxu0
    %v1279 = vadd.f32 0.0, %v1278
    %v1280 = vpop.f32.mrf.mxu0
    %1281 = vmatprep.mubr.bf16.mxu0 0
    %1282 = vmatmul.mubr.bf16.gmra.mxu0 %v1164
    %v1283 = vpop.f32.mrf.mxu0
    %v1284 = vadd.f32 0.0, %v1283
    %v1285 = vpop.f32.mrf.mxu0
    %v1286 = vpop.f32.mrf.mxu0
    %v1287 = vadd.f32 0.0, %v1286
    %v1288 = vpop.f32.mrf.mxu0
    %1289 = vmatprep.mubr.bf16.mxu0 0
    %1290 = vmatmul.mubr.bf16.gmra.mxu0 %v1165
    %v1291 = vpop.f32.mrf.mxu0
    %v1292 = vadd.f32 0.0, %v1291
    %v1293 = vpop.f32.mrf.mxu0
    %v1294 = vpop.f32.mrf.mxu0
    %v1295 = vadd.f32 0.0, %v1294
    %v1296 = vpop.f32.mrf.mxu0
    %1297 = vmatprep.mubr.bf16.mxu0 0
    %1298 = vmatmul.mubr.bf16.gmra.mxu0 %v1166
    %v1299 = vpop.f32.mrf.mxu0
    %v1300 = vadd.f32 0.0, %v1299
    %v1301 = vpop.f32.mrf.mxu0
    %v1302 = vpop.f32.mrf.mxu0
    %v1303 = vadd.f32 0.0, %v1302
    %v1304 = vpop.f32.mrf.mxu0
    %1305 = vmatprep.mubr.bf16.mxu0 0
    %1306 = vmatmul.mubr.bf16.gmra.mxu0 %v1167
    %v1307 = vpop.f32.mrf.mxu0
    %v1308 = vadd.f32 0.0, %v1307
    %v1309 = vpop.f32.mrf.mxu0
    %v1310 = vpop.f32.mrf.mxu0
    %v1311 = vadd.f32 0.0, %v1310
    %v1312 = vpop.f32.mrf.mxu0
    %1313 = vmatprep.mubr.bf16.mxu0 0
    %1314 = vmatmul.mubr.bf16.gmra.mxu0 %v1168
    %v1315 = vpop.f32.mrf.mxu0
    %v1316 = vadd.f32 0.0, %v1315
    %v1317 = vpop.f32.mrf.mxu0
    %v1318 = vpop.f32.mrf.mxu0
    %v1319 = vadd.f32 0.0, %v1318
    %v1320 = vpop.f32.mrf.mxu0
    %1321 = vdwg.mxu0
    %v1322 = vadd.f32 %v1124, %v1260
    %v1323 = vadd.f32 %v1125, %v1263
    %v1324 = vadd.f32 %v1126, %v1268
    %v1325 = vadd.f32 %v1127, %v1271
    %v1326 = vadd.f32 %v1128, %v1276
    %v1327 = vadd.f32 %v1129, %v1279
    %v1328 = vadd.f32 %v1130, %v1284
    %v1329 = vadd.f32 %v1131, %v1287
    %v1330 = vadd.f32 %v1132, %v1292
    %v1331 = vadd.f32 %v1133, %v1295
    %v1332 = vadd.f32 %v1134, %v1300
    %v1333 = vadd.f32 %v1135, %v1303
    %v1334 = vadd.f32 %v1136, %v1308
    %v1335 = vadd.f32 %v1137, %v1311
    %v1336 = vadd.f32 %v1138, %v1316
    %v1337 = vadd.f32 %v1139, %v1319
    %v1338 = vunpack.c.h.b16 %v173
    %v1339 = vunpack.c.h.b16 %v183
    %v1340 = vpack.c.b16 %v1159, %v1159
    %v1341 = vpack.c.b16 %v1338, %v1338
    %v1342 = vpack.c.b16 %v1160, %v1160
    %v1343 = vpack.c.b16 %v1339, %v1339
    %v1345 = vshrl.u32 %v1340, 16
    %v1347 = vrot.slane %v1345, 4
    %v1348 = vshll.u32 %v1340, 16
    %v1350 = vrot.slane %v1348, 5
    %v1351 = vor.u32 %v1347, %v1350
    %v1352 = vrot.slane %v1351, 4
    %v1354 = vshll.u32 %v1341, 16
    %v1356 = vrot.slane %v1354, 5
    %v1357 = vsel %vm283, %v1352, %v1356
    %v1359 = vshrl.u32 %v1342, 16
    %v1361 = vrot.slane %v1359, 4
    %v1362 = vshll.u32 %v1342, 16
    %v1364 = vrot.slane %v1362, 5
    %v1365 = vor.u32 %v1361, %v1364
    %v1366 = vrot.slane %v1365, 4
    %v1368 = vshll.u32 %v1343, 16
    %v1370 = vrot.slane %v1368, 5
    %v1371 = vsel %vm283, %v1366, %v1370
    %s1372 = scalar_lea.vmem %s1, 256
    %v1373 = vld [vmem:[%s1372] sm:$0xf]
    %v1374 = vld [vmem:[%s1372 + $0x4] sm:$0xf]
    %v1375 = vld [vmem:[%s1372 + $0x8] sm:$0xf]
    %v1376 = vld [vmem:[%s1372 + $0xc] sm:$0xf]
    %v1377 = vld [vmem:[%s1372 + $0x10] sm:$0xf]
    %v1378 = vld [vmem:[%s1372 + $0x14] sm:$0xf]
    %v1379 = vld [vmem:[%s1372 + $0x18] sm:$0xf]
    %v1380 = vld [vmem:[%s1372 + $0x1c] sm:$0xf]
    %v1381 = vld [vmem:[%s1372 + $0x20] sm:$0xf]
    %v1382 = vld [vmem:[%s1372 + $0x24] sm:$0xf]
    %v1383 = vld [vmem:[%s1372 + $0x28] sm:$0xf]
    %v1384 = vld [vmem:[%s1372 + $0x2c] sm:$0xf]
    %v1385 = vld [vmem:[%s1372 + $0x30] sm:$0xf]
    %v1386 = vld [vmem:[%s1372 + $0x34] sm:$0xf]
    %v1387 = vld [vmem:[%s1372 + $0x38] sm:$0xf]
    %v1388 = vld [vmem:[%s1372 + $0x3c] sm:$0xf]
    %v1389 = vunpack.c.l.b16 %v1357
    %v1390 = vunpack.c.l.b16 %v1371
    %v1391 = vpack.c.b16 %v527, %v526
    %v1392 = vpack.c.b16 %v529, %v528
    %v1393 = vpack.c.b16 %v531, %v530
    %v1394 = vpack.c.b16 %v1389, %v532
    %v1395 = vpack.c.b16 %v535, %v534
    %v1396 = vpack.c.b16 %v537, %v536
    %v1397 = vpack.c.b16 %v539, %v538
    %v1398 = vpack.c.b16 %v1390, %v540
    %v1423 = vunpack.c.l.b16 %v1373
    %v1424 = vunpack.c.l.b16 %v1374
    %v1425 = vunpack.c.l.b16 %v1375
    %v1426 = vunpack.c.l.b16 %v1376
    %v1427 = vunpack.c.l.b16 %v1377
    %v1428 = vunpack.c.l.b16 %v1378
    %v1429 = vunpack.c.l.b16 %v1379
    %v1430 = vunpack.c.l.b16 %v1380
    %v1431 = vunpack.c.l.b16 %v1381
    %v1432 = vunpack.c.l.b16 %v1382
    %v1433 = vunpack.c.l.b16 %v1383
    %v1434 = vunpack.c.l.b16 %v1384
    %v1435 = vunpack.c.l.b16 %v1385
    %v1436 = vunpack.c.l.b16 %v1386
    %v1437 = vunpack.c.l.b16 %v1387
    %v1438 = vunpack.c.l.b16 %v1388
    %v1439 = vpack.c.b16 %v1424, %v1423
    %v1440 = vpack.c.b16 %v1426, %v1425
    %v1441 = vpack.c.b16 %v1428, %v1427
    %v1442 = vpack.c.b16 %v1430, %v1429
    %v1443 = vpack.c.b16 %v1432, %v1431
    %v1444 = vpack.c.b16 %v1434, %v1433
    %v1445 = vpack.c.b16 %v1436, %v1435
    %v1446 = vpack.c.b16 %v1438, %v1437
    %1455 = vmatprep.subr.bf16.mxu0 0
    %1456 = vmatpush1.bf16.msra.mxu0 %v1446
    %1457 = vmatprep.subr.bf16.mxu0 0
    %1458 = vmatpush1.bf16.msra.mxu0 %v1445
    %1459 = vmatprep.subr.bf16.mxu0 0
    %1460 = vmatpush1.bf16.msra.mxu0 %v1444
    %1461 = vmatprep.subr.bf16.mxu0 0
    %1462 = vmatpush1.bf16.msra.mxu0 %v1443
    %1463 = vmatprep.subr.bf16.mxu0 0
    %1464 = vmatpush1.bf16.msra.mxu0 %v1442
    %1465 = vmatprep.subr.bf16.mxu0 0
    %1466 = vmatpush1.bf16.msra.mxu0 %v1441
    %1467 = vmatprep.subr.bf16.mxu0 0
    %1468 = vmatpush1.bf16.msra.mxu0 %v1440
    %1469 = vmatprep.subr.bf16.mxu0 0
    %1470 = vmatpush1.bf16.msra.mxu0 %v1439
    %1471 = vmatprep.subr.bf16.mxu0 0
    %1472 = vmatpush2.bf16.msra.mxu0 0
    %1473 = vmatprep.subr.bf16.mxu0 0
    %1474 = vmatpush2.bf16.msra.mxu0 0
    %1475 = vmatprep.subr.bf16.mxu0 0
    %1476 = vmatpush2.bf16.msra.mxu0 0
    %1477 = vmatprep.subr.bf16.mxu0 0
    %1478 = vmatpush2.bf16.msra.mxu0 0
    %1479 = vmatprep.subr.bf16.mxu0 0
    %1480 = vmatpush2.bf16.msra.mxu0 0
    %1481 = vmatprep.subr.bf16.mxu0 0
    %1482 = vmatpush2.bf16.msra.mxu0 0
    %1483 = vmatprep.subr.bf16.mxu0 0
    %1484 = vmatpush2.bf16.msra.mxu0 0
    %1485 = vmatprep.subr.bf16.mxu0 0
    %1486 = vmatpush2.bf16.msra.mxu0 0
    %1487 = vmatprep.mubr.bf16.mxu0 0
    %1488 = vmatmul.mubr.bf16.gmra.mxu0 %v1391
    %v1489 = vpop.f32.mrf.mxu0
    %v1490 = vadd.f32 0.0, %v1489
    %v1491 = vpop.f32.mrf.mxu0
    %v1492 = vpop.f32.mrf.mxu0
    %v1493 = vadd.f32 0.0, %v1492
    %v1494 = vpop.f32.mrf.mxu0
    %1495 = vmatprep.mubr.bf16.mxu0 0
    %1496 = vmatmul.mubr.bf16.gmra.mxu0 %v1392
    %v1497 = vpop.f32.mrf.mxu0
    %v1498 = vadd.f32 0.0, %v1497
    %v1499 = vpop.f32.mrf.mxu0
    %v1500 = vpop.f32.mrf.mxu0
    %v1501 = vadd.f32 0.0, %v1500
    %v1502 = vpop.f32.mrf.mxu0
    %1503 = vmatprep.mubr.bf16.mxu0 0
    %1504 = vmatmul.mubr.bf16.gmra.mxu0 %v1393
    %v1505 = vpop.f32.mrf.mxu0
    %v1506 = vadd.f32 0.0, %v1505
    %v1507 = vpop.f32.mrf.mxu0
    %v1508 = vpop.f32.mrf.mxu0
    %v1509 = vadd.f32 0.0, %v1508
    %v1510 = vpop.f32.mrf.mxu0
    %1511 = vmatprep.mubr.bf16.mxu0 0
    %1512 = vmatmul.mubr.bf16.gmra.mxu0 %v1394
    %v1513 = vpop.f32.mrf.mxu0
    %v1514 = vadd.f32 0.0, %v1513
    %v1515 = vpop.f32.mrf.mxu0
    %v1516 = vpop.f32.mrf.mxu0
    %v1517 = vadd.f32 0.0, %v1516
    %v1518 = vpop.f32.mrf.mxu0
    %1519 = vmatprep.mubr.bf16.mxu0 0
    %1520 = vmatmul.mubr.bf16.gmra.mxu0 %v1395
    %v1521 = vpop.f32.mrf.mxu0
    %v1522 = vadd.f32 0.0, %v1521
    %v1523 = vpop.f32.mrf.mxu0
    %v1524 = vpop.f32.mrf.mxu0
    %v1525 = vadd.f32 0.0, %v1524
    %v1526 = vpop.f32.mrf.mxu0
    %1527 = vmatprep.mubr.bf16.mxu0 0
    %1528 = vmatmul.mubr.bf16.gmra.mxu0 %v1396
    %v1529 = vpop.f32.mrf.mxu0
    %v1530 = vadd.f32 0.0, %v1529
    %v1531 = vpop.f32.mrf.mxu0
    %v1532 = vpop.f32.mrf.mxu0
    %v1533 = vadd.f32 0.0, %v1532
    %v1534 = vpop.f32.mrf.mxu0
    %1535 = vmatprep.mubr.bf16.mxu0 0
    %1536 = vmatmul.mubr.bf16.gmra.mxu0 %v1397
    %v1537 = vpop.f32.mrf.mxu0
    %v1538 = vadd.f32 0.0, %v1537
    %v1539 = vpop.f32.mrf.mxu0
    %v1540 = vpop.f32.mrf.mxu0
    %v1541 = vadd.f32 0.0, %v1540
    %v1542 = vpop.f32.mrf.mxu0
    %1543 = vmatprep.mubr.bf16.mxu0 0
    %1544 = vmatmul.mubr.bf16.gmra.mxu0 %v1398
    %v1545 = vpop.f32.mrf.mxu0
    %v1546 = vadd.f32 0.0, %v1545
    %v1547 = vpop.f32.mrf.mxu0
    %v1548 = vpop.f32.mrf.mxu0
    %v1549 = vadd.f32 0.0, %v1548
    %v1550 = vpop.f32.mrf.mxu0
    %1551 = vdwg.mxu0
    %v1552 = vadd.f32 %v1322, %v1490
    %v1553 = vadd.f32 %v1323, %v1493
    %v1554 = vadd.f32 %v1324, %v1498
    %v1555 = vadd.f32 %v1325, %v1501
    %v1556 = vadd.f32 %v1326, %v1506
    %v1557 = vadd.f32 %v1327, %v1509
    %v1558 = vadd.f32 %v1328, %v1514
    %v1559 = vadd.f32 %v1329, %v1517
    %v1560 = vadd.f32 %v1330, %v1522
    %v1561 = vadd.f32 %v1331, %v1525
    %v1562 = vadd.f32 %v1332, %v1530
    %v1563 = vadd.f32 %v1333, %v1533
    %v1564 = vadd.f32 %v1334, %v1538
    %v1565 = vadd.f32 %v1335, %v1541
    %v1566 = vadd.f32 %v1336, %v1546
    %v1567 = vadd.f32 %v1337, %v1549
    %v1568 = vrot.slane %v1340, 5
    %v1569 = vrot.slane %v1568, 4
    %v1570 = vrot.slane %v1341, 5
    %v1571 = vsel %vm865, %v1569, %v1570
    %v1572 = vrot.slane %v1342, 5
    %v1573 = vrot.slane %v1572, 4
    %v1574 = vrot.slane %v1343, 5
    %v1575 = vsel %vm865, %v1573, %v1574
    %s1576 = scalar_lea.vmem %s1, 320
    %v1577 = vld [vmem:[%s1576] sm:$0xf]
    %v1578 = vld [vmem:[%s1576 + $0x4] sm:$0xf]
    %v1579 = vld [vmem:[%s1576 + $0x8] sm:$0xf]
    %v1580 = vld [vmem:[%s1576 + $0xc] sm:$0xf]
    %v1581 = vld [vmem:[%s1576 + $0x10] sm:$0xf]
    %v1582 = vld [vmem:[%s1576 + $0x14] sm:$0xf]
    %v1583 = vld [vmem:[%s1576 + $0x18] sm:$0xf]
    %v1584 = vld [vmem:[%s1576 + $0x1c] sm:$0xf]
    %v1585 = vld [vmem:[%s1576 + $0x20] sm:$0xf]
    %v1586 = vld [vmem:[%s1576 + $0x24] sm:$0xf]
    %v1587 = vld [vmem:[%s1576 + $0x28] sm:$0xf]
    %v1588 = vld [vmem:[%s1576 + $0x2c] sm:$0xf]
    %v1589 = vld [vmem:[%s1576 + $0x30] sm:$0xf]
    %v1590 = vld [vmem:[%s1576 + $0x34] sm:$0xf]
    %v1591 = vld [vmem:[%s1576 + $0x38] sm:$0xf]
    %v1592 = vld [vmem:[%s1576 + $0x3c] sm:$0xf]
    %v1593 = vunpack.c.l.b16 %v1571
    %v1594 = vunpack.c.l.b16 %v1575
    %v1595 = vpack.c.b16 %v949, %v948
    %v1596 = vpack.c.b16 %v951, %v950
    %v1597 = vpack.c.b16 %v953, %v952
    %v1598 = vpack.c.b16 %v1593, %v954
    %v1599 = vpack.c.b16 %v957, %v956
    %v1600 = vpack.c.b16 %v959, %v958
    %v1601 = vpack.c.b16 %v961, %v960
    %v1602 = vpack.c.b16 %v1594, %v962
    %v1627 = vunpack.c.l.b16 %v1577
    %v1628 = vunpack.c.l.b16 %v1578
    %v1629 = vunpack.c.l.b16 %v1579
    %v1630 = vunpack.c.l.b16 %v1580
    %v1631 = vunpack.c.l.b16 %v1581
    %v1632 = vunpack.c.l.b16 %v1582
    %v1633 = vunpack.c.l.b16 %v1583
    %v1634 = vunpack.c.l.b16 %v1584
    %v1635 = vunpack.c.l.b16 %v1585
    %v1636 = vunpack.c.l.b16 %v1586
    %v1637 = vunpack.c.l.b16 %v1587
    %v1638 = vunpack.c.l.b16 %v1588
    %v1639 = vunpack.c.l.b16 %v1589
    %v1640 = vunpack.c.l.b16 %v1590
    %v1641 = vunpack.c.l.b16 %v1591
    %v1642 = vunpack.c.l.b16 %v1592
    %v1643 = vpack.c.b16 %v1628, %v1627
    %v1644 = vpack.c.b16 %v1630, %v1629
    %v1645 = vpack.c.b16 %v1632, %v1631
    %v1646 = vpack.c.b16 %v1634, %v1633
    %v1647 = vpack.c.b16 %v1636, %v1635
    %v1648 = vpack.c.b16 %v1638, %v1637
    %v1649 = vpack.c.b16 %v1640, %v1639
    %v1650 = vpack.c.b16 %v1642, %v1641
    %1659 = vmatprep.subr.bf16.mxu0 0
    %1660 = vmatpush1.bf16.msra.mxu0 %v1650
    %1661 = vmatprep.subr.bf16.mxu0 0
    %1662 = vmatpush1.bf16.msra.mxu0 %v1649
    %1663 = vmatprep.subr.bf16.mxu0 0
    %1664 = vmatpush1.bf16.msra.mxu0 %v1648
    %1665 = vmatprep.subr.bf16.mxu0 0
    %1666 = vmatpush1.bf16.msra.mxu0 %v1647
    %1667 = vmatprep.subr.bf16.mxu0 0
    %1668 = vmatpush1.bf16.msra.mxu0 %v1646
    %1669 = vmatprep.subr.bf16.mxu0 0
    %1670 = vmatpush1.bf16.msra.mxu0 %v1645
    %1671 = vmatprep.subr.bf16.mxu0 0
    %1672 = vmatpush1.bf16.msra.mxu0 %v1644
    %1673 = vmatprep.subr.bf16.mxu0 0
    %1674 = vmatpush1.bf16.msra.mxu0 %v1643
    %1675 = vmatprep.subr.bf16.mxu0 0
    %1676 = vmatpush2.bf16.msra.mxu0 0
    %1677 = vmatprep.subr.bf16.mxu0 0
    %1678 = vmatpush2.bf16.msra.mxu0 0
    %1679 = vmatprep.subr.bf16.mxu0 0
    %1680 = vmatpush2.bf16.msra.mxu0 0
    %1681 = vmatprep.subr.bf16.mxu0 0
    %1682 = vmatpush2.bf16.msra.mxu0 0
    %1683 = vmatprep.subr.bf16.mxu0 0
    %1684 = vmatpush2.bf16.msra.mxu0 0
    %1685 = vmatprep.subr.bf16.mxu0 0
    %1686 = vmatpush2.bf16.msra.mxu0 0
    %1687 = vmatprep.subr.bf16.mxu0 0
    %1688 = vmatpush2.bf16.msra.mxu0 0
    %1689 = vmatprep.subr.bf16.mxu0 0
    %1690 = vmatpush2.bf16.msra.mxu0 0
    %1691 = vmatprep.mubr.bf16.mxu0 0
    %1692 = vmatmul.mubr.bf16.gmra.mxu0 %v1595
    %v1693 = vpop.f32.mrf.mxu0
    %v1694 = vadd.f32 0.0, %v1693
    %v1695 = vpop.f32.mrf.mxu0
    %v1696 = vpop.f32.mrf.mxu0
    %v1697 = vadd.f32 0.0, %v1696
    %v1698 = vpop.f32.mrf.mxu0
    %1699 = vmatprep.mubr.bf16.mxu0 0
    %1700 = vmatmul.mubr.bf16.gmra.mxu0 %v1596
    %v1701 = vpop.f32.mrf.mxu0
    %v1702 = vadd.f32 0.0, %v1701
    %v1703 = vpop.f32.mrf.mxu0
    %v1704 = vpop.f32.mrf.mxu0
    %v1705 = vadd.f32 0.0, %v1704
    %v1706 = vpop.f32.mrf.mxu0
    %1707 = vmatprep.mubr.bf16.mxu0 0
    %1708 = vmatmul.mubr.bf16.gmra.mxu0 %v1597
    %v1709 = vpop.f32.mrf.mxu0
    %v1710 = vadd.f32 0.0, %v1709
    %v1711 = vpop.f32.mrf.mxu0
    %v1712 = vpop.f32.mrf.mxu0
    %v1713 = vadd.f32 0.0, %v1712
    %v1714 = vpop.f32.mrf.mxu0
    %1715 = vmatprep.mubr.bf16.mxu0 0
    %1716 = vmatmul.mubr.bf16.gmra.mxu0 %v1598
    %v1717 = vpop.f32.mrf.mxu0
    %v1718 = vadd.f32 0.0, %v1717
    %v1719 = vpop.f32.mrf.mxu0
    %v1720 = vpop.f32.mrf.mxu0
    %v1721 = vadd.f32 0.0, %v1720
    %v1722 = vpop.f32.mrf.mxu0
    %1723 = vmatprep.mubr.bf16.mxu0 0
    %1724 = vmatmul.mubr.bf16.gmra.mxu0 %v1599
    %v1725 = vpop.f32.mrf.mxu0
    %v1726 = vadd.f32 0.0, %v1725
    %v1727 = vpop.f32.mrf.mxu0
    %v1728 = vpop.f32.mrf.mxu0
    %v1729 = vadd.f32 0.0, %v1728
    %v1730 = vpop.f32.mrf.mxu0
    %1731 = vmatprep.mubr.bf16.mxu0 0
    %1732 = vmatmul.mubr.bf16.gmra.mxu0 %v1600
    %v1733 = vpop.f32.mrf.mxu0
    %v1734 = vadd.f32 0.0, %v1733
    %v1735 = vpop.f32.mrf.mxu0
    %v1736 = vpop.f32.mrf.mxu0
    %v1737 = vadd.f32 0.0, %v1736
    %v1738 = vpop.f32.mrf.mxu0
    %1739 = vmatprep.mubr.bf16.mxu0 0
    %1740 = vmatmul.mubr.bf16.gmra.mxu0 %v1601
    %v1741 = vpop.f32.mrf.mxu0
    %v1742 = vadd.f32 0.0, %v1741
    %v1743 = vpop.f32.mrf.mxu0
    %v1744 = vpop.f32.mrf.mxu0
    %v1745 = vadd.f32 0.0, %v1744
    %v1746 = vpop.f32.mrf.mxu0
    %1747 = vmatprep.mubr.bf16.mxu0 0
    %1748 = vmatmul.mubr.bf16.gmra.mxu0 %v1602
    %v1749 = vpop.f32.mrf.mxu0
    %v1750 = vadd.f32 0.0, %v1749
    %v1751 = vpop.f32.mrf.mxu0
    %v1752 = vpop.f32.mrf.mxu0
    %v1753 = vadd.f32 0.0, %v1752
    %v1754 = vpop.f32.mrf.mxu0
    %1755 = vdwg.mxu0
    %v1756 = vadd.f32 %v1552, %v1694
    %v1757 = vadd.f32 %v1553, %v1697
    %v1758 = vadd.f32 %v1554, %v1702
    %v1759 = vadd.f32 %v1555, %v1705
    %v1760 = vadd.f32 %v1556, %v1710
    %v1761 = vadd.f32 %v1557, %v1713
    %v1762 = vadd.f32 %v1558, %v1718
    %v1763 = vadd.f32 %v1559, %v1721
    %v1764 = vadd.f32 %v1560, %v1726
    %v1765 = vadd.f32 %v1561, %v1729
    %v1766 = vadd.f32 %v1562, %v1734
    %v1767 = vadd.f32 %v1563, %v1737
    %v1768 = vadd.f32 %v1564, %v1742
    %v1769 = vadd.f32 %v1565, %v1745
    %v1770 = vadd.f32 %v1566, %v1750
    %v1771 = vadd.f32 %v1567, %v1753
    %s1772 = scalar_lea.vmem %s1, 384
    %v1773 = vld [vmem:[%s1772] sm:$0xf]
    %v1774 = vld [vmem:[%s1772 + $0x4] sm:$0xf]
    %v1775 = vld [vmem:[%s1772 + $0x8] sm:$0xf]
    %v1776 = vld [vmem:[%s1772 + $0xc] sm:$0xf]
    %v1777 = vld [vmem:[%s1772 + $0x10] sm:$0xf]
    %v1778 = vld [vmem:[%s1772 + $0x14] sm:$0xf]
    %v1779 = vld [vmem:[%s1772 + $0x18] sm:$0xf]
    %v1780 = vld [vmem:[%s1772 + $0x1c] sm:$0xf]
    %v1781 = vld [vmem:[%s1772 + $0x20] sm:$0xf]
    %v1782 = vld [vmem:[%s1772 + $0x24] sm:$0xf]
    %v1783 = vld [vmem:[%s1772 + $0x28] sm:$0xf]
    %v1784 = vld [vmem:[%s1772 + $0x2c] sm:$0xf]
    %v1785 = vld [vmem:[%s1772 + $0x30] sm:$0xf]
    %v1786 = vld [vmem:[%s1772 + $0x34] sm:$0xf]
    %v1787 = vld [vmem:[%s1772 + $0x38] sm:$0xf]
    %v1788 = vld [vmem:[%s1772 + $0x3c] sm:$0xf]
    %v1791 = vunpack.c.l.b16 %v174
    %v1792 = vunpack.c.l.b16 %v184
    %v1793 = vpack.c.b16 %v1791, %v1159
    %v1794 = vpack.c.b16 %v1792, %v1160
    %v1813 = vunpack.c.l.b16 %v1773
    %v1814 = vunpack.c.l.b16 %v1774
    %v1815 = vunpack.c.l.b16 %v1775
    %v1816 = vunpack.c.l.b16 %v1776
    %v1817 = vunpack.c.l.b16 %v1777
    %v1818 = vunpack.c.l.b16 %v1778
    %v1819 = vunpack.c.l.b16 %v1779
    %v1820 = vunpack.c.l.b16 %v1780
    %v1821 = vunpack.c.l.b16 %v1781
    %v1822 = vunpack.c.l.b16 %v1782
    %v1823 = vunpack.c.l.b16 %v1783
    %v1824 = vunpack.c.l.b16 %v1784
    %v1825 = vunpack.c.l.b16 %v1785
    %v1826 = vunpack.c.l.b16 %v1786
    %v1827 = vunpack.c.l.b16 %v1787
    %v1828 = vunpack.c.l.b16 %v1788
    %v1829 = vpack.c.b16 %v1814, %v1813
    %v1830 = vpack.c.b16 %v1816, %v1815
    %v1831 = vpack.c.b16 %v1818, %v1817
    %v1832 = vpack.c.b16 %v1820, %v1819
    %v1833 = vpack.c.b16 %v1822, %v1821
    %v1834 = vpack.c.b16 %v1824, %v1823
    %v1835 = vpack.c.b16 %v1826, %v1825
    %v1836 = vpack.c.b16 %v1828, %v1827
    %1845 = vmatprep.subr.bf16.mxu0 0
    %1846 = vmatpush1.bf16.msra.mxu0 %v1836
    %1847 = vmatprep.subr.bf16.mxu0 0
    %1848 = vmatpush1.bf16.msra.mxu0 %v1835
    %1849 = vmatprep.subr.bf16.mxu0 0
    %1850 = vmatpush1.bf16.msra.mxu0 %v1834
    %1851 = vmatprep.subr.bf16.mxu0 0
    %1852 = vmatpush1.bf16.msra.mxu0 %v1833
    %1853 = vmatprep.subr.bf16.mxu0 0
    %1854 = vmatpush1.bf16.msra.mxu0 %v1832
    %1855 = vmatprep.subr.bf16.mxu0 0
    %1856 = vmatpush1.bf16.msra.mxu0 %v1831
    %1857 = vmatprep.subr.bf16.mxu0 0
    %1858 = vmatpush1.bf16.msra.mxu0 %v1830
    %1859 = vmatprep.subr.bf16.mxu0 0
    %1860 = vmatpush1.bf16.msra.mxu0 %v1829
    %1861 = vmatprep.subr.bf16.mxu0 0
    %1862 = vmatpush2.bf16.msra.mxu0 0
    %1863 = vmatprep.subr.bf16.mxu0 0
    %1864 = vmatpush2.bf16.msra.mxu0 0
    %1865 = vmatprep.subr.bf16.mxu0 0
    %1866 = vmatpush2.bf16.msra.mxu0 0
    %1867 = vmatprep.subr.bf16.mxu0 0
    %1868 = vmatpush2.bf16.msra.mxu0 0
    %1869 = vmatprep.subr.bf16.mxu0 0
    %1870 = vmatpush2.bf16.msra.mxu0 0
    %1871 = vmatprep.subr.bf16.mxu0 0
    %1872 = vmatpush2.bf16.msra.mxu0 0
    %1873 = vmatprep.subr.bf16.mxu0 0
    %1874 = vmatpush2.bf16.msra.mxu0 0
    %1875 = vmatprep.subr.bf16.mxu0 0
    %1876 = vmatpush2.bf16.msra.mxu0 0
    %1877 = vmatprep.mubr.bf16.mxu0 0
    %1878 = vmatmul.mubr.bf16.gmra.mxu0 %v703
    %v1879 = vpop.f32.mrf.mxu0
    %v1880 = vadd.f32 0.0, %v1879
    %v1881 = vpop.f32.mrf.mxu0
    %v1882 = vpop.f32.mrf.mxu0
    %v1883 = vadd.f32 0.0, %v1882
    %v1884 = vpop.f32.mrf.mxu0
    %1885 = vmatprep.mubr.bf16.mxu0 0
    %1886 = vmatmul.mubr.bf16.gmra.mxu0 %v704
    %v1887 = vpop.f32.mrf.mxu0
    %v1888 = vadd.f32 0.0, %v1887
    %v1889 = vpop.f32.mrf.mxu0
    %v1890 = vpop.f32.mrf.mxu0
    %v1891 = vadd.f32 0.0, %v1890
    %v1892 = vpop.f32.mrf.mxu0
    %1893 = vmatprep.mubr.bf16.mxu0 0
    %1894 = vmatmul.mubr.bf16.gmra.mxu0 %v705
    %v1895 = vpop.f32.mrf.mxu0
    %v1896 = vadd.f32 0.0, %v1895
    %v1897 = vpop.f32.mrf.mxu0
    %v1898 = vpop.f32.mrf.mxu0
    %v1899 = vadd.f32 0.0, %v1898
    %v1900 = vpop.f32.mrf.mxu0
    %1901 = vmatprep.mubr.bf16.mxu0 0
    %1902 = vmatmul.mubr.bf16.gmra.mxu0 %v1793
    %v1903 = vpop.f32.mrf.mxu0
    %v1904 = vadd.f32 0.0, %v1903
    %v1905 = vpop.f32.mrf.mxu0
    %v1906 = vpop.f32.mrf.mxu0
    %v1907 = vadd.f32 0.0, %v1906
    %v1908 = vpop.f32.mrf.mxu0
    %1909 = vmatprep.mubr.bf16.mxu0 0
    %1910 = vmatmul.mubr.bf16.gmra.mxu0 %v707
    %v1911 = vpop.f32.mrf.mxu0
    %v1912 = vadd.f32 0.0, %v1911
    %v1913 = vpop.f32.mrf.mxu0
    %v1914 = vpop.f32.mrf.mxu0
    %v1915 = vadd.f32 0.0, %v1914
    %v1916 = vpop.f32.mrf.mxu0
    %1917 = vmatprep.mubr.bf16.mxu0 0
    %1918 = vmatmul.mubr.bf16.gmra.mxu0 %v708
    %v1919 = vpop.f32.mrf.mxu0
    %v1920 = vadd.f32 0.0, %v1919
    %v1921 = vpop.f32.mrf.mxu0
    %v1922 = vpop.f32.mrf.mxu0
    %v1923 = vadd.f32 0.0, %v1922
    %v1924 = vpop.f32.mrf.mxu0
    %1925 = vmatprep.mubr.bf16.mxu0 0
    %1926 = vmatmul.mubr.bf16.gmra.mxu0 %v709
    %v1927 = vpop.f32.mrf.mxu0
    %v1928 = vadd.f32 0.0, %v1927
    %v1929 = vpop.f32.mrf.mxu0
    %v1930 = vpop.f32.mrf.mxu0
    %v1931 = vadd.f32 0.0, %v1930
    %v1932 = vpop.f32.mrf.mxu0
    %1933 = vmatprep.mubr.bf16.mxu0 0
    %1934 = vmatmul.mubr.bf16.gmra.mxu0 %v1794
    %v1935 = vpop.f32.mrf.mxu0
    %v1936 = vadd.f32 0.0, %v1935
    %v1937 = vpop.f32.mrf.mxu0
    %v1938 = vpop.f32.mrf.mxu0
    %v1939 = vadd.f32 0.0, %v1938
    %v1940 = vpop.f32.mrf.mxu0
    %1941 = vdwg.mxu0
    %v1942 = vadd.f32 %v1756, %v1880
    %v1943 = vadd.f32 %v1757, %v1883
    %v1944 = vadd.f32 %v1758, %v1888
    %v1945 = vadd.f32 %v1759, %v1891
    %v1946 = vadd.f32 %v1760, %v1896
    %v1947 = vadd.f32 %v1761, %v1899
    %v1948 = vadd.f32 %v1762, %v1904
    %v1949 = vadd.f32 %v1763, %v1907
    %v1950 = vadd.f32 %v1764, %v1912
    %v1951 = vadd.f32 %v1765, %v1915
    %v1952 = vadd.f32 %v1766, %v1920
    %v1953 = vadd.f32 %v1767, %v1923
    %v1954 = vadd.f32 %v1768, %v1928
    %v1955 = vadd.f32 %v1769, %v1931
    %v1956 = vadd.f32 %v1770, %v1936
    %v1957 = vadd.f32 %v1771, %v1939
    %v1958 = vunpack.c.h.b16 %v174
    %v1959 = vunpack.c.h.b16 %v184
    %v1960 = vpack.c.b16 %v1791, %v1791
    %v1961 = vpack.c.b16 %v1958, %v1958
    %v1962 = vpack.c.b16 %v1792, %v1792
    %v1963 = vpack.c.b16 %v1959, %v1959
    %v1965 = vshrl.u32 %v1960, 16
    %v1967 = vrot.slane %v1965, 4
    %v1968 = vshll.u32 %v1960, 16
    %v1970 = vrot.slane %v1968, 5
    %v1971 = vor.u32 %v1967, %v1970
    %v1972 = vrot.slane %v1971, 4
    %v1974 = vshll.u32 %v1961, 16
    %v1976 = vrot.slane %v1974, 5
    %v1977 = vsel %vm283, %v1972, %v1976
    %v1979 = vshrl.u32 %v1962, 16
    %v1981 = vrot.slane %v1979, 4
    %v1982 = vshll.u32 %v1962, 16
    %v1984 = vrot.slane %v1982, 5
    %v1985 = vor.u32 %v1981, %v1984
    %v1986 = vrot.slane %v1985, 4
    %v1988 = vshll.u32 %v1963, 16
    %v1990 = vrot.slane %v1988, 5
    %v1991 = vsel %vm283, %v1986, %v1990
    %s1992 = scalar_lea.vmem %s1, 448
    %v1993 = vld [vmem:[%s1992] sm:$0xf]
    %v1994 = vld [vmem:[%s1992 + $0x4] sm:$0xf]
    %v1995 = vld [vmem:[%s1992 + $0x8] sm:$0xf]
    %v1996 = vld [vmem:[%s1992 + $0xc] sm:$0xf]
    %v1997 = vld [vmem:[%s1992 + $0x10] sm:$0xf]
    %v1998 = vld [vmem:[%s1992 + $0x14] sm:$0xf]
    %v1999 = vld [vmem:[%s1992 + $0x18] sm:$0xf]
    %v2000 = vld [vmem:[%s1992 + $0x1c] sm:$0xf]
    %v2001 = vld [vmem:[%s1992 + $0x20] sm:$0xf]
    %v2002 = vld [vmem:[%s1992 + $0x24] sm:$0xf]
    %v2003 = vld [vmem:[%s1992 + $0x28] sm:$0xf]
    %v2004 = vld [vmem:[%s1992 + $0x2c] sm:$0xf]
    %v2005 = vld [vmem:[%s1992 + $0x30] sm:$0xf]
    %v2006 = vld [vmem:[%s1992 + $0x34] sm:$0xf]
    %v2007 = vld [vmem:[%s1992 + $0x38] sm:$0xf]
    %v2008 = vld [vmem:[%s1992 + $0x3c] sm:$0xf]
    %v2009 = vunpack.c.l.b16 %v1977
    %v2010 = vunpack.c.l.b16 %v1991
    %v2011 = vpack.c.b16 %v2009, %v1389
    %v2012 = vpack.c.b16 %v2010, %v1390
    %v2031 = vunpack.c.l.b16 %v1993
    %v2032 = vunpack.c.l.b16 %v1994
    %v2033 = vunpack.c.l.b16 %v1995
    %v2034 = vunpack.c.l.b16 %v1996
    %v2035 = vunpack.c.l.b16 %v1997
    %v2036 = vunpack.c.l.b16 %v1998
    %v2037 = vunpack.c.l.b16 %v1999
    %v2038 = vunpack.c.l.b16 %v2000
    %v2039 = vunpack.c.l.b16 %v2001
    %v2040 = vunpack.c.l.b16 %v2002
    %v2041 = vunpack.c.l.b16 %v2003
    %v2042 = vunpack.c.l.b16 %v2004
    %v2043 = vunpack.c.l.b16 %v2005
    %v2044 = vunpack.c.l.b16 %v2006
    %v2045 = vunpack.c.l.b16 %v2007
    %v2046 = vunpack.c.l.b16 %v2008
    %v2047 = vpack.c.b16 %v2032, %v2031
    %v2048 = vpack.c.b16 %v2034, %v2033
    %v2049 = vpack.c.b16 %v2036, %v2035
    %v2050 = vpack.c.b16 %v2038, %v2037
    %v2051 = vpack.c.b16 %v2040, %v2039
    %v2052 = vpack.c.b16 %v2042, %v2041
    %v2053 = vpack.c.b16 %v2044, %v2043
    %v2054 = vpack.c.b16 %v2046, %v2045
    %2063 = vmatprep.subr.bf16.mxu0 0
    %2064 = vmatpush1.bf16.msra.mxu0 %v2054
    %2065 = vmatprep.subr.bf16.mxu0 0
    %2066 = vmatpush1.bf16.msra.mxu0 %v2053
    %2067 = vmatprep.subr.bf16.mxu0 0
    %2068 = vmatpush1.bf16.msra.mxu0 %v2052
    %2069 = vmatprep.subr.bf16.mxu0 0
    %2070 = vmatpush1.bf16.msra.mxu0 %v2051
    %2071 = vmatprep.subr.bf16.mxu0 0
    %2072 = vmatpush1.bf16.msra.mxu0 %v2050
    %2073 = vmatprep.subr.bf16.mxu0 0
    %2074 = vmatpush1.bf16.msra.mxu0 %v2049
    %2075 = vmatprep.subr.bf16.mxu0 0
    %2076 = vmatpush1.bf16.msra.mxu0 %v2048
    %2077 = vmatprep.subr.bf16.mxu0 0
    %2078 = vmatpush1.bf16.msra.mxu0 %v2047
    %2079 = vmatprep.subr.bf16.mxu0 0
    %2080 = vmatpush2.bf16.msra.mxu0 0
    %2081 = vmatprep.subr.bf16.mxu0 0
    %2082 = vmatpush2.bf16.msra.mxu0 0
    %2083 = vmatprep.subr.bf16.mxu0 0
    %2084 = vmatpush2.bf16.msra.mxu0 0
    %2085 = vmatprep.subr.bf16.mxu0 0
    %2086 = vmatpush2.bf16.msra.mxu0 0
    %2087 = vmatprep.subr.bf16.mxu0 0
    %2088 = vmatpush2.bf16.msra.mxu0 0
    %2089 = vmatprep.subr.bf16.mxu0 0
    %2090 = vmatpush2.bf16.msra.mxu0 0
    %2091 = vmatprep.subr.bf16.mxu0 0
    %2092 = vmatpush2.bf16.msra.mxu0 0
    %2093 = vmatprep.subr.bf16.mxu0 0
    %2094 = vmatpush2.bf16.msra.mxu0 0
    %2095 = vmatprep.mubr.bf16.mxu0 0
    %2096 = vmatmul.mubr.bf16.gmra.mxu0 %v542
    %v2097 = vpop.f32.mrf.mxu0
    %v2098 = vadd.f32 0.0, %v2097
    %v2099 = vpop.f32.mrf.mxu0
    %v2100 = vpop.f32.mrf.mxu0
    %v2101 = vadd.f32 0.0, %v2100
    %v2102 = vpop.f32.mrf.mxu0
    %2103 = vmatprep.mubr.bf16.mxu0 0
    %2104 = vmatmul.mubr.bf16.gmra.mxu0 %v543
    %v2105 = vpop.f32.mrf.mxu0
    %v2106 = vadd.f32 0.0, %v2105
    %v2107 = vpop.f32.mrf.mxu0
    %v2108 = vpop.f32.mrf.mxu0
    %v2109 = vadd.f32 0.0, %v2108
    %v2110 = vpop.f32.mrf.mxu0
    %2111 = vmatprep.mubr.bf16.mxu0 0
    %2112 = vmatmul.mubr.bf16.gmra.mxu0 %v544
    %v2113 = vpop.f32.mrf.mxu0
    %v2114 = vadd.f32 0.0, %v2113
    %v2115 = vpop.f32.mrf.mxu0
    %v2116 = vpop.f32.mrf.mxu0
    %v2117 = vadd.f32 0.0, %v2116
    %v2118 = vpop.f32.mrf.mxu0
    %2119 = vmatprep.mubr.bf16.mxu0 0
    %2120 = vmatmul.mubr.bf16.gmra.mxu0 %v2011
    %v2121 = vpop.f32.mrf.mxu0
    %v2122 = vadd.f32 0.0, %v2121
    %v2123 = vpop.f32.mrf.mxu0
    %v2124 = vpop.f32.mrf.mxu0
    %v2125 = vadd.f32 0.0, %v2124
    %v2126 = vpop.f32.mrf.mxu0
    %2127 = vmatprep.mubr.bf16.mxu0 0
    %2128 = vmatmul.mubr.bf16.gmra.mxu0 %v546
    %v2129 = vpop.f32.mrf.mxu0
    %v2130 = vadd.f32 0.0, %v2129
    %v2131 = vpop.f32.mrf.mxu0
    %v2132 = vpop.f32.mrf.mxu0
    %v2133 = vadd.f32 0.0, %v2132
    %v2134 = vpop.f32.mrf.mxu0
    %2135 = vmatprep.mubr.bf16.mxu0 0
    %2136 = vmatmul.mubr.bf16.gmra.mxu0 %v547
    %v2137 = vpop.f32.mrf.mxu0
    %v2138 = vadd.f32 0.0, %v2137
    %v2139 = vpop.f32.mrf.mxu0
    %v2140 = vpop.f32.mrf.mxu0
    %v2141 = vadd.f32 0.0, %v2140
    %v2142 = vpop.f32.mrf.mxu0
    %2143 = vmatprep.mubr.bf16.mxu0 0
    %2144 = vmatmul.mubr.bf16.gmra.mxu0 %v548
    %v2145 = vpop.f32.mrf.mxu0
    %v2146 = vadd.f32 0.0, %v2145
    %v2147 = vpop.f32.mrf.mxu0
    %v2148 = vpop.f32.mrf.mxu0
    %v2149 = vadd.f32 0.0, %v2148
    %v2150 = vpop.f32.mrf.mxu0
    %2151 = vmatprep.mubr.bf16.mxu0 0
    %2152 = vmatmul.mubr.bf16.gmra.mxu0 %v2012
    %v2153 = vpop.f32.mrf.mxu0
    %v2154 = vadd.f32 0.0, %v2153
    %v2155 = vpop.f32.mrf.mxu0
    %v2156 = vpop.f32.mrf.mxu0
    %v2157 = vadd.f32 0.0, %v2156
    %v2158 = vpop.f32.mrf.mxu0
    %2159 = vdwg.mxu0
    %v2160 = vadd.f32 %v1942, %v2098
    %v2161 = vadd.f32 %v1943, %v2101
    %v2162 = vadd.f32 %v1944, %v2106
    %v2163 = vadd.f32 %v1945, %v2109
    %v2164 = vadd.f32 %v1946, %v2114
    %v2165 = vadd.f32 %v1947, %v2117
    %v2166 = vadd.f32 %v1948, %v2122
    %v2167 = vadd.f32 %v1949, %v2125
    %v2168 = vadd.f32 %v1950, %v2130
    %v2169 = vadd.f32 %v1951, %v2133
    %v2170 = vadd.f32 %v1952, %v2138
    %v2171 = vadd.f32 %v1953, %v2141
    %v2172 = vadd.f32 %v1954, %v2146
    %v2173 = vadd.f32 %v1955, %v2149
    %v2174 = vadd.f32 %v1956, %v2154
    %v2175 = vadd.f32 %v1957, %v2157
    %v2176 = vrot.slane %v1960, 5
    %v2177 = vrot.slane %v2176, 4
    %v2178 = vrot.slane %v1961, 5
    %v2179 = vsel %vm865, %v2177, %v2178
    %v2180 = vrot.slane %v1962, 5
    %v2181 = vrot.slane %v2180, 4
    %v2182 = vrot.slane %v1963, 5
    %v2183 = vsel %vm865, %v2181, %v2182
    %s2184 = scalar_lea.vmem %s1, 512
    %v2185 = vld [vmem:[%s2184] sm:$0xf]
    %v2186 = vld [vmem:[%s2184 + $0x4] sm:$0xf]
    %v2187 = vld [vmem:[%s2184 + $0x8] sm:$0xf]
    %v2188 = vld [vmem:[%s2184 + $0xc] sm:$0xf]
    %v2189 = vld [vmem:[%s2184 + $0x10] sm:$0xf]
    %v2190 = vld [vmem:[%s2184 + $0x14] sm:$0xf]
    %v2191 = vld [vmem:[%s2184 + $0x18] sm:$0xf]
    %v2192 = vld [vmem:[%s2184 + $0x1c] sm:$0xf]
    %v2193 = vld [vmem:[%s2184 + $0x20] sm:$0xf]
    %v2194 = vld [vmem:[%s2184 + $0x24] sm:$0xf]
    %v2195 = vld [vmem:[%s2184 + $0x28] sm:$0xf]
    %v2196 = vld [vmem:[%s2184 + $0x2c] sm:$0xf]
    %v2197 = vld [vmem:[%s2184 + $0x30] sm:$0xf]
    %v2198 = vld [vmem:[%s2184 + $0x34] sm:$0xf]
    %v2199 = vld [vmem:[%s2184 + $0x38] sm:$0xf]
    %v2200 = vld [vmem:[%s2184 + $0x3c] sm:$0xf]
    %v2201 = vunpack.c.l.b16 %v2179
    %v2202 = vunpack.c.l.b16 %v2183
    %v2203 = vpack.c.b16 %v2201, %v1593
    %v2204 = vpack.c.b16 %v2202, %v1594
    %v2223 = vunpack.c.l.b16 %v2185
    %v2224 = vunpack.c.l.b16 %v2186
    %v2225 = vunpack.c.l.b16 %v2187
    %v2226 = vunpack.c.l.b16 %v2188
    %v2227 = vunpack.c.l.b16 %v2189
    %v2228 = vunpack.c.l.b16 %v2190
    %v2229 = vunpack.c.l.b16 %v2191
    %v2230 = vunpack.c.l.b16 %v2192
    %v2231 = vunpack.c.l.b16 %v2193
    %v2232 = vunpack.c.l.b16 %v2194
    %v2233 = vunpack.c.l.b16 %v2195
    %v2234 = vunpack.c.l.b16 %v2196
    %v2235 = vunpack.c.l.b16 %v2197
    %v2236 = vunpack.c.l.b16 %v2198
    %v2237 = vunpack.c.l.b16 %v2199
    %v2238 = vunpack.c.l.b16 %v2200
    %v2239 = vpack.c.b16 %v2224, %v2223
    %v2240 = vpack.c.b16 %v2226, %v2225
    %v2241 = vpack.c.b16 %v2228, %v2227
    %v2242 = vpack.c.b16 %v2230, %v2229
    %v2243 = vpack.c.b16 %v2232, %v2231
    %v2244 = vpack.c.b16 %v2234, %v2233
    %v2245 = vpack.c.b16 %v2236, %v2235
    %v2246 = vpack.c.b16 %v2238, %v2237
    %2255 = vmatprep.subr.bf16.mxu0 0
    %2256 = vmatpush1.bf16.msra.mxu0 %v2246
    %2257 = vmatprep.subr.bf16.mxu0 0
    %2258 = vmatpush1.bf16.msra.mxu0 %v2245
    %2259 = vmatprep.subr.bf16.mxu0 0
    %2260 = vmatpush1.bf16.msra.mxu0 %v2244
    %2261 = vmatprep.subr.bf16.mxu0 0
    %2262 = vmatpush1.bf16.msra.mxu0 %v2243
    %2263 = vmatprep.subr.bf16.mxu0 0
    %2264 = vmatpush1.bf16.msra.mxu0 %v2242
    %2265 = vmatprep.subr.bf16.mxu0 0
    %2266 = vmatpush1.bf16.msra.mxu0 %v2241
    %2267 = vmatprep.subr.bf16.mxu0 0
    %2268 = vmatpush1.bf16.msra.mxu0 %v2240
    %2269 = vmatprep.subr.bf16.mxu0 0
    %2270 = vmatpush1.bf16.msra.mxu0 %v2239
    %2271 = vmatprep.subr.bf16.mxu0 0
    %2272 = vmatpush2.bf16.msra.mxu0 0
    %2273 = vmatprep.subr.bf16.mxu0 0
    %2274 = vmatpush2.bf16.msra.mxu0 0
    %2275 = vmatprep.subr.bf16.mxu0 0
    %2276 = vmatpush2.bf16.msra.mxu0 0
    %2277 = vmatprep.subr.bf16.mxu0 0
    %2278 = vmatpush2.bf16.msra.mxu0 0
    %2279 = vmatprep.subr.bf16.mxu0 0
    %2280 = vmatpush2.bf16.msra.mxu0 0
    %2281 = vmatprep.subr.bf16.mxu0 0
    %2282 = vmatpush2.bf16.msra.mxu0 0
    %2283 = vmatprep.subr.bf16.mxu0 0
    %2284 = vmatpush2.bf16.msra.mxu0 0
    %2285 = vmatprep.subr.bf16.mxu0 0
    %2286 = vmatpush2.bf16.msra.mxu0 0
    %2287 = vmatprep.mubr.bf16.mxu0 0
    %2288 = vmatmul.mubr.bf16.gmra.mxu0 %v964
    %v2289 = vpop.f32.mrf.mxu0
    %v2290 = vadd.f32 0.0, %v2289
    %v2291 = vpop.f32.mrf.mxu0
    %v2292 = vpop.f32.mrf.mxu0
    %v2293 = vadd.f32 0.0, %v2292
    %v2294 = vpop.f32.mrf.mxu0
    %2295 = vmatprep.mubr.bf16.mxu0 0
    %2296 = vmatmul.mubr.bf16.gmra.mxu0 %v965
    %v2297 = vpop.f32.mrf.mxu0
    %v2298 = vadd.f32 0.0, %v2297
    %v2299 = vpop.f32.mrf.mxu0
    %v2300 = vpop.f32.mrf.mxu0
    %v2301 = vadd.f32 0.0, %v2300
    %v2302 = vpop.f32.mrf.mxu0
    %2303 = vmatprep.mubr.bf16.mxu0 0
    %2304 = vmatmul.mubr.bf16.gmra.mxu0 %v966
    %v2305 = vpop.f32.mrf.mxu0
    %v2306 = vadd.f32 0.0, %v2305
    %v2307 = vpop.f32.mrf.mxu0
    %v2308 = vpop.f32.mrf.mxu0
    %v2309 = vadd.f32 0.0, %v2308
    %v2310 = vpop.f32.mrf.mxu0
    %2311 = vmatprep.mubr.bf16.mxu0 0
    %2312 = vmatmul.mubr.bf16.gmra.mxu0 %v2203
    %v2313 = vpop.f32.mrf.mxu0
    %v2314 = vadd.f32 0.0, %v2313
    %v2315 = vpop.f32.mrf.mxu0
    %v2316 = vpop.f32.mrf.mxu0
    %v2317 = vadd.f32 0.0, %v2316
    %v2318 = vpop.f32.mrf.mxu0
    %2319 = vmatprep.mubr.bf16.mxu0 0
    %2320 = vmatmul.mubr.bf16.gmra.mxu0 %v968
    %v2321 = vpop.f32.mrf.mxu0
    %v2322 = vadd.f32 0.0, %v2321
    %v2323 = vpop.f32.mrf.mxu0
    %v2324 = vpop.f32.mrf.mxu0
    %v2325 = vadd.f32 0.0, %v2324
    %v2326 = vpop.f32.mrf.mxu0
    %2327 = vmatprep.mubr.bf16.mxu0 0
    %2328 = vmatmul.mubr.bf16.gmra.mxu0 %v969
    %v2329 = vpop.f32.mrf.mxu0
    %v2330 = vadd.f32 0.0, %v2329
    %v2331 = vpop.f32.mrf.mxu0
    %v2332 = vpop.f32.mrf.mxu0
    %v2333 = vadd.f32 0.0, %v2332
    %v2334 = vpop.f32.mrf.mxu0
    %2335 = vmatprep.mubr.bf16.mxu0 0
    %2336 = vmatmul.mubr.bf16.gmra.mxu0 %v970
    %v2337 = vpop.f32.mrf.mxu0
    %v2338 = vadd.f32 0.0, %v2337
    %v2339 = vpop.f32.mrf.mxu0
    %v2340 = vpop.f32.mrf.mxu0
    %v2341 = vadd.f32 0.0, %v2340
    %v2342 = vpop.f32.mrf.mxu0
    %2343 = vmatprep.mubr.bf16.mxu0 0
    %2344 = vmatmul.mubr.bf16.gmra.mxu0 %v2204
    %v2345 = vpop.f32.mrf.mxu0
    %v2346 = vadd.f32 0.0, %v2345
    %v2347 = vpop.f32.mrf.mxu0
    %v2348 = vpop.f32.mrf.mxu0
    %v2349 = vadd.f32 0.0, %v2348
    %v2350 = vpop.f32.mrf.mxu0
    %2351 = vdwg.mxu0
    %v2352 = vadd.f32 %v2160, %v2290
    %v2353 = vadd.f32 %v2161, %v2293
    %v2354 = vadd.f32 %v2162, %v2298
    %v2355 = vadd.f32 %v2163, %v2301
    %v2356 = vadd.f32 %v2164, %v2306
    %v2357 = vadd.f32 %v2165, %v2309
    %v2358 = vadd.f32 %v2166, %v2314
    %v2359 = vadd.f32 %v2167, %v2317
    %v2360 = vadd.f32 %v2168, %v2322
    %v2361 = vadd.f32 %v2169, %v2325
    %v2362 = vadd.f32 %v2170, %v2330
    %v2363 = vadd.f32 %v2171, %v2333
    %v2364 = vadd.f32 %v2172, %v2338
    %v2365 = vadd.f32 %v2173, %v2341
    %v2366 = vadd.f32 %v2174, %v2346
    %v2367 = vadd.f32 %v2175, %v2349
    %v2368 = vadd.f32 %v2352, %v2353
    %v2369 = vadd.f32 %v2368, %v2354
    %v2370 = vadd.f32 %v2369, %v2355
    %v2371 = vadd.f32 %v2370, %v2356
    %v2372 = vadd.f32 %v2371, %v2357
    %v2373 = vadd.f32 %v2372, %v2358
    %v2374 = vadd.f32 %v2373, %v2359
    %v2375 = vadd.f32 %v2374, %v2360
    %v2376 = vadd.f32 %v2375, %v2361
    %v2377 = vadd.f32 %v2376, %v2362
    %v2378 = vadd.f32 %v2377, %v2363
    %v2379 = vadd.f32 %v2378, %v2364
    %v2380 = vadd.f32 %v2379, %v2365
    %v2381 = vadd.f32 %v2380, %v2366
    %v2382 = vadd.f32 %v2381, %v2367
    %v2383 = vrot.slane %v2382, 4
    %v2384 = vadd.f32 %v2382, %v2383
    %v2385 = vrot.slane %v2384, 2
    %v2386 = vadd.f32 %v2384, %v2385
    %v2387 = vrot.slane %v2386, 1
    %v2388 = vadd.f32 %v2386, %v2387
    %v2389 = vrcp.pop 128.0
    %v2390 = vmul.f32 %v2388, %v2389
    %v2391 = vmul.f32 %v2352, %v2352
    %v2392 = vmul.f32 %v2353, %v2353
    %v2393 = vmul.f32 %v2354, %v2354
    %v2394 = vmul.f32 %v2355, %v2355
    %v2395 = vmul.f32 %v2356, %v2356
    %v2396 = vmul.f32 %v2357, %v2357
    %v2397 = vmul.f32 %v2358, %v2358
    %v2398 = vmul.f32 %v2359, %v2359
    %v2399 = vmul.f32 %v2360, %v2360
    %v2400 = vmul.f32 %v2361, %v2361
    %v2401 = vmul.f32 %v2362, %v2362
    %v2402 = vmul.f32 %v2363, %v2363
    %v2403 = vmul.f32 %v2364, %v2364
    %v2404 = vmul.f32 %v2365, %v2365
    %v2405 = vmul.f32 %v2366, %v2366
    %v2406 = vmul.f32 %v2367, %v2367
    %v2407 = vadd.f32 %v2391, %v2392
    %v2408 = vadd.f32 %v2407, %v2393
    %v2409 = vadd.f32 %v2408, %v2394
    %v2410 = vadd.f32 %v2409, %v2395
    %v2411 = vadd.f32 %v2410, %v2396
    %v2412 = vadd.f32 %v2411, %v2397
    %v2413 = vadd.f32 %v2412, %v2398
    %v2414 = vadd.f32 %v2413, %v2399
    %v2415 = vadd.f32 %v2414, %v2400
    %v2416 = vadd.f32 %v2415, %v2401
    %v2417 = vadd.f32 %v2416, %v2402
    %v2418 = vadd.f32 %v2417, %v2403
    %v2419 = vadd.f32 %v2418, %v2404
    %v2420 = vadd.f32 %v2419, %v2405
    %v2421 = vadd.f32 %v2420, %v2406
    %v2422 = vrot.slane %v2421, 4
    %v2423 = vadd.f32 %v2421, %v2422
    %v2424 = vrot.slane %v2423, 2
    %v2425 = vadd.f32 %v2423, %v2424
    %v2426 = vrot.slane %v2425, 1
    %v2427 = vadd.f32 %v2425, %v2426
    %v2428 = vmul.f32 %v2427, %v2389
    %v2429 = vmul.f32 %v2390, %v2390
    %v2430 = vsub.f32 %v2428, %v2429
    %v2431 = vmax.f32 %v2430, 0.0
    %v2432 = vsub.f32 %v2352, %v2390
    %v2433 = vsub.f32 %v2353, %v2390
    %v2434 = vsub.f32 %v2354, %v2390
    %v2435 = vsub.f32 %v2355, %v2390
    %v2436 = vsub.f32 %v2356, %v2390
    %v2437 = vsub.f32 %v2357, %v2390
    %v2438 = vsub.f32 %v2358, %v2390
    %v2439 = vsub.f32 %v2359, %v2390
    %v2440 = vsub.f32 %v2360, %v2390
    %v2441 = vsub.f32 %v2361, %v2390
    %v2442 = vsub.f32 %v2362, %v2390
    %v2443 = vsub.f32 %v2363, %v2390
    %v2444 = vsub.f32 %v2364, %v2390
    %v2445 = vsub.f32 %v2365, %v2390
    %v2446 = vsub.f32 %v2366, %v2390
    %v2447 = vsub.f32 %v2367, %v2390
    %v2448 = vadd.f32 %v2431, 1e-05
    %v2449 = vrsqrt.pop %v2448
    %v2450 = vmul.f32 %v2432, %v2449
    %v2451 = vmul.f32 %v2433, %v2449
    %v2452 = vmul.f32 %v2434, %v2449
    %v2453 = vmul.f32 %v2435, %v2449
    %v2454 = vmul.f32 %v2436, %v2449
    %v2455 = vmul.f32 %v2437, %v2449
    %v2456 = vmul.f32 %v2438, %v2449
    %v2457 = vmul.f32 %v2439, %v2449
    %v2458 = vmul.f32 %v2440, %v2449
    %v2459 = vmul.f32 %v2441, %v2449
    %v2460 = vmul.f32 %v2442, %v2449
    %v2461 = vmul.f32 %v2443, %v2449
    %v2462 = vmul.f32 %v2444, %v2449
    %v2463 = vmul.f32 %v2445, %v2449
    %v2464 = vmul.f32 %v2446, %v2449
    %v2465 = vmul.f32 %v2447, %v2449
    %v2466 = vld [vmem:[%s2] sm:$0x1]
    %v2468 = vlaneseq
    %v2469 = vshrl.u32 %v2468, 7
    %v2470 = vsub.s32 0, %v2469
    %v2471 = vrot.slane %v2466, %v2470
    %v2473 = vmul.f32 %v2450, %v2471
    %v2474 = vmul.f32 %v2451, %v2471
    %v2475 = vmul.f32 %v2452, %v2471
    %v2476 = vmul.f32 %v2453, %v2471
    %v2477 = vmul.f32 %v2454, %v2471
    %v2478 = vmul.f32 %v2455, %v2471
    %v2479 = vmul.f32 %v2456, %v2471
    %v2480 = vmul.f32 %v2457, %v2471
    %v2481 = vmul.f32 %v2458, %v2471
    %v2482 = vmul.f32 %v2459, %v2471
    %v2483 = vmul.f32 %v2460, %v2471
    %v2484 = vmul.f32 %v2461, %v2471
    %v2485 = vmul.f32 %v2462, %v2471
    %v2486 = vmul.f32 %v2463, %v2471
    %v2487 = vmul.f32 %v2464, %v2471
    %v2488 = vmul.f32 %v2465, %v2471
    %v2489 = vld [vmem:[%s3] sm:$0x1]
    %v2491 = vlaneseq
    %v2492 = vshrl.u32 %v2491, 7
    %v2493 = vsub.s32 0, %v2492
    %v2494 = vrot.slane %v2489, %v2493
    %v2496 = vadd.f32 %v2473, %v2494
    %v2497 = vadd.f32 %v2474, %v2494
    %v2498 = vadd.f32 %v2475, %v2494
    %v2499 = vadd.f32 %v2476, %v2494
    %v2500 = vadd.f32 %v2477, %v2494
    %v2501 = vadd.f32 %v2478, %v2494
    %v2502 = vadd.f32 %v2479, %v2494
    %v2503 = vadd.f32 %v2480, %v2494
    %v2504 = vadd.f32 %v2481, %v2494
    %v2505 = vadd.f32 %v2482, %v2494
    %v2506 = vadd.f32 %v2483, %v2494
    %v2507 = vadd.f32 %v2484, %v2494
    %v2508 = vadd.f32 %v2485, %v2494
    %v2509 = vadd.f32 %v2486, %v2494
    %v2510 = vadd.f32 %v2487, %v2494
    %v2511 = vadd.f32 %v2488, %v2494
    %v2512 = vmax.f32 %v2496, 0.0
    %v2513 = vmax.f32 %v2497, 0.0
    %v2514 = vmax.f32 %v2498, 0.0
    %v2515 = vmax.f32 %v2499, 0.0
    %v2516 = vmax.f32 %v2500, 0.0
    %v2517 = vmax.f32 %v2501, 0.0
    %v2518 = vmax.f32 %v2502, 0.0
    %v2519 = vmax.f32 %v2503, 0.0
    %v2520 = vmax.f32 %v2504, 0.0
    %v2521 = vmax.f32 %v2505, 0.0
    %v2522 = vmax.f32 %v2506, 0.0
    %v2523 = vmax.f32 %v2507, 0.0
    %v2524 = vmax.f32 %v2508, 0.0
    %v2525 = vmax.f32 %v2509, 0.0
    %v2526 = vmax.f32 %v2510, 0.0
    %v2527 = vmax.f32 %v2511, 0.0
    %2528 = vst [vmem:[#allocation2] sm:$0xff] 0.0
    %2529 = vst [vmem:[#allocation2 + $0x8] sm:$0x3] 0.0
    %2530 = vst [vmem:[#allocation2 + $0x10] sm:$0xff] 0.0
    %2531 = vst [vmem:[#allocation2 + $0x18] sm:$0x3] 0.0
    %2532 = vst [vmem:[#allocation2 + $0x20] sm:$0xff] 0.0
    %2533 = vst [vmem:[#allocation2 + $0x28] sm:$0x3] 0.0
    %2534 = vst [vmem:[#allocation2 + $0x30] sm:$0xff] 0.0
    %2535 = vst [vmem:[#allocation2 + $0x38] sm:$0x3] 0.0
    %2536 = vst [vmem:[#allocation2 + $0x40] sm:$0xff] 0.0
    %2537 = vst [vmem:[#allocation2 + $0x48] sm:$0x3] 0.0
    %2538 = vst [vmem:[#allocation2 + $0x50] sm:$0xff] 0.0
    %2539 = vst [vmem:[#allocation2 + $0x58] sm:$0x3] 0.0
    %2540 = vst [vmem:[#allocation2 + $0x60] sm:$0xff] 0.0
    %2541 = vst [vmem:[#allocation2 + $0x68] sm:$0x3] 0.0
    %2542 = vst [vmem:[#allocation2 + $0x70] sm:$0xff] 0.0
    %2543 = vst [vmem:[#allocation2 + $0x78] sm:$0x3] 0.0
    %2544 = vst [vmem:[#allocation2 + $0x80] sm:$0xff] 0.0
    %2545 = vst [vmem:[#allocation2 + $0x88] sm:$0x3] 0.0
    %2546 = vst [vmem:[#allocation2 + $0x90] sm:$0xff] 0.0
    %2547 = vst [vmem:[#allocation2 + $0x98] sm:$0x3] 0.0
    %2548 = vst [vmem:[#allocation2 + $0xa0] sm:$0xff] 0.0
    %2549 = vst [vmem:[#allocation2 + $0xa8] sm:$0x3] 0.0
    %2550 = vst [vmem:[#allocation2 + $0xb0] sm:$0xff] 0.0
    %2551 = vst [vmem:[#allocation2 + $0xb8] sm:$0x3] 0.0
    %2552 = vst [vmem:[#allocation2 + $0xc0] sm:$0xff] 0.0
    %2553 = vst [vmem:[#allocation2 + $0xc8] sm:$0x3] 0.0
    %2554 = vst [vmem:[#allocation2 + $0xd0] sm:$0xff] 0.0
    %2555 = vst [vmem:[#allocation2 + $0xd8] sm:$0x3] 0.0
    %2556 = vst [vmem:[#allocation2 + $0xe0] sm:$0xff] 0.0
    %2557 = vst [vmem:[#allocation2 + $0xe8] sm:$0x3] 0.0
    %2558 = vst [vmem:[#allocation2 + $0xf0] sm:$0xff] 0.0
    %2559 = vst [vmem:[#allocation2 + $0xf8] sm:$0x3] 0.0
    %2560 = vst [vmem:[#allocation2 + $0x100] sm:$0xff] 0.0
    %2561 = vst [vmem:[#allocation2 + $0x108] sm:$0x3] 0.0
    %2562 = vst [vmem:[#allocation2 + $0x110] sm:$0xff] 0.0
    %2563 = vst [vmem:[#allocation2 + $0x118] sm:$0x3] 0.0
    %2564 = vst [vmem:[#allocation2 + $0x120] sm:$0xff] 0.0
    %2565 = vst [vmem:[#allocation2 + $0x128] sm:$0x3] 0.0
    %2566 = vst [vmem:[#allocation2 + $0x130] sm:$0xff] 0.0
    %2567 = vst [vmem:[#allocation2 + $0x138] sm:$0x3] 0.0
    %s2568 = scalar_lea.vmem [#allocation2], 16
    %2569 = vst [vmem:[%s2568 + $0x1] sm:$0xff] %v2512
    %2570 = vst [vmem:[%s2568 + $0x11] sm:$0xff] %v2513
    %2571 = vst [vmem:[%s2568 + $0x21] sm:$0xff] %v2514
    %2572 = vst [vmem:[%s2568 + $0x31] sm:$0xff] %v2515
    %2573 = vst [vmem:[%s2568 + $0x41] sm:$0xff] %v2516
    %2574 = vst [vmem:[%s2568 + $0x51] sm:$0xff] %v2517
    %2575 = vst [vmem:[%s2568 + $0x61] sm:$0xff] %v2518
    %2576 = vst [vmem:[%s2568 + $0x71] sm:$0xff] %v2519
    %2577 = vst [vmem:[%s2568 + $0xa1] sm:$0xff] %v2520
    %2578 = vst [vmem:[%s2568 + $0xb1] sm:$0xff] %v2521
    %2579 = vst [vmem:[%s2568 + $0xc1] sm:$0xff] %v2522
    %2580 = vst [vmem:[%s2568 + $0xd1] sm:$0xff] %v2523
    %2581 = vst [vmem:[%s2568 + $0xe1] sm:$0xff] %v2524
    %2582 = vst [vmem:[%s2568 + $0xf1] sm:$0xff] %v2525
    %2583 = vst [vmem:[%s2568 + $0x101] sm:$0xff] %v2526
    %2584 = vst [vmem:[%s2568 + $0x111] sm:$0xff] %v2527
    %v2585 = vld [vmem:[#allocation2] sm:$0xff]
    %v2586 = vld [vmem:[#allocation2 + $0x8] sm:$0x3]
    %v2587 = vld [vmem:[#allocation2 + $0x10] sm:$0xff]
    %v2588 = vld [vmem:[#allocation2 + $0x18] sm:$0x3]
    %v2589 = vld [vmem:[#allocation2 + $0x20] sm:$0xff]
    %v2590 = vld [vmem:[#allocation2 + $0x28] sm:$0x3]
    %v2591 = vld [vmem:[#allocation2 + $0x30] sm:$0xff]
    %v2592 = vld [vmem:[#allocation2 + $0x38] sm:$0x3]
    %v2593 = vld [vmem:[#allocation2 + $0x40] sm:$0xff]
    %v2594 = vld [vmem:[#allocation2 + $0x48] sm:$0x3]
    %v2595 = vld [vmem:[#allocation2 + $0x50] sm:$0xff]
    %v2596 = vld [vmem:[#allocation2 + $0x58] sm:$0x3]
    %v2597 = vld [vmem:[#allocation2 + $0x60] sm:$0xff]
    %v2598 = vld [vmem:[#allocation2 + $0x68] sm:$0x3]
    %v2599 = vld [vmem:[#allocation2 + $0x70] sm:$0xff]
    %v2600 = vld [vmem:[#allocation2 + $0x78] sm:$0x3]
    %v2601 = vld [vmem:[#allocation2 + $0x80] sm:$0xff]
    %v2602 = vld [vmem:[#allocation2 + $0x88] sm:$0x3]
    %v2603 = vld [vmem:[#allocation2 + $0x90] sm:$0xff]
    %v2604 = vld [vmem:[#allocation2 + $0x98] sm:$0x3]
    %v2605 = vld [vmem:[#allocation2 + $0xa0] sm:$0xff]
    %v2606 = vld [vmem:[#allocation2 + $0xa8] sm:$0x3]
    %v2607 = vld [vmem:[#allocation2 + $0xb0] sm:$0xff]
    %v2608 = vld [vmem:[#allocation2 + $0xb8] sm:$0x3]
    %v2609 = vld [vmem:[#allocation2 + $0xc0] sm:$0xff]
    %v2610 = vld [vmem:[#allocation2 + $0xc8] sm:$0x3]
    %v2611 = vld [vmem:[#allocation2 + $0xd0] sm:$0xff]
    %v2612 = vld [vmem:[#allocation2 + $0xd8] sm:$0x3]
    %v2613 = vld [vmem:[#allocation2 + $0xe0] sm:$0xff]
    %v2614 = vld [vmem:[#allocation2 + $0xe8] sm:$0x3]
    %v2615 = vld [vmem:[#allocation2 + $0xf0] sm:$0xff]
    %v2616 = vld [vmem:[#allocation2 + $0xf8] sm:$0x3]
    %v2617 = vld [vmem:[#allocation2 + $0x100] sm:$0xff]
    %v2618 = vld [vmem:[#allocation2 + $0x108] sm:$0x3]
    %v2619 = vld [vmem:[#allocation2 + $0x110] sm:$0xff]
    %v2620 = vld [vmem:[#allocation2 + $0x118] sm:$0x3]
    %v2621 = vld [vmem:[#allocation2 + $0x120] sm:$0xff]
    %v2622 = vld [vmem:[#allocation2 + $0x128] sm:$0x3]
    %v2623 = vld [vmem:[#allocation2 + $0x130] sm:$0xff]
    %v2624 = vld [vmem:[#allocation2 + $0x138] sm:$0x3]
    %v2625 = vpack.c.bf16 %v2586, %v2585
    %v2626 = vpack.c.bf16 %v2588, %v2587
    %v2627 = vpack.c.bf16 %v2590, %v2589
    %v2628 = vpack.c.bf16 %v2592, %v2591
    %v2629 = vpack.c.bf16 %v2594, %v2593
    %v2630 = vpack.c.bf16 %v2596, %v2595
    %v2631 = vpack.c.bf16 %v2598, %v2597
    %v2632 = vpack.c.bf16 %v2600, %v2599
    %v2633 = vpack.c.bf16 %v2602, %v2601
    %v2634 = vpack.c.bf16 %v2604, %v2603
    %v2635 = vpack.c.bf16 %v2606, %v2605
    %v2636 = vpack.c.bf16 %v2608, %v2607
    %v2637 = vpack.c.bf16 %v2610, %v2609
    %v2638 = vpack.c.bf16 %v2612, %v2611
    %v2639 = vpack.c.bf16 %v2614, %v2613
    %v2640 = vpack.c.bf16 %v2616, %v2615
    %v2641 = vpack.c.bf16 %v2618, %v2617
    %v2642 = vpack.c.bf16 %v2620, %v2619
    %v2643 = vpack.c.bf16 %v2622, %v2621
    %v2644 = vpack.c.bf16 %v2624, %v2623
    %v2645 = vld [vmem:[%s4] sm:$0xf]
    %v2646 = vld [vmem:[%s4 + $0x4] sm:$0xf]
    %v2647 = vld [vmem:[%s4 + $0x8] sm:$0xf]
    %v2648 = vld [vmem:[%s4 + $0xc] sm:$0xf]
    %v2649 = vld [vmem:[%s4 + $0x10] sm:$0xf]
    %v2650 = vld [vmem:[%s4 + $0x14] sm:$0xf]
    %v2651 = vld [vmem:[%s4 + $0x18] sm:$0xf]
    %v2652 = vld [vmem:[%s4 + $0x1c] sm:$0xf]
    %v2653 = vld [vmem:[%s4 + $0x20] sm:$0xf]
    %v2654 = vld [vmem:[%s4 + $0x24] sm:$0xf]
    %v2655 = vld [vmem:[%s4 + $0x28] sm:$0xf]
    %v2656 = vld [vmem:[%s4 + $0x2c] sm:$0xf]
    %v2657 = vld [vmem:[%s4 + $0x30] sm:$0xf]
    %v2658 = vld [vmem:[%s4 + $0x34] sm:$0xf]
    %v2659 = vld [vmem:[%s4 + $0x38] sm:$0xf]
    %v2660 = vld [vmem:[%s4 + $0x3c] sm:$0xf]
    %v2677 = vunpack.c.l.b16 %v2625
    %v2678 = vunpack.c.h.b16 %v2625
    %v2679 = vunpack.c.l.b16 %v2626
    %v2680 = vunpack.c.h.b16 %v2626
    %v2681 = vunpack.c.l.b16 %v2627
    %v2682 = vunpack.c.h.b16 %v2627
    %v2683 = vunpack.c.l.b16 %v2628
    %v2684 = vunpack.c.h.b16 %v2628
    %v2685 = vunpack.c.l.b16 %v2629
    %v2686 = vunpack.c.h.b16 %v2629
    %v2687 = vunpack.c.l.b16 %v2630
    %v2688 = vunpack.c.h.b16 %v2630
    %v2689 = vunpack.c.l.b16 %v2631
    %v2690 = vunpack.c.h.b16 %v2631
    %v2691 = vunpack.c.l.b16 %v2632
    %v2692 = vunpack.c.h.b16 %v2632
    %v2693 = vunpack.c.l.b16 %v2635
    %v2694 = vunpack.c.h.b16 %v2635
    %v2695 = vunpack.c.l.b16 %v2636
    %v2696 = vunpack.c.h.b16 %v2636
    %v2697 = vunpack.c.l.b16 %v2637
    %v2698 = vunpack.c.h.b16 %v2637
    %v2699 = vunpack.c.l.b16 %v2638
    %v2700 = vunpack.c.h.b16 %v2638
    %v2701 = vunpack.c.l.b16 %v2639
    %v2702 = vunpack.c.h.b16 %v2639
    %v2703 = vunpack.c.l.b16 %v2640
    %v2704 = vunpack.c.h.b16 %v2640
    %v2705 = vunpack.c.l.b16 %v2641
    %v2706 = vunpack.c.h.b16 %v2641
    %v2707 = vunpack.c.l.b16 %v2642
    %v2708 = vunpack.c.h.b16 %v2642
    %v2709 = vpack.c.b16 %v2677, %v2677
    %v2710 = vpack.c.b16 %v2678, %v2678
    %v2711 = vpack.c.b16 %v2679, %v2679
    %v2712 = vpack.c.b16 %v2680, %v2680
    %v2713 = vpack.c.b16 %v2681, %v2681
    %v2714 = vpack.c.b16 %v2682, %v2682
    %v2715 = vpack.c.b16 %v2683, %v2683
    %v2716 = vpack.c.b16 %v2684, %v2684
    %v2717 = vpack.c.b16 %v2685, %v2685
    %v2718 = vpack.c.b16 %v2686, %v2686
    %v2719 = vpack.c.b16 %v2687, %v2687
    %v2720 = vpack.c.b16 %v2688, %v2688
    %v2721 = vpack.c.b16 %v2689, %v2689
    %v2722 = vpack.c.b16 %v2690, %v2690
    %v2723 = vpack.c.b16 %v2691, %v2691
    %v2724 = vpack.c.b16 %v2692, %v2692
    %v2725 = vpack.c.b16 %v2693, %v2693
    %v2726 = vpack.c.b16 %v2694, %v2694
    %v2727 = vpack.c.b16 %v2695, %v2695
    %v2728 = vpack.c.b16 %v2696, %v2696
    %v2729 = vpack.c.b16 %v2697, %v2697
    %v2730 = vpack.c.b16 %v2698, %v2698
    %v2731 = vpack.c.b16 %v2699, %v2699
    %v2732 = vpack.c.b16 %v2700, %v2700
    %v2733 = vpack.c.b16 %v2701, %v2701
    %v2734 = vpack.c.b16 %v2702, %v2702
    %v2735 = vpack.c.b16 %v2703, %v2703
    %v2736 = vpack.c.b16 %v2704, %v2704
    %v2737 = vpack.c.b16 %v2705, %v2705
    %v2738 = vpack.c.b16 %v2706, %v2706
    %v2739 = vpack.c.b16 %v2707, %v2707
    %v2740 = vpack.c.b16 %v2708, %v2708
    %v2742 = vshrl.u32 %v2709, 16
    %v2744 = vrot.slane %v2742, 4
    %v2745 = vshll.u32 %v2709, 16
    %v2747 = vrot.slane %v2745, 5
    %v2748 = vor.u32 %v2744, %v2747
    %v2749 = vrot.slane %v2748, 4
    %v2751 = vshll.u32 %v2710, 16
    %v2753 = vrot.slane %v2751, 5
    %v2754 = vsel %vm283, %v2749, %v2753
    %v2756 = vshrl.u32 %v2711, 16
    %v2758 = vrot.slane %v2756, 4
    %v2759 = vshll.u32 %v2711, 16
    %v2761 = vrot.slane %v2759, 5
    %v2762 = vor.u32 %v2758, %v2761
    %v2763 = vrot.slane %v2762, 4
    %v2765 = vshll.u32 %v2712, 16
    %v2767 = vrot.slane %v2765, 5
    %v2768 = vsel %vm283, %v2763, %v2767
    %v2770 = vshrl.u32 %v2713, 16
    %v2772 = vrot.slane %v2770, 4
    %v2773 = vshll.u32 %v2713, 16
    %v2775 = vrot.slane %v2773, 5
    %v2776 = vor.u32 %v2772, %v2775
    %v2777 = vrot.slane %v2776, 4
    %v2779 = vshll.u32 %v2714, 16
    %v2781 = vrot.slane %v2779, 5
    %v2782 = vsel %vm283, %v2777, %v2781
    %v2784 = vshrl.u32 %v2715, 16
    %v2786 = vrot.slane %v2784, 4
    %v2787 = vshll.u32 %v2715, 16
    %v2789 = vrot.slane %v2787, 5
    %v2790 = vor.u32 %v2786, %v2789
    %v2791 = vrot.slane %v2790, 4
    %v2793 = vshll.u32 %v2716, 16
    %v2795 = vrot.slane %v2793, 5
    %v2796 = vsel %vm283, %v2791, %v2795
    %v2798 = vshrl.u32 %v2717, 16
    %v2800 = vrot.slane %v2798, 4
    %v2801 = vshll.u32 %v2717, 16
    %v2803 = vrot.slane %v2801, 5
    %v2804 = vor.u32 %v2800, %v2803
    %v2805 = vrot.slane %v2804, 4
    %v2807 = vshll.u32 %v2718, 16
    %v2809 = vrot.slane %v2807, 5
    %v2810 = vsel %vm283, %v2805, %v2809
    %v2812 = vshrl.u32 %v2719, 16
    %v2814 = vrot.slane %v2812, 4
    %v2815 = vshll.u32 %v2719, 16
    %v2817 = vrot.slane %v2815, 5
    %v2818 = vor.u32 %v2814, %v2817
    %v2819 = vrot.slane %v2818, 4
    %v2821 = vshll.u32 %v2720, 16
    %v2823 = vrot.slane %v2821, 5
    %v2824 = vsel %vm283, %v2819, %v2823
    %v2826 = vshrl.u32 %v2721, 16
    %v2828 = vrot.slane %v2826, 4
    %v2829 = vshll.u32 %v2721, 16
    %v2831 = vrot.slane %v2829, 5
    %v2832 = vor.u32 %v2828, %v2831
    %v2833 = vrot.slane %v2832, 4
    %v2835 = vshll.u32 %v2722, 16
    %v2837 = vrot.slane %v2835, 5
    %v2838 = vsel %vm283, %v2833, %v2837
    %v2840 = vshrl.u32 %v2723, 16
    %v2842 = vrot.slane %v2840, 4
    %v2843 = vshll.u32 %v2723, 16
    %v2845 = vrot.slane %v2843, 5
    %v2846 = vor.u32 %v2842, %v2845
    %v2847 = vrot.slane %v2846, 4
    %v2849 = vshll.u32 %v2724, 16
    %v2851 = vrot.slane %v2849, 5
    %v2852 = vsel %vm283, %v2847, %v2851
    %v2854 = vshrl.u32 %v2725, 16
    %v2856 = vrot.slane %v2854, 4
    %v2857 = vshll.u32 %v2725, 16
    %v2859 = vrot.slane %v2857, 5
    %v2860 = vor.u32 %v2856, %v2859
    %v2861 = vrot.slane %v2860, 4
    %v2863 = vshll.u32 %v2726, 16
    %v2865 = vrot.slane %v2863, 5
    %v2866 = vsel %vm283, %v2861, %v2865
    %v2868 = vshrl.u32 %v2727, 16
    %v2870 = vrot.slane %v2868, 4
    %v2871 = vshll.u32 %v2727, 16
    %v2873 = vrot.slane %v2871, 5
    %v2874 = vor.u32 %v2870, %v2873
    %v2875 = vrot.slane %v2874, 4
    %v2877 = vshll.u32 %v2728, 16
    %v2879 = vrot.slane %v2877, 5
    %v2880 = vsel %vm283, %v2875, %v2879
    %v2882 = vshrl.u32 %v2729, 16
    %v2884 = vrot.slane %v2882, 4
    %v2885 = vshll.u32 %v2729, 16
    %v2887 = vrot.slane %v2885, 5
    %v2888 = vor.u32 %v2884, %v2887
    %v2889 = vrot.slane %v2888, 4
    %v2891 = vshll.u32 %v2730, 16
    %v2893 = vrot.slane %v2891, 5
    %v2894 = vsel %vm283, %v2889, %v2893
    %v2896 = vshrl.u32 %v2731, 16
    %v2898 = vrot.slane %v2896, 4
    %v2899 = vshll.u32 %v2731, 16
    %v2901 = vrot.slane %v2899, 5
    %v2902 = vor.u32 %v2898, %v2901
    %v2903 = vrot.slane %v2902, 4
    %v2905 = vshll.u32 %v2732, 16
    %v2907 = vrot.slane %v2905, 5
    %v2908 = vsel %vm283, %v2903, %v2907
    %v2910 = vshrl.u32 %v2733, 16
    %v2912 = vrot.slane %v2910, 4
    %v2913 = vshll.u32 %v2733, 16
    %v2915 = vrot.slane %v2913, 5
    %v2916 = vor.u32 %v2912, %v2915
    %v2917 = vrot.slane %v2916, 4
    %v2919 = vshll.u32 %v2734, 16
    %v2921 = vrot.slane %v2919, 5
    %v2922 = vsel %vm283, %v2917, %v2921
    %v2924 = vshrl.u32 %v2735, 16
    %v2926 = vrot.slane %v2924, 4
    %v2927 = vshll.u32 %v2735, 16
    %v2929 = vrot.slane %v2927, 5
    %v2930 = vor.u32 %v2926, %v2929
    %v2931 = vrot.slane %v2930, 4
    %v2933 = vshll.u32 %v2736, 16
    %v2935 = vrot.slane %v2933, 5
    %v2936 = vsel %vm283, %v2931, %v2935
    %v2938 = vshrl.u32 %v2737, 16
    %v2940 = vrot.slane %v2938, 4
    %v2941 = vshll.u32 %v2737, 16
    %v2943 = vrot.slane %v2941, 5
    %v2944 = vor.u32 %v2940, %v2943
    %v2945 = vrot.slane %v2944, 4
    %v2947 = vshll.u32 %v2738, 16
    %v2949 = vrot.slane %v2947, 5
    %v2950 = vsel %vm283, %v2945, %v2949
    %v2952 = vshrl.u32 %v2739, 16
    %v2954 = vrot.slane %v2952, 4
    %v2955 = vshll.u32 %v2739, 16
    %v2957 = vrot.slane %v2955, 5
    %v2958 = vor.u32 %v2954, %v2957
    %v2959 = vrot.slane %v2958, 4
    %v2961 = vshll.u32 %v2740, 16
    %v2963 = vrot.slane %v2961, 5
    %v2964 = vsel %vm283, %v2959, %v2963
    %s2965 = scalar_lea.vmem %s4, 64
    %v2966 = vld [vmem:[%s2965] sm:$0xf]
    %v2967 = vld [vmem:[%s2965 + $0x4] sm:$0xf]
    %v2968 = vld [vmem:[%s2965 + $0x8] sm:$0xf]
    %v2969 = vld [vmem:[%s2965 + $0xc] sm:$0xf]
    %v2970 = vld [vmem:[%s2965 + $0x10] sm:$0xf]
    %v2971 = vld [vmem:[%s2965 + $0x14] sm:$0xf]
    %v2972 = vld [vmem:[%s2965 + $0x18] sm:$0xf]
    %v2973 = vld [vmem:[%s2965 + $0x1c] sm:$0xf]
    %v2974 = vld [vmem:[%s2965 + $0x20] sm:$0xf]
    %v2975 = vld [vmem:[%s2965 + $0x24] sm:$0xf]
    %v2976 = vld [vmem:[%s2965 + $0x28] sm:$0xf]
    %v2977 = vld [vmem:[%s2965 + $0x2c] sm:$0xf]
    %v2978 = vld [vmem:[%s2965 + $0x30] sm:$0xf]
    %v2979 = vld [vmem:[%s2965 + $0x34] sm:$0xf]
    %v2980 = vld [vmem:[%s2965 + $0x38] sm:$0xf]
    %v2981 = vld [vmem:[%s2965 + $0x3c] sm:$0xf]
    %v2982 = vunpack.c.l.b16 %v2754
    %v2983 = vunpack.c.l.b16 %v2768
    %v2984 = vunpack.c.l.b16 %v2782
    %v2985 = vunpack.c.l.b16 %v2796
    %v2986 = vunpack.c.l.b16 %v2810
    %v2987 = vunpack.c.l.b16 %v2824
    %v2988 = vunpack.c.l.b16 %v2838
    %v2989 = vunpack.c.l.b16 %v2852
    %v2990 = vunpack.c.l.b16 %v2866
    %v2991 = vunpack.c.l.b16 %v2880
    %v2992 = vunpack.c.l.b16 %v2894
    %v2993 = vunpack.c.l.b16 %v2908
    %v2994 = vunpack.c.l.b16 %v2922
    %v2995 = vunpack.c.l.b16 %v2936
    %v2996 = vunpack.c.l.b16 %v2950
    %v2997 = vunpack.c.l.b16 %v2964
    %v2998 = vpack.c.b16 %v2983, %v2982
    %v2999 = vpack.c.b16 %v2985, %v2984
    %v3000 = vpack.c.b16 %v2987, %v2986
    %v3001 = vpack.c.b16 %v2989, %v2988
    %v3002 = vpack.c.b16 %v2991, %v2990
    %v3003 = vpack.c.b16 %v2993, %v2992
    %v3004 = vpack.c.b16 %v2995, %v2994
    %v3005 = vpack.c.b16 %v2997, %v2996
    %v3030 = vunpack.c.l.b16 %v2966
    %v3031 = vunpack.c.l.b16 %v2967
    %v3032 = vunpack.c.l.b16 %v2968
    %v3033 = vunpack.c.l.b16 %v2969
    %v3034 = vunpack.c.l.b16 %v2970
    %v3035 = vunpack.c.l.b16 %v2971
    %v3036 = vunpack.c.l.b16 %v2972
    %v3037 = vunpack.c.l.b16 %v2973
    %v3038 = vunpack.c.l.b16 %v2974
    %v3039 = vunpack.c.l.b16 %v2975
    %v3040 = vunpack.c.l.b16 %v2976
    %v3041 = vunpack.c.l.b16 %v2977
    %v3042 = vunpack.c.l.b16 %v2978
    %v3043 = vunpack.c.l.b16 %v2979
    %v3044 = vunpack.c.l.b16 %v2980
    %v3045 = vunpack.c.l.b16 %v2981
    %v3046 = vpack.c.b16 %v3031, %v3030
    %v3047 = vpack.c.b16 %v3033, %v3032
    %v3048 = vpack.c.b16 %v3035, %v3034
    %v3049 = vpack.c.b16 %v3037, %v3036
    %v3050 = vpack.c.b16 %v3039, %v3038
    %v3051 = vpack.c.b16 %v3041, %v3040
    %v3052 = vpack.c.b16 %v3043, %v3042
    %v3053 = vpack.c.b16 %v3045, %v3044
    %3062 = vmatprep.subr.bf16.mxu0 0
    %3063 = vmatpush1.bf16.msra.mxu0 %v3053
    %3064 = vmatprep.subr.bf16.mxu0 0
    %3065 = vmatpush1.bf16.msra.mxu0 %v3052
    %3066 = vmatprep.subr.bf16.mxu0 0
    %3067 = vmatpush1.bf16.msra.mxu0 %v3051
    %3068 = vmatprep.subr.bf16.mxu0 0
    %3069 = vmatpush1.bf16.msra.mxu0 %v3050
    %3070 = vmatprep.subr.bf16.mxu0 0
    %3071 = vmatpush1.bf16.msra.mxu0 %v3049
    %3072 = vmatprep.subr.bf16.mxu0 0
    %3073 = vmatpush1.bf16.msra.mxu0 %v3048
    %3074 = vmatprep.subr.bf16.mxu0 0
    %3075 = vmatpush1.bf16.msra.mxu0 %v3047
    %3076 = vmatprep.subr.bf16.mxu0 0
    %3077 = vmatpush1.bf16.msra.mxu0 %v3046
    %3078 = vmatprep.subr.bf16.mxu0 0
    %3079 = vmatpush2.bf16.msra.mxu0 0
    %3080 = vmatprep.subr.bf16.mxu0 0
    %3081 = vmatpush2.bf16.msra.mxu0 0
    %3082 = vmatprep.subr.bf16.mxu0 0
    %3083 = vmatpush2.bf16.msra.mxu0 0
    %3084 = vmatprep.subr.bf16.mxu0 0
    %3085 = vmatpush2.bf16.msra.mxu0 0
    %3086 = vmatprep.subr.bf16.mxu0 0
    %3087 = vmatpush2.bf16.msra.mxu0 0
    %3088 = vmatprep.subr.bf16.mxu0 0
    %3089 = vmatpush2.bf16.msra.mxu0 0
    %3090 = vmatprep.subr.bf16.mxu0 0
    %3091 = vmatpush2.bf16.msra.mxu0 0
    %3092 = vmatprep.subr.bf16.mxu0 0
    %3093 = vmatpush2.bf16.msra.mxu0 0
    %3094 = vmatprep.mubr.bf16.mxu0 0
    %3095 = vmatmul.mubr.bf16.gmra.mxu0 %v2998
    %v3096 = vpop.f32.mrf.mxu0
    %v3097 = vadd.f32 0.0, %v3096
    %v3098 = vpop.f32.mrf.mxu0
    %v3099 = vpop.f32.mrf.mxu0
    %v3100 = vadd.f32 0.0, %v3099
    %v3101 = vpop.f32.mrf.mxu0
    %3102 = vmatprep.mubr.bf16.mxu0 0
    %3103 = vmatmul.mubr.bf16.gmra.mxu0 %v2999
    %v3104 = vpop.f32.mrf.mxu0
    %v3105 = vadd.f32 0.0, %v3104
    %v3106 = vpop.f32.mrf.mxu0
    %v3107 = vpop.f32.mrf.mxu0
    %v3108 = vadd.f32 0.0, %v3107
    %v3109 = vpop.f32.mrf.mxu0
    %3110 = vmatprep.mubr.bf16.mxu0 0
    %3111 = vmatmul.mubr.bf16.gmra.mxu0 %v3000
    %v3112 = vpop.f32.mrf.mxu0
    %v3113 = vadd.f32 0.0, %v3112
    %v3114 = vpop.f32.mrf.mxu0
    %v3115 = vpop.f32.mrf.mxu0
    %v3116 = vadd.f32 0.0, %v3115
    %v3117 = vpop.f32.mrf.mxu0
    %3118 = vmatprep.mubr.bf16.mxu0 0
    %3119 = vmatmul.mubr.bf16.gmra.mxu0 %v3001
    %v3120 = vpop.f32.mrf.mxu0
    %v3121 = vadd.f32 0.0, %v3120
    %v3122 = vpop.f32.mrf.mxu0
    %v3123 = vpop.f32.mrf.mxu0
    %v3124 = vadd.f32 0.0, %v3123
    %v3125 = vpop.f32.mrf.mxu0
    %3126 = vmatprep.mubr.bf16.mxu0 0
    %3127 = vmatmul.mubr.bf16.gmra.mxu0 %v3002
    %v3128 = vpop.f32.mrf.mxu0
    %v3129 = vadd.f32 0.0, %v3128
    %v3130 = vpop.f32.mrf.mxu0
    %v3131 = vpop.f32.mrf.mxu0
    %v3132 = vadd.f32 0.0, %v3131
    %v3133 = vpop.f32.mrf.mxu0
    %3134 = vmatprep.mubr.bf16.mxu0 0
    %3135 = vmatmul.mubr.bf16.gmra.mxu0 %v3003
    %v3136 = vpop.f32.mrf.mxu0
    %v3137 = vadd.f32 0.0, %v3136
    %v3138 = vpop.f32.mrf.mxu0
    %v3139 = vpop.f32.mrf.mxu0
    %v3140 = vadd.f32 0.0, %v3139
    %v3141 = vpop.f32.mrf.mxu0
    %3142 = vmatprep.mubr.bf16.mxu0 0
    %3143 = vmatmul.mubr.bf16.gmra.mxu0 %v3004
    %v3144 = vpop.f32.mrf.mxu0
    %v3145 = vadd.f32 0.0, %v3144
    %v3146 = vpop.f32.mrf.mxu0
    %v3147 = vpop.f32.mrf.mxu0
    %v3148 = vadd.f32 0.0, %v3147
    %v3149 = vpop.f32.mrf.mxu0
    %3150 = vmatprep.mubr.bf16.mxu0 0
    %3151 = vmatmul.mubr.bf16.gmra.mxu0 %v3005
    %v3152 = vpop.f32.mrf.mxu0
    %v3153 = vadd.f32 0.0, %v3152
    %v3154 = vpop.f32.mrf.mxu0
    %v3155 = vpop.f32.mrf.mxu0
    %v3156 = vadd.f32 0.0, %v3155
    %v3157 = vpop.f32.mrf.mxu0
    %3158 = vdwg.mxu0
    %v3159 = vpack.c.b16 %v2679, %v2677
    %v3160 = vpack.c.b16 %v2683, %v2681
    %v3161 = vpack.c.b16 %v2687, %v2685
    %v3162 = vpack.c.b16 %v2691, %v2689
    %v3163 = vpack.c.b16 %v2695, %v2693
    %v3164 = vpack.c.b16 %v2699, %v2697
    %v3165 = vpack.c.b16 %v2703, %v2701
    %v3166 = vpack.c.b16 %v2707, %v2705
    %v3191 = vunpack.c.l.b16 %v2645
    %v3192 = vunpack.c.l.b16 %v2646
    %v3193 = vunpack.c.l.b16 %v2647
    %v3194 = vunpack.c.l.b16 %v2648
    %v3195 = vunpack.c.l.b16 %v2649
    %v3196 = vunpack.c.l.b16 %v2650
    %v3197 = vunpack.c.l.b16 %v2651
    %v3198 = vunpack.c.l.b16 %v2652
    %v3199 = vunpack.c.l.b16 %v2653
    %v3200 = vunpack.c.l.b16 %v2654
    %v3201 = vunpack.c.l.b16 %v2655
    %v3202 = vunpack.c.l.b16 %v2656
    %v3203 = vunpack.c.l.b16 %v2657
    %v3204 = vunpack.c.l.b16 %v2658
    %v3205 = vunpack.c.l.b16 %v2659
    %v3206 = vunpack.c.l.b16 %v2660
    %v3207 = vpack.c.b16 %v3192, %v3191
    %v3208 = vpack.c.b16 %v3194, %v3193
    %v3209 = vpack.c.b16 %v3196, %v3195
    %v3210 = vpack.c.b16 %v3198, %v3197
    %v3211 = vpack.c.b16 %v3200, %v3199
    %v3212 = vpack.c.b16 %v3202, %v3201
    %v3213 = vpack.c.b16 %v3204, %v3203
    %v3214 = vpack.c.b16 %v3206, %v3205
    %3223 = vmatprep.subr.bf16.mxu0 0
    %3224 = vmatpush1.bf16.msra.mxu0 %v3214
    %3225 = vmatprep.subr.bf16.mxu0 0
    %3226 = vmatpush1.bf16.msra.mxu0 %v3213
    %3227 = vmatprep.subr.bf16.mxu0 0
    %3228 = vmatpush1.bf16.msra.mxu0 %v3212
    %3229 = vmatprep.subr.bf16.mxu0 0
    %3230 = vmatpush1.bf16.msra.mxu0 %v3211
    %3231 = vmatprep.subr.bf16.mxu0 0
    %3232 = vmatpush1.bf16.msra.mxu0 %v3210
    %3233 = vmatprep.subr.bf16.mxu0 0
    %3234 = vmatpush1.bf16.msra.mxu0 %v3209
    %3235 = vmatprep.subr.bf16.mxu0 0
    %3236 = vmatpush1.bf16.msra.mxu0 %v3208
    %3237 = vmatprep.subr.bf16.mxu0 0
    %3238 = vmatpush1.bf16.msra.mxu0 %v3207
    %3239 = vmatprep.subr.bf16.mxu0 0
    %3240 = vmatpush2.bf16.msra.mxu0 0
    %3241 = vmatprep.subr.bf16.mxu0 0
    %3242 = vmatpush2.bf16.msra.mxu0 0
    %3243 = vmatprep.subr.bf16.mxu0 0
    %3244 = vmatpush2.bf16.msra.mxu0 0
    %3245 = vmatprep.subr.bf16.mxu0 0
    %3246 = vmatpush2.bf16.msra.mxu0 0
    %3247 = vmatprep.subr.bf16.mxu0 0
    %3248 = vmatpush2.bf16.msra.mxu0 0
    %3249 = vmatprep.subr.bf16.mxu0 0
    %3250 = vmatpush2.bf16.msra.mxu0 0
    %3251 = vmatprep.subr.bf16.mxu0 0
    %3252 = vmatpush2.bf16.msra.mxu0 0
    %3253 = vmatprep.subr.bf16.mxu0 0
    %3254 = vmatpush2.bf16.msra.mxu0 0
    %3255 = vmatprep.mubr.bf16.mxu0 0
    %3256 = vmatmul.mubr.bf16.gmra.mxu0 %v3159
    %v3257 = vpop.f32.mrf.mxu0
    %v3258 = vadd.f32 %v3097, %v3257
    %v3259 = vpop.f32.mrf.mxu0
    %v3260 = vpop.f32.mrf.mxu0
    %v3261 = vadd.f32 %v3100, %v3260
    %v3262 = vpop.f32.mrf.mxu0
    %3263 = vmatprep.mubr.bf16.mxu0 0
    %3264 = vmatmul.mubr.bf16.gmra.mxu0 %v3160
    %v3265 = vpop.f32.mrf.mxu0
    %v3266 = vadd.f32 %v3105, %v3265
    %v3267 = vpop.f32.mrf.mxu0
    %v3268 = vpop.f32.mrf.mxu0
    %v3269 = vadd.f32 %v3108, %v3268
    %v3270 = vpop.f32.mrf.mxu0
    %3271 = vmatprep.mubr.bf16.mxu0 0
    %3272 = vmatmul.mubr.bf16.gmra.mxu0 %v3161
    %v3273 = vpop.f32.mrf.mxu0
    %v3274 = vadd.f32 %v3113, %v3273
    %v3275 = vpop.f32.mrf.mxu0
    %v3276 = vpop.f32.mrf.mxu0
    %v3277 = vadd.f32 %v3116, %v3276
    %v3278 = vpop.f32.mrf.mxu0
    %3279 = vmatprep.mubr.bf16.mxu0 0
    %3280 = vmatmul.mubr.bf16.gmra.mxu0 %v3162
    %v3281 = vpop.f32.mrf.mxu0
    %v3282 = vadd.f32 %v3121, %v3281
    %v3283 = vpop.f32.mrf.mxu0
    %v3284 = vpop.f32.mrf.mxu0
    %v3285 = vadd.f32 %v3124, %v3284
    %v3286 = vpop.f32.mrf.mxu0
    %3287 = vmatprep.mubr.bf16.mxu0 0
    %3288 = vmatmul.mubr.bf16.gmra.mxu0 %v3163
    %v3289 = vpop.f32.mrf.mxu0
    %v3290 = vadd.f32 %v3129, %v3289
    %v3291 = vpop.f32.mrf.mxu0
    %v3292 = vpop.f32.mrf.mxu0
    %v3293 = vadd.f32 %v3132, %v3292
    %v3294 = vpop.f32.mrf.mxu0
    %3295 = vmatprep.mubr.bf16.mxu0 0
    %3296 = vmatmul.mubr.bf16.gmra.mxu0 %v3164
    %v3297 = vpop.f32.mrf.mxu0
    %v3298 = vadd.f32 %v3137, %v3297
    %v3299 = vpop.f32.mrf.mxu0
    %v3300 = vpop.f32.mrf.mxu0
    %v3301 = vadd.f32 %v3140, %v3300
    %v3302 = vpop.f32.mrf.mxu0
    %3303 = vmatprep.mubr.bf16.mxu0 0
    %3304 = vmatmul.mubr.bf16.gmra.mxu0 %v3165
    %v3305 = vpop.f32.mrf.mxu0
    %v3306 = vadd.f32 %v3145, %v3305
    %v3307 = vpop.f32.mrf.mxu0
    %v3308 = vpop.f32.mrf.mxu0
    %v3309 = vadd.f32 %v3148, %v3308
    %v3310 = vpop.f32.mrf.mxu0
    %3311 = vmatprep.mubr.bf16.mxu0 0
    %3312 = vmatmul.mubr.bf16.gmra.mxu0 %v3166
    %v3313 = vpop.f32.mrf.mxu0
    %v3314 = vadd.f32 %v3153, %v3313
    %v3315 = vpop.f32.mrf.mxu0
    %v3316 = vpop.f32.mrf.mxu0
    %v3317 = vadd.f32 %v3156, %v3316
    %v3318 = vpop.f32.mrf.mxu0
    %3319 = vdwg.mxu0
    %v3320 = vrot.slane %v2709, 5
    %v3321 = vrot.slane %v3320, 4
    %v3322 = vrot.slane %v2710, 5
    %v3323 = vsel %vm865, %v3321, %v3322
    %v3324 = vrot.slane %v2711, 5
    %v3325 = vrot.slane %v3324, 4
    %v3326 = vrot.slane %v2712, 5
    %v3327 = vsel %vm865, %v3325, %v3326
    %v3328 = vrot.slane %v2713, 5
    %v3329 = vrot.slane %v3328, 4
    %v3330 = vrot.slane %v2714, 5
    %v3331 = vsel %vm865, %v3329, %v3330
    %v3332 = vrot.slane %v2715, 5
    %v3333 = vrot.slane %v3332, 4
    %v3334 = vrot.slane %v2716, 5
    %v3335 = vsel %vm865, %v3333, %v3334
    %v3336 = vrot.slane %v2717, 5
    %v3337 = vrot.slane %v3336, 4
    %v3338 = vrot.slane %v2718, 5
    %v3339 = vsel %vm865, %v3337, %v3338
    %v3340 = vrot.slane %v2719, 5
    %v3341 = vrot.slane %v3340, 4
    %v3342 = vrot.slane %v2720, 5
    %v3343 = vsel %vm865, %v3341, %v3342
    %v3344 = vrot.slane %v2721, 5
    %v3345 = vrot.slane %v3344, 4
    %v3346 = vrot.slane %v2722, 5
    %v3347 = vsel %vm865, %v3345, %v3346
    %v3348 = vrot.slane %v2723, 5
    %v3349 = vrot.slane %v3348, 4
    %v3350 = vrot.slane %v2724, 5
    %v3351 = vsel %vm865, %v3349, %v3350
    %v3352 = vrot.slane %v2725, 5
    %v3353 = vrot.slane %v3352, 4
    %v3354 = vrot.slane %v2726, 5
    %v3355 = vsel %vm865, %v3353, %v3354
    %v3356 = vrot.slane %v2727, 5
    %v3357 = vrot.slane %v3356, 4
    %v3358 = vrot.slane %v2728, 5
    %v3359 = vsel %vm865, %v3357, %v3358
    %v3360 = vrot.slane %v2729, 5
    %v3361 = vrot.slane %v3360, 4
    %v3362 = vrot.slane %v2730, 5
    %v3363 = vsel %vm865, %v3361, %v3362
    %v3364 = vrot.slane %v2731, 5
    %v3365 = vrot.slane %v3364, 4
    %v3366 = vrot.slane %v2732, 5
    %v3367 = vsel %vm865, %v3365, %v3366
    %v3368 = vrot.slane %v2733, 5
    %v3369 = vrot.slane %v3368, 4
    %v3370 = vrot.slane %v2734, 5
    %v3371 = vsel %vm865, %v3369, %v3370
    %v3372 = vrot.slane %v2735, 5
    %v3373 = vrot.slane %v3372, 4
    %v3374 = vrot.slane %v2736, 5
    %v3375 = vsel %vm865, %v3373, %v3374
    %v3376 = vrot.slane %v2737, 5
    %v3377 = vrot.slane %v3376, 4
    %v3378 = vrot.slane %v2738, 5
    %v3379 = vsel %vm865, %v3377, %v3378
    %v3380 = vrot.slane %v2739, 5
    %v3381 = vrot.slane %v3380, 4
    %v3382 = vrot.slane %v2740, 5
    %v3383 = vsel %vm865, %v3381, %v3382
    %s3384 = scalar_lea.vmem %s4, 128
    %v3385 = vld [vmem:[%s3384] sm:$0xf]
    %v3386 = vld [vmem:[%s3384 + $0x4] sm:$0xf]
    %v3387 = vld [vmem:[%s3384 + $0x8] sm:$0xf]
    %v3388 = vld [vmem:[%s3384 + $0xc] sm:$0xf]
    %v3389 = vld [vmem:[%s3384 + $0x10] sm:$0xf]
    %v3390 = vld [vmem:[%s3384 + $0x14] sm:$0xf]
    %v3391 = vld [vmem:[%s3384 + $0x18] sm:$0xf]
    %v3392 = vld [vmem:[%s3384 + $0x1c] sm:$0xf]
    %v3393 = vld [vmem:[%s3384 + $0x20] sm:$0xf]
    %v3394 = vld [vmem:[%s3384 + $0x24] sm:$0xf]
    %v3395 = vld [vmem:[%s3384 + $0x28] sm:$0xf]
    %v3396 = vld [vmem:[%s3384 + $0x2c] sm:$0xf]
    %v3397 = vld [vmem:[%s3384 + $0x30] sm:$0xf]
    %v3398 = vld [vmem:[%s3384 + $0x34] sm:$0xf]
    %v3399 = vld [vmem:[%s3384 + $0x38] sm:$0xf]
    %v3400 = vld [vmem:[%s3384 + $0x3c] sm:$0xf]
    %v3401 = vunpack.c.l.b16 %v3323
    %v3402 = vunpack.c.l.b16 %v3327
    %v3403 = vunpack.c.l.b16 %v3331
    %v3404 = vunpack.c.l.b16 %v3335
    %v3405 = vunpack.c.l.b16 %v3339
    %v3406 = vunpack.c.l.b16 %v3343
    %v3407 = vunpack.c.l.b16 %v3347
    %v3408 = vunpack.c.l.b16 %v3351
    %v3409 = vunpack.c.l.b16 %v3355
    %v3410 = vunpack.c.l.b16 %v3359
    %v3411 = vunpack.c.l.b16 %v3363
    %v3412 = vunpack.c.l.b16 %v3367
    %v3413 = vunpack.c.l.b16 %v3371
    %v3414 = vunpack.c.l.b16 %v3375
    %v3415 = vunpack.c.l.b16 %v3379
    %v3416 = vunpack.c.l.b16 %v3383
    %v3417 = vpack.c.b16 %v3402, %v3401
    %v3418 = vpack.c.b16 %v3404, %v3403
    %v3419 = vpack.c.b16 %v3406, %v3405
    %v3420 = vpack.c.b16 %v3408, %v3407
    %v3421 = vpack.c.b16 %v3410, %v3409
    %v3422 = vpack.c.b16 %v3412, %v3411
    %v3423 = vpack.c.b16 %v3414, %v3413
    %v3424 = vpack.c.b16 %v3416, %v3415
    %v3449 = vunpack.c.l.b16 %v3385
    %v3450 = vunpack.c.l.b16 %v3386
    %v3451 = vunpack.c.l.b16 %v3387
    %v3452 = vunpack.c.l.b16 %v3388
    %v3453 = vunpack.c.l.b16 %v3389
    %v3454 = vunpack.c.l.b16 %v3390
    %v3455 = vunpack.c.l.b16 %v3391
    %v3456 = vunpack.c.l.b16 %v3392
    %v3457 = vunpack.c.l.b16 %v3393
    %v3458 = vunpack.c.l.b16 %v3394
    %v3459 = vunpack.c.l.b16 %v3395
    %v3460 = vunpack.c.l.b16 %v3396
    %v3461 = vunpack.c.l.b16 %v3397
    %v3462 = vunpack.c.l.b16 %v3398
    %v3463 = vunpack.c.l.b16 %v3399
    %v3464 = vunpack.c.l.b16 %v3400
    %v3465 = vpack.c.b16 %v3450, %v3449
    %v3466 = vpack.c.b16 %v3452, %v3451
    %v3467 = vpack.c.b16 %v3454, %v3453
    %v3468 = vpack.c.b16 %v3456, %v3455
    %v3469 = vpack.c.b16 %v3458, %v3457
    %v3470 = vpack.c.b16 %v3460, %v3459
    %v3471 = vpack.c.b16 %v3462, %v3461
    %v3472 = vpack.c.b16 %v3464, %v3463
    %3481 = vmatprep.subr.bf16.mxu0 0
    %3482 = vmatpush1.bf16.msra.mxu0 %v3472
    %3483 = vmatprep.subr.bf16.mxu0 0
    %3484 = vmatpush1.bf16.msra.mxu0 %v3471
    %3485 = vmatprep.subr.bf16.mxu0 0
    %3486 = vmatpush1.bf16.msra.mxu0 %v3470
    %3487 = vmatprep.subr.bf16.mxu0 0
    %3488 = vmatpush1.bf16.msra.mxu0 %v3469
    %3489 = vmatprep.subr.bf16.mxu0 0
    %3490 = vmatpush1.bf16.msra.mxu0 %v3468
    %3491 = vmatprep.subr.bf16.mxu0 0
    %3492 = vmatpush1.bf16.msra.mxu0 %v3467
    %3493 = vmatprep.subr.bf16.mxu0 0
    %3494 = vmatpush1.bf16.msra.mxu0 %v3466
    %3495 = vmatprep.subr.bf16.mxu0 0
    %3496 = vmatpush1.bf16.msra.mxu0 %v3465
    %3497 = vmatprep.subr.bf16.mxu0 0
    %3498 = vmatpush2.bf16.msra.mxu0 0
    %3499 = vmatprep.subr.bf16.mxu0 0
    %3500 = vmatpush2.bf16.msra.mxu0 0
    %3501 = vmatprep.subr.bf16.mxu0 0
    %3502 = vmatpush2.bf16.msra.mxu0 0
    %3503 = vmatprep.subr.bf16.mxu0 0
    %3504 = vmatpush2.bf16.msra.mxu0 0
    %3505 = vmatprep.subr.bf16.mxu0 0
    %3506 = vmatpush2.bf16.msra.mxu0 0
    %3507 = vmatprep.subr.bf16.mxu0 0
    %3508 = vmatpush2.bf16.msra.mxu0 0
    %3509 = vmatprep.subr.bf16.mxu0 0
    %3510 = vmatpush2.bf16.msra.mxu0 0
    %3511 = vmatprep.subr.bf16.mxu0 0
    %3512 = vmatpush2.bf16.msra.mxu0 0
    %3513 = vmatprep.mubr.bf16.mxu0 0
    %3514 = vmatmul.mubr.bf16.gmra.mxu0 %v3417
    %v3515 = vpop.f32.mrf.mxu0
    %v3516 = vadd.f32 0.0, %v3515
    %v3517 = vpop.f32.mrf.mxu0
    %v3518 = vpop.f32.mrf.mxu0
    %v3519 = vadd.f32 0.0, %v3518
    %v3520 = vpop.f32.mrf.mxu0
    %3521 = vmatprep.mubr.bf16.mxu0 0
    %3522 = vmatmul.mubr.bf16.gmra.mxu0 %v3418
    %v3523 = vpop.f32.mrf.mxu0
    %v3524 = vadd.f32 0.0, %v3523
    %v3525 = vpop.f32.mrf.mxu0
    %v3526 = vpop.f32.mrf.mxu0
    %v3527 = vadd.f32 0.0, %v3526
    %v3528 = vpop.f32.mrf.mxu0
    %3529 = vmatprep.mubr.bf16.mxu0 0
    %3530 = vmatmul.mubr.bf16.gmra.mxu0 %v3419
    %v3531 = vpop.f32.mrf.mxu0
    %v3532 = vadd.f32 0.0, %v3531
    %v3533 = vpop.f32.mrf.mxu0
    %v3534 = vpop.f32.mrf.mxu0
    %v3535 = vadd.f32 0.0, %v3534
    %v3536 = vpop.f32.mrf.mxu0
    %3537 = vmatprep.mubr.bf16.mxu0 0
    %3538 = vmatmul.mubr.bf16.gmra.mxu0 %v3420
    %v3539 = vpop.f32.mrf.mxu0
    %v3540 = vadd.f32 0.0, %v3539
    %v3541 = vpop.f32.mrf.mxu0
    %v3542 = vpop.f32.mrf.mxu0
    %v3543 = vadd.f32 0.0, %v3542
    %v3544 = vpop.f32.mrf.mxu0
    %3545 = vmatprep.mubr.bf16.mxu0 0
    %3546 = vmatmul.mubr.bf16.gmra.mxu0 %v3421
    %v3547 = vpop.f32.mrf.mxu0
    %v3548 = vadd.f32 0.0, %v3547
    %v3549 = vpop.f32.mrf.mxu0
    %v3550 = vpop.f32.mrf.mxu0
    %v3551 = vadd.f32 0.0, %v3550
    %v3552 = vpop.f32.mrf.mxu0
    %3553 = vmatprep.mubr.bf16.mxu0 0
    %3554 = vmatmul.mubr.bf16.gmra.mxu0 %v3422
    %v3555 = vpop.f32.mrf.mxu0
    %v3556 = vadd.f32 0.0, %v3555
    %v3557 = vpop.f32.mrf.mxu0
    %v3558 = vpop.f32.mrf.mxu0
    %v3559 = vadd.f32 0.0, %v3558
    %v3560 = vpop.f32.mrf.mxu0
    %3561 = vmatprep.mubr.bf16.mxu0 0
    %3562 = vmatmul.mubr.bf16.gmra.mxu0 %v3423
    %v3563 = vpop.f32.mrf.mxu0
    %v3564 = vadd.f32 0.0, %v3563
    %v3565 = vpop.f32.mrf.mxu0
    %v3566 = vpop.f32.mrf.mxu0
    %v3567 = vadd.f32 0.0, %v3566
    %v3568 = vpop.f32.mrf.mxu0
    %3569 = vmatprep.mubr.bf16.mxu0 0
    %3570 = vmatmul.mubr.bf16.gmra.mxu0 %v3424
    %v3571 = vpop.f32.mrf.mxu0
    %v3572 = vadd.f32 0.0, %v3571
    %v3573 = vpop.f32.mrf.mxu0
    %v3574 = vpop.f32.mrf.mxu0
    %v3575 = vadd.f32 0.0, %v3574
    %v3576 = vpop.f32.mrf.mxu0
    %3577 = vdwg.mxu0
    %v3578 = vadd.f32 %v3258, %v3516
    %v3579 = vadd.f32 %v3261, %v3519
    %v3580 = vadd.f32 %v3266, %v3524
    %v3581 = vadd.f32 %v3269, %v3527
    %v3582 = vadd.f32 %v3274, %v3532
    %v3583 = vadd.f32 %v3277, %v3535
    %v3584 = vadd.f32 %v3282, %v3540
    %v3585 = vadd.f32 %v3285, %v3543
    %v3586 = vadd.f32 %v3290, %v3548
    %v3587 = vadd.f32 %v3293, %v3551
    %v3588 = vadd.f32 %v3298, %v3556
    %v3589 = vadd.f32 %v3301, %v3559
    %v3590 = vadd.f32 %v3306, %v3564
    %v3591 = vadd.f32 %v3309, %v3567
    %v3592 = vadd.f32 %v3314, %v3572
    %v3593 = vadd.f32 %v3317, %v3575
    %s3594 = scalar_lea.vmem %s4, 192
    %v3595 = vld [vmem:[%s3594] sm:$0xf]
    %v3596 = vld [vmem:[%s3594 + $0x4] sm:$0xf]
    %v3597 = vld [vmem:[%s3594 + $0x8] sm:$0xf]
    %v3598 = vld [vmem:[%s3594 + $0xc] sm:$0xf]
    %v3599 = vld [vmem:[%s3594 + $0x10] sm:$0xf]
    %v3600 = vld [vmem:[%s3594 + $0x14] sm:$0xf]
    %v3601 = vld [vmem:[%s3594 + $0x18] sm:$0xf]
    %v3602 = vld [vmem:[%s3594 + $0x1c] sm:$0xf]
    %v3603 = vld [vmem:[%s3594 + $0x20] sm:$0xf]
    %v3604 = vld [vmem:[%s3594 + $0x24] sm:$0xf]
    %v3605 = vld [vmem:[%s3594 + $0x28] sm:$0xf]
    %v3606 = vld [vmem:[%s3594 + $0x2c] sm:$0xf]
    %v3607 = vld [vmem:[%s3594 + $0x30] sm:$0xf]
    %v3608 = vld [vmem:[%s3594 + $0x34] sm:$0xf]
    %v3609 = vld [vmem:[%s3594 + $0x38] sm:$0xf]
    %v3610 = vld [vmem:[%s3594 + $0x3c] sm:$0xf]
    %v3613 = vunpack.c.l.b16 %v2633
    %v3614 = vunpack.c.l.b16 %v2643
    %v3615 = vpack.c.b16 %v2681, %v2679
    %v3616 = vpack.c.b16 %v2685, %v2683
    %v3617 = vpack.c.b16 %v2689, %v2687
    %v3618 = vpack.c.b16 %v3613, %v2691
    %v3619 = vpack.c.b16 %v2697, %v2695
    %v3620 = vpack.c.b16 %v2701, %v2699
    %v3621 = vpack.c.b16 %v2705, %v2703
    %v3622 = vpack.c.b16 %v3614, %v2707
    %v3647 = vunpack.c.l.b16 %v3595
    %v3648 = vunpack.c.l.b16 %v3596
    %v3649 = vunpack.c.l.b16 %v3597
    %v3650 = vunpack.c.l.b16 %v3598
    %v3651 = vunpack.c.l.b16 %v3599
    %v3652 = vunpack.c.l.b16 %v3600
    %v3653 = vunpack.c.l.b16 %v3601
    %v3654 = vunpack.c.l.b16 %v3602
    %v3655 = vunpack.c.l.b16 %v3603
    %v3656 = vunpack.c.l.b16 %v3604
    %v3657 = vunpack.c.l.b16 %v3605
    %v3658 = vunpack.c.l.b16 %v3606
    %v3659 = vunpack.c.l.b16 %v3607
    %v3660 = vunpack.c.l.b16 %v3608
    %v3661 = vunpack.c.l.b16 %v3609
    %v3662 = vunpack.c.l.b16 %v3610
    %v3663 = vpack.c.b16 %v3648, %v3647
    %v3664 = vpack.c.b16 %v3650, %v3649
    %v3665 = vpack.c.b16 %v3652, %v3651
    %v3666 = vpack.c.b16 %v3654, %v3653
    %v3667 = vpack.c.b16 %v3656, %v3655
    %v3668 = vpack.c.b16 %v3658, %v3657
    %v3669 = vpack.c.b16 %v3660, %v3659
    %v3670 = vpack.c.b16 %v3662, %v3661
    %3679 = vmatprep.subr.bf16.mxu0 0
    %3680 = vmatpush1.bf16.msra.mxu0 %v3670
    %3681 = vmatprep.subr.bf16.mxu0 0
    %3682 = vmatpush1.bf16.msra.mxu0 %v3669
    %3683 = vmatprep.subr.bf16.mxu0 0
    %3684 = vmatpush1.bf16.msra.mxu0 %v3668
    %3685 = vmatprep.subr.bf16.mxu0 0
    %3686 = vmatpush1.bf16.msra.mxu0 %v3667
    %3687 = vmatprep.subr.bf16.mxu0 0
    %3688 = vmatpush1.bf16.msra.mxu0 %v3666
    %3689 = vmatprep.subr.bf16.mxu0 0
    %3690 = vmatpush1.bf16.msra.mxu0 %v3665
    %3691 = vmatprep.subr.bf16.mxu0 0
    %3692 = vmatpush1.bf16.msra.mxu0 %v3664
    %3693 = vmatprep.subr.bf16.mxu0 0
    %3694 = vmatpush1.bf16.msra.mxu0 %v3663
    %3695 = vmatprep.subr.bf16.mxu0 0
    %3696 = vmatpush2.bf16.msra.mxu0 0
    %3697 = vmatprep.subr.bf16.mxu0 0
    %3698 = vmatpush2.bf16.msra.mxu0 0
    %3699 = vmatprep.subr.bf16.mxu0 0
    %3700 = vmatpush2.bf16.msra.mxu0 0
    %3701 = vmatprep.subr.bf16.mxu0 0
    %3702 = vmatpush2.bf16.msra.mxu0 0
    %3703 = vmatprep.subr.bf16.mxu0 0
    %3704 = vmatpush2.bf16.msra.mxu0 0
    %3705 = vmatprep.subr.bf16.mxu0 0
    %3706 = vmatpush2.bf16.msra.mxu0 0
    %3707 = vmatprep.subr.bf16.mxu0 0
    %3708 = vmatpush2.bf16.msra.mxu0 0
    %3709 = vmatprep.subr.bf16.mxu0 0
    %3710 = vmatpush2.bf16.msra.mxu0 0
    %3711 = vmatprep.mubr.bf16.mxu0 0
    %3712 = vmatmul.mubr.bf16.gmra.mxu0 %v3615
    %v3713 = vpop.f32.mrf.mxu0
    %v3714 = vadd.f32 0.0, %v3713
    %v3715 = vpop.f32.mrf.mxu0
    %v3716 = vpop.f32.mrf.mxu0
    %v3717 = vadd.f32 0.0, %v3716
    %v3718 = vpop.f32.mrf.mxu0
    %3719 = vmatprep.mubr.bf16.mxu0 0
    %3720 = vmatmul.mubr.bf16.gmra.mxu0 %v3616
    %v3721 = vpop.f32.mrf.mxu0
    %v3722 = vadd.f32 0.0, %v3721
    %v3723 = vpop.f32.mrf.mxu0
    %v3724 = vpop.f32.mrf.mxu0
    %v3725 = vadd.f32 0.0, %v3724
    %v3726 = vpop.f32.mrf.mxu0
    %3727 = vmatprep.mubr.bf16.mxu0 0
    %3728 = vmatmul.mubr.bf16.gmra.mxu0 %v3617
    %v3729 = vpop.f32.mrf.mxu0
    %v3730 = vadd.f32 0.0, %v3729
    %v3731 = vpop.f32.mrf.mxu0
    %v3732 = vpop.f32.mrf.mxu0
    %v3733 = vadd.f32 0.0, %v3732
    %v3734 = vpop.f32.mrf.mxu0
    %3735 = vmatprep.mubr.bf16.mxu0 0
    %3736 = vmatmul.mubr.bf16.gmra.mxu0 %v3618
    %v3737 = vpop.f32.mrf.mxu0
    %v3738 = vadd.f32 0.0, %v3737
    %v3739 = vpop.f32.mrf.mxu0
    %v3740 = vpop.f32.mrf.mxu0
    %v3741 = vadd.f32 0.0, %v3740
    %v3742 = vpop.f32.mrf.mxu0
    %3743 = vmatprep.mubr.bf16.mxu0 0
    %3744 = vmatmul.mubr.bf16.gmra.mxu0 %v3619
    %v3745 = vpop.f32.mrf.mxu0
    %v3746 = vadd.f32 0.0, %v3745
    %v3747 = vpop.f32.mrf.mxu0
    %v3748 = vpop.f32.mrf.mxu0
    %v3749 = vadd.f32 0.0, %v3748
    %v3750 = vpop.f32.mrf.mxu0
    %3751 = vmatprep.mubr.bf16.mxu0 0
    %3752 = vmatmul.mubr.bf16.gmra.mxu0 %v3620
    %v3753 = vpop.f32.mrf.mxu0
    %v3754 = vadd.f32 0.0, %v3753
    %v3755 = vpop.f32.mrf.mxu0
    %v3756 = vpop.f32.mrf.mxu0
    %v3757 = vadd.f32 0.0, %v3756
    %v3758 = vpop.f32.mrf.mxu0
    %3759 = vmatprep.mubr.bf16.mxu0 0
    %3760 = vmatmul.mubr.bf16.gmra.mxu0 %v3621
    %v3761 = vpop.f32.mrf.mxu0
    %v3762 = vadd.f32 0.0, %v3761
    %v3763 = vpop.f32.mrf.mxu0
    %v3764 = vpop.f32.mrf.mxu0
    %v3765 = vadd.f32 0.0, %v3764
    %v3766 = vpop.f32.mrf.mxu0
    %3767 = vmatprep.mubr.bf16.mxu0 0
    %3768 = vmatmul.mubr.bf16.gmra.mxu0 %v3622
    %v3769 = vpop.f32.mrf.mxu0
    %v3770 = vadd.f32 0.0, %v3769
    %v3771 = vpop.f32.mrf.mxu0
    %v3772 = vpop.f32.mrf.mxu0
    %v3773 = vadd.f32 0.0, %v3772
    %v3774 = vpop.f32.mrf.mxu0
    %3775 = vdwg.mxu0
    %v3776 = vadd.f32 %v3578, %v3714
    %v3777 = vadd.f32 %v3579, %v3717
    %v3778 = vadd.f32 %v3580, %v3722
    %v3779 = vadd.f32 %v3581, %v3725
    %v3780 = vadd.f32 %v3582, %v3730
    %v3781 = vadd.f32 %v3583, %v3733
    %v3782 = vadd.f32 %v3584, %v3738
    %v3783 = vadd.f32 %v3585, %v3741
    %v3784 = vadd.f32 %v3586, %v3746
    %v3785 = vadd.f32 %v3587, %v3749
    %v3786 = vadd.f32 %v3588, %v3754
    %v3787 = vadd.f32 %v3589, %v3757
    %v3788 = vadd.f32 %v3590, %v3762
    %v3789 = vadd.f32 %v3591, %v3765
    %v3790 = vadd.f32 %v3592, %v3770
    %v3791 = vadd.f32 %v3593, %v3773
    %v3792 = vunpack.c.h.b16 %v2633
    %v3793 = vunpack.c.h.b16 %v2643
    %v3794 = vpack.c.b16 %v3613, %v3613
    %v3795 = vpack.c.b16 %v3792, %v3792
    %v3796 = vpack.c.b16 %v3614, %v3614
    %v3797 = vpack.c.b16 %v3793, %v3793
    %v3799 = vshrl.u32 %v3794, 16
    %v3801 = vrot.slane %v3799, 4
    %v3802 = vshll.u32 %v3794, 16
    %v3804 = vrot.slane %v3802, 5
    %v3805 = vor.u32 %v3801, %v3804
    %v3806 = vrot.slane %v3805, 4
    %v3808 = vshll.u32 %v3795, 16
    %v3810 = vrot.slane %v3808, 5
    %v3811 = vsel %vm283, %v3806, %v3810
    %v3813 = vshrl.u32 %v3796, 16
    %v3815 = vrot.slane %v3813, 4
    %v3816 = vshll.u32 %v3796, 16
    %v3818 = vrot.slane %v3816, 5
    %v3819 = vor.u32 %v3815, %v3818
    %v3820 = vrot.slane %v3819, 4
    %v3822 = vshll.u32 %v3797, 16
    %v3824 = vrot.slane %v3822, 5
    %v3825 = vsel %vm283, %v3820, %v3824
    %s3826 = scalar_lea.vmem %s4, 256
    %v3827 = vld [vmem:[%s3826] sm:$0xf]
    %v3828 = vld [vmem:[%s3826 + $0x4] sm:$0xf]
    %v3829 = vld [vmem:[%s3826 + $0x8] sm:$0xf]
    %v3830 = vld [vmem:[%s3826 + $0xc] sm:$0xf]
    %v3831 = vld [vmem:[%s3826 + $0x10] sm:$0xf]
    %v3832 = vld [vmem:[%s3826 + $0x14] sm:$0xf]
    %v3833 = vld [vmem:[%s3826 + $0x18] sm:$0xf]
    %v3834 = vld [vmem:[%s3826 + $0x1c] sm:$0xf]
    %v3835 = vld [vmem:[%s3826 + $0x20] sm:$0xf]
    %v3836 = vld [vmem:[%s3826 + $0x24] sm:$0xf]
    %v3837 = vld [vmem:[%s3826 + $0x28] sm:$0xf]
    %v3838 = vld [vmem:[%s3826 + $0x2c] sm:$0xf]
    %v3839 = vld [vmem:[%s3826 + $0x30] sm:$0xf]
    %v3840 = vld [vmem:[%s3826 + $0x34] sm:$0xf]
    %v3841 = vld [vmem:[%s3826 + $0x38] sm:$0xf]
    %v3842 = vld [vmem:[%s3826 + $0x3c] sm:$0xf]
    %v3843 = vunpack.c.l.b16 %v3811
    %v3844 = vunpack.c.l.b16 %v3825
    %v3845 = vpack.c.b16 %v2984, %v2983
    %v3846 = vpack.c.b16 %v2986, %v2985
    %v3847 = vpack.c.b16 %v2988, %v2987
    %v3848 = vpack.c.b16 %v3843, %v2989
    %v3849 = vpack.c.b16 %v2992, %v2991
    %v3850 = vpack.c.b16 %v2994, %v2993
    %v3851 = vpack.c.b16 %v2996, %v2995
    %v3852 = vpack.c.b16 %v3844, %v2997
    %v3877 = vunpack.c.l.b16 %v3827
    %v3878 = vunpack.c.l.b16 %v3828
    %v3879 = vunpack.c.l.b16 %v3829
    %v3880 = vunpack.c.l.b16 %v3830
    %v3881 = vunpack.c.l.b16 %v3831
    %v3882 = vunpack.c.l.b16 %v3832
    %v3883 = vunpack.c.l.b16 %v3833
    %v3884 = vunpack.c.l.b16 %v3834
    %v3885 = vunpack.c.l.b16 %v3835
    %v3886 = vunpack.c.l.b16 %v3836
    %v3887 = vunpack.c.l.b16 %v3837
    %v3888 = vunpack.c.l.b16 %v3838
    %v3889 = vunpack.c.l.b16 %v3839
    %v3890 = vunpack.c.l.b16 %v3840
    %v3891 = vunpack.c.l.b16 %v3841
    %v3892 = vunpack.c.l.b16 %v3842
    %v3893 = vpack.c.b16 %v3878, %v3877
    %v3894 = vpack.c.b16 %v3880, %v3879
    %v3895 = vpack.c.b16 %v3882, %v3881
    %v3896 = vpack.c.b16 %v3884, %v3883
    %v3897 = vpack.c.b16 %v3886, %v3885
    %v3898 = vpack.c.b16 %v3888, %v3887
    %v3899 = vpack.c.b16 %v3890, %v3889
    %v3900 = vpack.c.b16 %v3892, %v3891
    %3909 = vmatprep.subr.bf16.mxu0 0
    %3910 = vmatpush1.bf16.msra.mxu0 %v3900
    %3911 = vmatprep.subr.bf16.mxu0 0
    %3912 = vmatpush1.bf16.msra.mxu0 %v3899
    %3913 = vmatprep.subr.bf16.mxu0 0
    %3914 = vmatpush1.bf16.msra.mxu0 %v3898
    %3915 = vmatprep.subr.bf16.mxu0 0
    %3916 = vmatpush1.bf16.msra.mxu0 %v3897
    %3917 = vmatprep.subr.bf16.mxu0 0
    %3918 = vmatpush1.bf16.msra.mxu0 %v3896
    %3919 = vmatprep.subr.bf16.mxu0 0
    %3920 = vmatpush1.bf16.msra.mxu0 %v3895
    %3921 = vmatprep.subr.bf16.mxu0 0
    %3922 = vmatpush1.bf16.msra.mxu0 %v3894
    %3923 = vmatprep.subr.bf16.mxu0 0
    %3924 = vmatpush1.bf16.msra.mxu0 %v3893
    %3925 = vmatprep.subr.bf16.mxu0 0
    %3926 = vmatpush2.bf16.msra.mxu0 0
    %3927 = vmatprep.subr.bf16.mxu0 0
    %3928 = vmatpush2.bf16.msra.mxu0 0
    %3929 = vmatprep.subr.bf16.mxu0 0
    %3930 = vmatpush2.bf16.msra.mxu0 0
    %3931 = vmatprep.subr.bf16.mxu0 0
    %3932 = vmatpush2.bf16.msra.mxu0 0
    %3933 = vmatprep.subr.bf16.mxu0 0
    %3934 = vmatpush2.bf16.msra.mxu0 0
    %3935 = vmatprep.subr.bf16.mxu0 0
    %3936 = vmatpush2.bf16.msra.mxu0 0
    %3937 = vmatprep.subr.bf16.mxu0 0
    %3938 = vmatpush2.bf16.msra.mxu0 0
    %3939 = vmatprep.subr.bf16.mxu0 0
    %3940 = vmatpush2.bf16.msra.mxu0 0
    %3941 = vmatprep.mubr.bf16.mxu0 0
    %3942 = vmatmul.mubr.bf16.gmra.mxu0 %v3845
    %v3943 = vpop.f32.mrf.mxu0
    %v3944 = vadd.f32 0.0, %v3943
    %v3945 = vpop.f32.mrf.mxu0
    %v3946 = vpop.f32.mrf.mxu0
    %v3947 = vadd.f32 0.0, %v3946
    %v3948 = vpop.f32.mrf.mxu0
    %3949 = vmatprep.mubr.bf16.mxu0 0
    %3950 = vmatmul.mubr.bf16.gmra.mxu0 %v3846
    %v3951 = vpop.f32.mrf.mxu0
    %v3952 = vadd.f32 0.0, %v3951
    %v3953 = vpop.f32.mrf.mxu0
    %v3954 = vpop.f32.mrf.mxu0
    %v3955 = vadd.f32 0.0, %v3954
    %v3956 = vpop.f32.mrf.mxu0
    %3957 = vmatprep.mubr.bf16.mxu0 0
    %3958 = vmatmul.mubr.bf16.gmra.mxu0 %v3847
    %v3959 = vpop.f32.mrf.mxu0
    %v3960 = vadd.f32 0.0, %v3959
    %v3961 = vpop.f32.mrf.mxu0
    %v3962 = vpop.f32.mrf.mxu0
    %v3963 = vadd.f32 0.0, %v3962
    %v3964 = vpop.f32.mrf.mxu0
    %3965 = vmatprep.mubr.bf16.mxu0 0
    %3966 = vmatmul.mubr.bf16.gmra.mxu0 %v3848
    %v3967 = vpop.f32.mrf.mxu0
    %v3968 = vadd.f32 0.0, %v3967
    %v3969 = vpop.f32.mrf.mxu0
    %v3970 = vpop.f32.mrf.mxu0
    %v3971 = vadd.f32 0.0, %v3970
    %v3972 = vpop.f32.mrf.mxu0
    %3973 = vmatprep.mubr.bf16.mxu0 0
    %3974 = vmatmul.mubr.bf16.gmra.mxu0 %v3849
    %v3975 = vpop.f32.mrf.mxu0
    %v3976 = vadd.f32 0.0, %v3975
    %v3977 = vpop.f32.mrf.mxu0
    %v3978 = vpop.f32.mrf.mxu0
    %v3979 = vadd.f32 0.0, %v3978
    %v3980 = vpop.f32.mrf.mxu0
    %3981 = vmatprep.mubr.bf16.mxu0 0
    %3982 = vmatmul.mubr.bf16.gmra.mxu0 %v3850
    %v3983 = vpop.f32.mrf.mxu0
    %v3984 = vadd.f32 0.0, %v3983
    %v3985 = vpop.f32.mrf.mxu0
    %v3986 = vpop.f32.mrf.mxu0
    %v3987 = vadd.f32 0.0, %v3986
    %v3988 = vpop.f32.mrf.mxu0
    %3989 = vmatprep.mubr.bf16.mxu0 0
    %3990 = vmatmul.mubr.bf16.gmra.mxu0 %v3851
    %v3991 = vpop.f32.mrf.mxu0
    %v3992 = vadd.f32 0.0, %v3991
    %v3993 = vpop.f32.mrf.mxu0
    %v3994 = vpop.f32.mrf.mxu0
    %v3995 = vadd.f32 0.0, %v3994
    %v3996 = vpop.f32.mrf.mxu0
    %3997 = vmatprep.mubr.bf16.mxu0 0
    %3998 = vmatmul.mubr.bf16.gmra.mxu0 %v3852
    %v3999 = vpop.f32.mrf.mxu0
    %v4000 = vadd.f32 0.0, %v3999
    %v4001 = vpop.f32.mrf.mxu0
    %v4002 = vpop.f32.mrf.mxu0
    %v4003 = vadd.f32 0.0, %v4002
    %v4004 = vpop.f32.mrf.mxu0
    %4005 = vdwg.mxu0
    %v4006 = vadd.f32 %v3776, %v3944
    %v4007 = vadd.f32 %v3777, %v3947
    %v4008 = vadd.f32 %v3778, %v3952
    %v4009 = vadd.f32 %v3779, %v3955
    %v4010 = vadd.f32 %v3780, %v3960
    %v4011 = vadd.f32 %v3781, %v3963
    %v4012 = vadd.f32 %v3782, %v3968
    %v4013 = vadd.f32 %v3783, %v3971
    %v4014 = vadd.f32 %v3784, %v3976
    %v4015 = vadd.f32 %v3785, %v3979
    %v4016 = vadd.f32 %v3786, %v3984
    %v4017 = vadd.f32 %v3787, %v3987
    %v4018 = vadd.f32 %v3788, %v3992
    %v4019 = vadd.f32 %v3789, %v3995
    %v4020 = vadd.f32 %v3790, %v4000
    %v4021 = vadd.f32 %v3791, %v4003
    %v4022 = vrot.slane %v3794, 5
    %v4023 = vrot.slane %v4022, 4
    %v4024 = vrot.slane %v3795, 5
    %v4025 = vsel %vm865, %v4023, %v4024
    %v4026 = vrot.slane %v3796, 5
    %v4027 = vrot.slane %v4026, 4
    %v4028 = vrot.slane %v3797, 5
    %v4029 = vsel %vm865, %v4027, %v4028
    %s4030 = scalar_lea.vmem %s4, 320
    %v4031 = vld [vmem:[%s4030] sm:$0xf]
    %v4032 = vld [vmem:[%s4030 + $0x4] sm:$0xf]
    %v4033 = vld [vmem:[%s4030 + $0x8] sm:$0xf]
    %v4034 = vld [vmem:[%s4030 + $0xc] sm:$0xf]
    %v4035 = vld [vmem:[%s4030 + $0x10] sm:$0xf]
    %v4036 = vld [vmem:[%s4030 + $0x14] sm:$0xf]
    %v4037 = vld [vmem:[%s4030 + $0x18] sm:$0xf]
    %v4038 = vld [vmem:[%s4030 + $0x1c] sm:$0xf]
    %v4039 = vld [vmem:[%s4030 + $0x20] sm:$0xf]
    %v4040 = vld [vmem:[%s4030 + $0x24] sm:$0xf]
    %v4041 = vld [vmem:[%s4030 + $0x28] sm:$0xf]
    %v4042 = vld [vmem:[%s4030 + $0x2c] sm:$0xf]
    %v4043 = vld [vmem:[%s4030 + $0x30] sm:$0xf]
    %v4044 = vld [vmem:[%s4030 + $0x34] sm:$0xf]
    %v4045 = vld [vmem:[%s4030 + $0x38] sm:$0xf]
    %v4046 = vld [vmem:[%s4030 + $0x3c] sm:$0xf]
    %v4047 = vunpack.c.l.b16 %v4025
    %v4048 = vunpack.c.l.b16 %v4029
    %v4049 = vpack.c.b16 %v3403, %v3402
    %v4050 = vpack.c.b16 %v3405, %v3404
    %v4051 = vpack.c.b16 %v3407, %v3406
    %v4052 = vpack.c.b16 %v4047, %v3408
    %v4053 = vpack.c.b16 %v3411, %v3410
    %v4054 = vpack.c.b16 %v3413, %v3412
    %v4055 = vpack.c.b16 %v3415, %v3414
    %v4056 = vpack.c.b16 %v4048, %v3416
    %v4081 = vunpack.c.l.b16 %v4031
    %v4082 = vunpack.c.l.b16 %v4032
    %v4083 = vunpack.c.l.b16 %v4033
    %v4084 = vunpack.c.l.b16 %v4034
    %v4085 = vunpack.c.l.b16 %v4035
    %v4086 = vunpack.c.l.b16 %v4036
    %v4087 = vunpack.c.l.b16 %v4037
    %v4088 = vunpack.c.l.b16 %v4038
    %v4089 = vunpack.c.l.b16 %v4039
    %v4090 = vunpack.c.l.b16 %v4040
    %v4091 = vunpack.c.l.b16 %v4041
    %v4092 = vunpack.c.l.b16 %v4042
    %v4093 = vunpack.c.l.b16 %v4043
    %v4094 = vunpack.c.l.b16 %v4044
    %v4095 = vunpack.c.l.b16 %v4045
    %v4096 = vunpack.c.l.b16 %v4046
    %v4097 = vpack.c.b16 %v4082, %v4081
    %v4098 = vpack.c.b16 %v4084, %v4083
    %v4099 = vpack.c.b16 %v4086, %v4085
    %v4100 = vpack.c.b16 %v4088, %v4087
    %v4101 = vpack.c.b16 %v4090, %v4089
    %v4102 = vpack.c.b16 %v4092, %v4091
    %v4103 = vpack.c.b16 %v4094, %v4093
    %v4104 = vpack.c.b16 %v4096, %v4095
    %4113 = vmatprep.subr.bf16.mxu0 0
    %4114 = vmatpush1.bf16.msra.mxu0 %v4104
    %4115 = vmatprep.subr.bf16.mxu0 0
    %4116 = vmatpush1.bf16.msra.mxu0 %v4103
    %4117 = vmatprep.subr.bf16.mxu0 0
    %4118 = vmatpush1.bf16.msra.mxu0 %v4102
    %4119 = vmatprep.subr.bf16.mxu0 0
    %4120 = vmatpush1.bf16.msra.mxu0 %v4101
    %4121 = vmatprep.subr.bf16.mxu0 0
    %4122 = vmatpush1.bf16.msra.mxu0 %v4100
    %4123 = vmatprep.subr.bf16.mxu0 0
    %4124 = vmatpush1.bf16.msra.mxu0 %v4099
    %4125 = vmatprep.subr.bf16.mxu0 0
    %4126 = vmatpush1.bf16.msra.mxu0 %v4098
    %4127 = vmatprep.subr.bf16.mxu0 0
    %4128 = vmatpush1.bf16.msra.mxu0 %v4097
    %4129 = vmatprep.subr.bf16.mxu0 0
    %4130 = vmatpush2.bf16.msra.mxu0 0
    %4131 = vmatprep.subr.bf16.mxu0 0
    %4132 = vmatpush2.bf16.msra.mxu0 0
    %4133 = vmatprep.subr.bf16.mxu0 0
    %4134 = vmatpush2.bf16.msra.mxu0 0
    %4135 = vmatprep.subr.bf16.mxu0 0
    %4136 = vmatpush2.bf16.msra.mxu0 0
    %4137 = vmatprep.subr.bf16.mxu0 0
    %4138 = vmatpush2.bf16.msra.mxu0 0
    %4139 = vmatprep.subr.bf16.mxu0 0
    %4140 = vmatpush2.bf16.msra.mxu0 0
    %4141 = vmatprep.subr.bf16.mxu0 0
    %4142 = vmatpush2.bf16.msra.mxu0 0
    %4143 = vmatprep.subr.bf16.mxu0 0
    %4144 = vmatpush2.bf16.msra.mxu0 0
    %4145 = vmatprep.mubr.bf16.mxu0 0
    %4146 = vmatmul.mubr.bf16.gmra.mxu0 %v4049
    %v4147 = vpop.f32.mrf.mxu0
    %v4148 = vadd.f32 0.0, %v4147
    %v4149 = vpop.f32.mrf.mxu0
    %v4150 = vpop.f32.mrf.mxu0
    %v4151 = vadd.f32 0.0, %v4150
    %v4152 = vpop.f32.mrf.mxu0
    %4153 = vmatprep.mubr.bf16.mxu0 0
    %4154 = vmatmul.mubr.bf16.gmra.mxu0 %v4050
    %v4155 = vpop.f32.mrf.mxu0
    %v4156 = vadd.f32 0.0, %v4155
    %v4157 = vpop.f32.mrf.mxu0
    %v4158 = vpop.f32.mrf.mxu0
    %v4159 = vadd.f32 0.0, %v4158
    %v4160 = vpop.f32.mrf.mxu0
    %4161 = vmatprep.mubr.bf16.mxu0 0
    %4162 = vmatmul.mubr.bf16.gmra.mxu0 %v4051
    %v4163 = vpop.f32.mrf.mxu0
    %v4164 = vadd.f32 0.0, %v4163
    %v4165 = vpop.f32.mrf.mxu0
    %v4166 = vpop.f32.mrf.mxu0
    %v4167 = vadd.f32 0.0, %v4166
    %v4168 = vpop.f32.mrf.mxu0
    %4169 = vmatprep.mubr.bf16.mxu0 0
    %4170 = vmatmul.mubr.bf16.gmra.mxu0 %v4052
    %v4171 = vpop.f32.mrf.mxu0
    %v4172 = vadd.f32 0.0, %v4171
    %v4173 = vpop.f32.mrf.mxu0
    %v4174 = vpop.f32.mrf.mxu0
    %v4175 = vadd.f32 0.0, %v4174
    %v4176 = vpop.f32.mrf.mxu0
    %4177 = vmatprep.mubr.bf16.mxu0 0
    %4178 = vmatmul.mubr.bf16.gmra.mxu0 %v4053
    %v4179 = vpop.f32.mrf.mxu0
    %v4180 = vadd.f32 0.0, %v4179
    %v4181 = vpop.f32.mrf.mxu0
    %v4182 = vpop.f32.mrf.mxu0
    %v4183 = vadd.f32 0.0, %v4182
    %v4184 = vpop.f32.mrf.mxu0
    %4185 = vmatprep.mubr.bf16.mxu0 0
    %4186 = vmatmul.mubr.bf16.gmra.mxu0 %v4054
    %v4187 = vpop.f32.mrf.mxu0
    %v4188 = vadd.f32 0.0, %v4187
    %v4189 = vpop.f32.mrf.mxu0
    %v4190 = vpop.f32.mrf.mxu0
    %v4191 = vadd.f32 0.0, %v4190
    %v4192 = vpop.f32.mrf.mxu0
    %4193 = vmatprep.mubr.bf16.mxu0 0
    %4194 = vmatmul.mubr.bf16.gmra.mxu0 %v4055
    %v4195 = vpop.f32.mrf.mxu0
    %v4196 = vadd.f32 0.0, %v4195
    %v4197 = vpop.f32.mrf.mxu0
    %v4198 = vpop.f32.mrf.mxu0
    %v4199 = vadd.f32 0.0, %v4198
    %v4200 = vpop.f32.mrf.mxu0
    %4201 = vmatprep.mubr.bf16.mxu0 0
    %4202 = vmatmul.mubr.bf16.gmra.mxu0 %v4056
    %v4203 = vpop.f32.mrf.mxu0
    %v4204 = vadd.f32 0.0, %v4203
    %v4205 = vpop.f32.mrf.mxu0
    %v4206 = vpop.f32.mrf.mxu0
    %v4207 = vadd.f32 0.0, %v4206
    %v4208 = vpop.f32.mrf.mxu0
    %4209 = vdwg.mxu0
    %v4210 = vadd.f32 %v4006, %v4148
    %v4211 = vadd.f32 %v4007, %v4151
    %v4212 = vadd.f32 %v4008, %v4156
    %v4213 = vadd.f32 %v4009, %v4159
    %v4214 = vadd.f32 %v4010, %v4164
    %v4215 = vadd.f32 %v4011, %v4167
    %v4216 = vadd.f32 %v4012, %v4172
    %v4217 = vadd.f32 %v4013, %v4175
    %v4218 = vadd.f32 %v4014, %v4180
    %v4219 = vadd.f32 %v4015, %v4183
    %v4220 = vadd.f32 %v4016, %v4188
    %v4221 = vadd.f32 %v4017, %v4191
    %v4222 = vadd.f32 %v4018, %v4196
    %v4223 = vadd.f32 %v4019, %v4199
    %v4224 = vadd.f32 %v4020, %v4204
    %v4225 = vadd.f32 %v4021, %v4207
    %s4226 = scalar_lea.vmem %s4, 384
    %v4227 = vld [vmem:[%s4226] sm:$0xf]
    %v4228 = vld [vmem:[%s4226 + $0x4] sm:$0xf]
    %v4229 = vld [vmem:[%s4226 + $0x8] sm:$0xf]
    %v4230 = vld [vmem:[%s4226 + $0xc] sm:$0xf]
    %v4231 = vld [vmem:[%s4226 + $0x10] sm:$0xf]
    %v4232 = vld [vmem:[%s4226 + $0x14] sm:$0xf]
    %v4233 = vld [vmem:[%s4226 + $0x18] sm:$0xf]
    %v4234 = vld [vmem:[%s4226 + $0x1c] sm:$0xf]
    %v4235 = vld [vmem:[%s4226 + $0x20] sm:$0xf]
    %v4236 = vld [vmem:[%s4226 + $0x24] sm:$0xf]
    %v4237 = vld [vmem:[%s4226 + $0x28] sm:$0xf]
    %v4238 = vld [vmem:[%s4226 + $0x2c] sm:$0xf]
    %v4239 = vld [vmem:[%s4226 + $0x30] sm:$0xf]
    %v4240 = vld [vmem:[%s4226 + $0x34] sm:$0xf]
    %v4241 = vld [vmem:[%s4226 + $0x38] sm:$0xf]
    %v4242 = vld [vmem:[%s4226 + $0x3c] sm:$0xf]
    %v4245 = vunpack.c.l.b16 %v2634
    %v4246 = vunpack.c.l.b16 %v2644
    %v4247 = vpack.c.b16 %v4245, %v3613
    %v4248 = vpack.c.b16 %v4246, %v3614
    %v4267 = vunpack.c.l.b16 %v4227
    %v4268 = vunpack.c.l.b16 %v4228
    %v4269 = vunpack.c.l.b16 %v4229
    %v4270 = vunpack.c.l.b16 %v4230
    %v4271 = vunpack.c.l.b16 %v4231
    %v4272 = vunpack.c.l.b16 %v4232
    %v4273 = vunpack.c.l.b16 %v4233
    %v4274 = vunpack.c.l.b16 %v4234
    %v4275 = vunpack.c.l.b16 %v4235
    %v4276 = vunpack.c.l.b16 %v4236
    %v4277 = vunpack.c.l.b16 %v4237
    %v4278 = vunpack.c.l.b16 %v4238
    %v4279 = vunpack.c.l.b16 %v4239
    %v4280 = vunpack.c.l.b16 %v4240
    %v4281 = vunpack.c.l.b16 %v4241
    %v4282 = vunpack.c.l.b16 %v4242
    %v4283 = vpack.c.b16 %v4268, %v4267
    %v4284 = vpack.c.b16 %v4270, %v4269
    %v4285 = vpack.c.b16 %v4272, %v4271
    %v4286 = vpack.c.b16 %v4274, %v4273
    %v4287 = vpack.c.b16 %v4276, %v4275
    %v4288 = vpack.c.b16 %v4278, %v4277
    %v4289 = vpack.c.b16 %v4280, %v4279
    %v4290 = vpack.c.b16 %v4282, %v4281
    %4299 = vmatprep.subr.bf16.mxu0 0
    %4300 = vmatpush1.bf16.msra.mxu0 %v4290
    %4301 = vmatprep.subr.bf16.mxu0 0
    %4302 = vmatpush1.bf16.msra.mxu0 %v4289
    %4303 = vmatprep.subr.bf16.mxu0 0
    %4304 = vmatpush1.bf16.msra.mxu0 %v4288
    %4305 = vmatprep.subr.bf16.mxu0 0
    %4306 = vmatpush1.bf16.msra.mxu0 %v4287
    %4307 = vmatprep.subr.bf16.mxu0 0
    %4308 = vmatpush1.bf16.msra.mxu0 %v4286
    %4309 = vmatprep.subr.bf16.mxu0 0
    %4310 = vmatpush1.bf16.msra.mxu0 %v4285
    %4311 = vmatprep.subr.bf16.mxu0 0
    %4312 = vmatpush1.bf16.msra.mxu0 %v4284
    %4313 = vmatprep.subr.bf16.mxu0 0
    %4314 = vmatpush1.bf16.msra.mxu0 %v4283
    %4315 = vmatprep.subr.bf16.mxu0 0
    %4316 = vmatpush2.bf16.msra.mxu0 0
    %4317 = vmatprep.subr.bf16.mxu0 0
    %4318 = vmatpush2.bf16.msra.mxu0 0
    %4319 = vmatprep.subr.bf16.mxu0 0
    %4320 = vmatpush2.bf16.msra.mxu0 0
    %4321 = vmatprep.subr.bf16.mxu0 0
    %4322 = vmatpush2.bf16.msra.mxu0 0
    %4323 = vmatprep.subr.bf16.mxu0 0
    %4324 = vmatpush2.bf16.msra.mxu0 0
    %4325 = vmatprep.subr.bf16.mxu0 0
    %4326 = vmatpush2.bf16.msra.mxu0 0
    %4327 = vmatprep.subr.bf16.mxu0 0
    %4328 = vmatpush2.bf16.msra.mxu0 0
    %4329 = vmatprep.subr.bf16.mxu0 0
    %4330 = vmatpush2.bf16.msra.mxu0 0
    %4331 = vmatprep.mubr.bf16.mxu0 0
    %4332 = vmatmul.mubr.bf16.gmra.mxu0 %v3160
    %v4333 = vpop.f32.mrf.mxu0
    %v4334 = vadd.f32 0.0, %v4333
    %v4335 = vpop.f32.mrf.mxu0
    %v4336 = vpop.f32.mrf.mxu0
    %v4337 = vadd.f32 0.0, %v4336
    %v4338 = vpop.f32.mrf.mxu0
    %4339 = vmatprep.mubr.bf16.mxu0 0
    %4340 = vmatmul.mubr.bf16.gmra.mxu0 %v3161
    %v4341 = vpop.f32.mrf.mxu0
    %v4342 = vadd.f32 0.0, %v4341
    %v4343 = vpop.f32.mrf.mxu0
    %v4344 = vpop.f32.mrf.mxu0
    %v4345 = vadd.f32 0.0, %v4344
    %v4346 = vpop.f32.mrf.mxu0
    %4347 = vmatprep.mubr.bf16.mxu0 0
    %4348 = vmatmul.mubr.bf16.gmra.mxu0 %v3162
    %v4349 = vpop.f32.mrf.mxu0
    %v4350 = vadd.f32 0.0, %v4349
    %v4351 = vpop.f32.mrf.mxu0
    %v4352 = vpop.f32.mrf.mxu0
    %v4353 = vadd.f32 0.0, %v4352
    %v4354 = vpop.f32.mrf.mxu0
    %4355 = vmatprep.mubr.bf16.mxu0 0
    %4356 = vmatmul.mubr.bf16.gmra.mxu0 %v4247
    %v4357 = vpop.f32.mrf.mxu0
    %v4358 = vadd.f32 0.0, %v4357
    %v4359 = vpop.f32.mrf.mxu0
    %v4360 = vpop.f32.mrf.mxu0
    %v4361 = vadd.f32 0.0, %v4360
    %v4362 = vpop.f32.mrf.mxu0
    %4363 = vmatprep.mubr.bf16.mxu0 0
    %4364 = vmatmul.mubr.bf16.gmra.mxu0 %v3164
    %v4365 = vpop.f32.mrf.mxu0
    %v4366 = vadd.f32 0.0, %v4365
    %v4367 = vpop.f32.mrf.mxu0
    %v4368 = vpop.f32.mrf.mxu0
    %v4369 = vadd.f32 0.0, %v4368
    %v4370 = vpop.f32.mrf.mxu0
    %4371 = vmatprep.mubr.bf16.mxu0 0
    %4372 = vmatmul.mubr.bf16.gmra.mxu0 %v3165
    %v4373 = vpop.f32.mrf.mxu0
    %v4374 = vadd.f32 0.0, %v4373
    %v4375 = vpop.f32.mrf.mxu0
    %v4376 = vpop.f32.mrf.mxu0
    %v4377 = vadd.f32 0.0, %v4376
    %v4378 = vpop.f32.mrf.mxu0
    %4379 = vmatprep.mubr.bf16.mxu0 0
    %4380 = vmatmul.mubr.bf16.gmra.mxu0 %v3166
    %v4381 = vpop.f32.mrf.mxu0
    %v4382 = vadd.f32 0.0, %v4381
    %v4383 = vpop.f32.mrf.mxu0
    %v4384 = vpop.f32.mrf.mxu0
    %v4385 = vadd.f32 0.0, %v4384
    %v4386 = vpop.f32.mrf.mxu0
    %4387 = vmatprep.mubr.bf16.mxu0 0
    %4388 = vmatmul.mubr.bf16.gmra.mxu0 %v4248
    %v4389 = vpop.f32.mrf.mxu0
    %v4390 = vadd.f32 0.0, %v4389
    %v4391 = vpop.f32.mrf.mxu0
    %v4392 = vpop.f32.mrf.mxu0
    %v4393 = vadd.f32 0.0, %v4392
    %v4394 = vpop.f32.mrf.mxu0
    %4395 = vdwg.mxu0
    %v4396 = vadd.f32 %v4210, %v4334
    %v4397 = vadd.f32 %v4211, %v4337
    %v4398 = vadd.f32 %v4212, %v4342
    %v4399 = vadd.f32 %v4213, %v4345
    %v4400 = vadd.f32 %v4214, %v4350
    %v4401 = vadd.f32 %v4215, %v4353
    %v4402 = vadd.f32 %v4216, %v4358
    %v4403 = vadd.f32 %v4217, %v4361
    %v4404 = vadd.f32 %v4218, %v4366
    %v4405 = vadd.f32 %v4219, %v4369
    %v4406 = vadd.f32 %v4220, %v4374
    %v4407 = vadd.f32 %v4221, %v4377
    %v4408 = vadd.f32 %v4222, %v4382
    %v4409 = vadd.f32 %v4223, %v4385
    %v4410 = vadd.f32 %v4224, %v4390
    %v4411 = vadd.f32 %v4225, %v4393
    %v4412 = vunpack.c.h.b16 %v2634
    %v4413 = vunpack.c.h.b16 %v2644
    %v4414 = vpack.c.b16 %v4245, %v4245
    %v4415 = vpack.c.b16 %v4412, %v4412
    %v4416 = vpack.c.b16 %v4246, %v4246
    %v4417 = vpack.c.b16 %v4413, %v4413
    %v4419 = vshrl.u32 %v4414, 16
    %v4421 = vrot.slane %v4419, 4
    %v4422 = vshll.u32 %v4414, 16
    %v4424 = vrot.slane %v4422, 5
    %v4425 = vor.u32 %v4421, %v4424
    %v4426 = vrot.slane %v4425, 4
    %v4428 = vshll.u32 %v4415, 16
    %v4430 = vrot.slane %v4428, 5
    %v4431 = vsel %vm283, %v4426, %v4430
    %v4433 = vshrl.u32 %v4416, 16
    %v4435 = vrot.slane %v4433, 4
    %v4436 = vshll.u32 %v4416, 16
    %v4438 = vrot.slane %v4436, 5
    %v4439 = vor.u32 %v4435, %v4438
    %v4440 = vrot.slane %v4439, 4
    %v4442 = vshll.u32 %v4417, 16
    %v4444 = vrot.slane %v4442, 5
    %v4445 = vsel %vm283, %v4440, %v4444
    %s4446 = scalar_lea.vmem %s4, 448
    %v4447 = vld [vmem:[%s4446] sm:$0xf]
    %v4448 = vld [vmem:[%s4446 + $0x4] sm:$0xf]
    %v4449 = vld [vmem:[%s4446 + $0x8] sm:$0xf]
    %v4450 = vld [vmem:[%s4446 + $0xc] sm:$0xf]
    %v4451 = vld [vmem:[%s4446 + $0x10] sm:$0xf]
    %v4452 = vld [vmem:[%s4446 + $0x14] sm:$0xf]
    %v4453 = vld [vmem:[%s4446 + $0x18] sm:$0xf]
    %v4454 = vld [vmem:[%s4446 + $0x1c] sm:$0xf]
    %v4455 = vld [vmem:[%s4446 + $0x20] sm:$0xf]
    %v4456 = vld [vmem:[%s4446 + $0x24] sm:$0xf]
    %v4457 = vld [vmem:[%s4446 + $0x28] sm:$0xf]
    %v4458 = vld [vmem:[%s4446 + $0x2c] sm:$0xf]
    %v4459 = vld [vmem:[%s4446 + $0x30] sm:$0xf]
    %v4460 = vld [vmem:[%s4446 + $0x34] sm:$0xf]
    %v4461 = vld [vmem:[%s4446 + $0x38] sm:$0xf]
    %v4462 = vld [vmem:[%s4446 + $0x3c] sm:$0xf]
    %v4463 = vunpack.c.l.b16 %v4431
    %v4464 = vunpack.c.l.b16 %v4445
    %v4465 = vpack.c.b16 %v4463, %v3843
    %v4466 = vpack.c.b16 %v4464, %v3844
    %v4485 = vunpack.c.l.b16 %v4447
    %v4486 = vunpack.c.l.b16 %v4448
    %v4487 = vunpack.c.l.b16 %v4449
    %v4488 = vunpack.c.l.b16 %v4450
    %v4489 = vunpack.c.l.b16 %v4451
    %v4490 = vunpack.c.l.b16 %v4452
    %v4491 = vunpack.c.l.b16 %v4453
    %v4492 = vunpack.c.l.b16 %v4454
    %v4493 = vunpack.c.l.b16 %v4455
    %v4494 = vunpack.c.l.b16 %v4456
    %v4495 = vunpack.c.l.b16 %v4457
    %v4496 = vunpack.c.l.b16 %v4458
    %v4497 = vunpack.c.l.b16 %v4459
    %v4498 = vunpack.c.l.b16 %v4460
    %v4499 = vunpack.c.l.b16 %v4461
    %v4500 = vunpack.c.l.b16 %v4462
    %v4501 = vpack.c.b16 %v4486, %v4485
    %v4502 = vpack.c.b16 %v4488, %v4487
    %v4503 = vpack.c.b16 %v4490, %v4489
    %v4504 = vpack.c.b16 %v4492, %v4491
    %v4505 = vpack.c.b16 %v4494, %v4493
    %v4506 = vpack.c.b16 %v4496, %v4495
    %v4507 = vpack.c.b16 %v4498, %v4497
    %v4508 = vpack.c.b16 %v4500, %v4499
    %4517 = vmatprep.subr.bf16.mxu0 0
    %4518 = vmatpush1.bf16.msra.mxu0 %v4508
    %4519 = vmatprep.subr.bf16.mxu0 0
    %4520 = vmatpush1.bf16.msra.mxu0 %v4507
    %4521 = vmatprep.subr.bf16.mxu0 0
    %4522 = vmatpush1.bf16.msra.mxu0 %v4506
    %4523 = vmatprep.subr.bf16.mxu0 0
    %4524 = vmatpush1.bf16.msra.mxu0 %v4505
    %4525 = vmatprep.subr.bf16.mxu0 0
    %4526 = vmatpush1.bf16.msra.mxu0 %v4504
    %4527 = vmatprep.subr.bf16.mxu0 0
    %4528 = vmatpush1.bf16.msra.mxu0 %v4503
    %4529 = vmatprep.subr.bf16.mxu0 0
    %4530 = vmatpush1.bf16.msra.mxu0 %v4502
    %4531 = vmatprep.subr.bf16.mxu0 0
    %4532 = vmatpush1.bf16.msra.mxu0 %v4501
    %4533 = vmatprep.subr.bf16.mxu0 0
    %4534 = vmatpush2.bf16.msra.mxu0 0
    %4535 = vmatprep.subr.bf16.mxu0 0
    %4536 = vmatpush2.bf16.msra.mxu0 0
    %4537 = vmatprep.subr.bf16.mxu0 0
    %4538 = vmatpush2.bf16.msra.mxu0 0
    %4539 = vmatprep.subr.bf16.mxu0 0
    %4540 = vmatpush2.bf16.msra.mxu0 0
    %4541 = vmatprep.subr.bf16.mxu0 0
    %4542 = vmatpush2.bf16.msra.mxu0 0
    %4543 = vmatprep.subr.bf16.mxu0 0
    %4544 = vmatpush2.bf16.msra.mxu0 0
    %4545 = vmatprep.subr.bf16.mxu0 0
    %4546 = vmatpush2.bf16.msra.mxu0 0
    %4547 = vmatprep.subr.bf16.mxu0 0
    %4548 = vmatpush2.bf16.msra.mxu0 0
    %4549 = vmatprep.mubr.bf16.mxu0 0
    %4550 = vmatmul.mubr.bf16.gmra.mxu0 %v2999
    %v4551 = vpop.f32.mrf.mxu0
    %v4552 = vadd.f32 0.0, %v4551
    %v4553 = vpop.f32.mrf.mxu0
    %v4554 = vpop.f32.mrf.mxu0
    %v4555 = vadd.f32 0.0, %v4554
    %v4556 = vpop.f32.mrf.mxu0
    %4557 = vmatprep.mubr.bf16.mxu0 0
    %4558 = vmatmul.mubr.bf16.gmra.mxu0 %v3000
    %v4559 = vpop.f32.mrf.mxu0
    %v4560 = vadd.f32 0.0, %v4559
    %v4561 = vpop.f32.mrf.mxu0
    %v4562 = vpop.f32.mrf.mxu0
    %v4563 = vadd.f32 0.0, %v4562
    %v4564 = vpop.f32.mrf.mxu0
    %4565 = vmatprep.mubr.bf16.mxu0 0
    %4566 = vmatmul.mubr.bf16.gmra.mxu0 %v3001
    %v4567 = vpop.f32.mrf.mxu0
    %v4568 = vadd.f32 0.0, %v4567
    %v4569 = vpop.f32.mrf.mxu0
    %v4570 = vpop.f32.mrf.mxu0
    %v4571 = vadd.f32 0.0, %v4570
    %v4572 = vpop.f32.mrf.mxu0
    %4573 = vmatprep.mubr.bf16.mxu0 0
    %4574 = vmatmul.mubr.bf16.gmra.mxu0 %v4465
    %v4575 = vpop.f32.mrf.mxu0
    %v4576 = vadd.f32 0.0, %v4575
    %v4577 = vpop.f32.mrf.mxu0
    %v4578 = vpop.f32.mrf.mxu0
    %v4579 = vadd.f32 0.0, %v4578
    %v4580 = vpop.f32.mrf.mxu0
    %4581 = vmatprep.mubr.bf16.mxu0 0
    %4582 = vmatmul.mubr.bf16.gmra.mxu0 %v3003
    %v4583 = vpop.f32.mrf.mxu0
    %v4584 = vadd.f32 0.0, %v4583
    %v4585 = vpop.f32.mrf.mxu0
    %v4586 = vpop.f32.mrf.mxu0
    %v4587 = vadd.f32 0.0, %v4586
    %v4588 = vpop.f32.mrf.mxu0
    %4589 = vmatprep.mubr.bf16.mxu0 0
    %4590 = vmatmul.mubr.bf16.gmra.mxu0 %v3004
    %v4591 = vpop.f32.mrf.mxu0
    %v4592 = vadd.f32 0.0, %v4591
    %v4593 = vpop.f32.mrf.mxu0
    %v4594 = vpop.f32.mrf.mxu0
    %v4595 = vadd.f32 0.0, %v4594
    %v4596 = vpop.f32.mrf.mxu0
    %4597 = vmatprep.mubr.bf16.mxu0 0
    %4598 = vmatmul.mubr.bf16.gmra.mxu0 %v3005
    %v4599 = vpop.f32.mrf.mxu0
    %v4600 = vadd.f32 0.0, %v4599
    %v4601 = vpop.f32.mrf.mxu0
    %v4602 = vpop.f32.mrf.mxu0
    %v4603 = vadd.f32 0.0, %v4602
    %v4604 = vpop.f32.mrf.mxu0
    %4605 = vmatprep.mubr.bf16.mxu0 0
    %4606 = vmatmul.mubr.bf16.gmra.mxu0 %v4466
    %v4607 = vpop.f32.mrf.mxu0
    %v4608 = vadd.f32 0.0, %v4607
    %v4609 = vpop.f32.mrf.mxu0
    %v4610 = vpop.f32.mrf.mxu0
    %v4611 = vadd.f32 0.0, %v4610
    %v4612 = vpop.f32.mrf.mxu0
    %4613 = vdwg.mxu0
    %v4614 = vadd.f32 %v4396, %v4552
    %v4615 = vadd.f32 %v4397, %v4555
    %v4616 = vadd.f32 %v4398, %v4560
    %v4617 = vadd.f32 %v4399, %v4563
    %v4618 = vadd.f32 %v4400, %v4568
    %v4619 = vadd.f32 %v4401, %v4571
    %v4620 = vadd.f32 %v4402, %v4576
    %v4621 = vadd.f32 %v4403, %v4579
    %v4622 = vadd.f32 %v4404, %v4584
    %v4623 = vadd.f32 %v4405, %v4587
    %v4624 = vadd.f32 %v4406, %v4592
    %v4625 = vadd.f32 %v4407, %v4595
    %v4626 = vadd.f32 %v4408, %v4600
    %v4627 = vadd.f32 %v4409, %v4603
    %v4628 = vadd.f32 %v4410, %v4608
    %v4629 = vadd.f32 %v4411, %v4611
    %v4630 = vrot.slane %v4414, 5
    %v4631 = vrot.slane %v4630, 4
    %v4632 = vrot.slane %v4415, 5
    %v4633 = vsel %vm865, %v4631, %v4632
    %v4634 = vrot.slane %v4416, 5
    %v4635 = vrot.slane %v4634, 4
    %v4636 = vrot.slane %v4417, 5
    %v4637 = vsel %vm865, %v4635, %v4636
    %s4638 = scalar_lea.vmem %s4, 512
    %v4639 = vld [vmem:[%s4638] sm:$0xf]
    %v4640 = vld [vmem:[%s4638 + $0x4] sm:$0xf]
    %v4641 = vld [vmem:[%s4638 + $0x8] sm:$0xf]
    %v4642 = vld [vmem:[%s4638 + $0xc] sm:$0xf]
    %v4643 = vld [vmem:[%s4638 + $0x10] sm:$0xf]
    %v4644 = vld [vmem:[%s4638 + $0x14] sm:$0xf]
    %v4645 = vld [vmem:[%s4638 + $0x18] sm:$0xf]
    %v4646 = vld [vmem:[%s4638 + $0x1c] sm:$0xf]
    %v4647 = vld [vmem:[%s4638 + $0x20] sm:$0xf]
    %v4648 = vld [vmem:[%s4638 + $0x24] sm:$0xf]
    %v4649 = vld [vmem:[%s4638 + $0x28] sm:$0xf]
    %v4650 = vld [vmem:[%s4638 + $0x2c] sm:$0xf]
    %v4651 = vld [vmem:[%s4638 + $0x30] sm:$0xf]
    %v4652 = vld [vmem:[%s4638 + $0x34] sm:$0xf]
    %v4653 = vld [vmem:[%s4638 + $0x38] sm:$0xf]
    %v4654 = vld [vmem:[%s4638 + $0x3c] sm:$0xf]
    %v4655 = vunpack.c.l.b16 %v4633
    %v4656 = vunpack.c.l.b16 %v4637
    %v4657 = vpack.c.b16 %v4655, %v4047
    %v4658 = vpack.c.b16 %v4656, %v4048
    %v4677 = vunpack.c.l.b16 %v4639
    %v4678 = vunpack.c.l.b16 %v4640
    %v4679 = vunpack.c.l.b16 %v4641
    %v4680 = vunpack.c.l.b16 %v4642
    %v4681 = vunpack.c.l.b16 %v4643
    %v4682 = vunpack.c.l.b16 %v4644
    %v4683 = vunpack.c.l.b16 %v4645
    %v4684 = vunpack.c.l.b16 %v4646
    %v4685 = vunpack.c.l.b16 %v4647
    %v4686 = vunpack.c.l.b16 %v4648
    %v4687 = vunpack.c.l.b16 %v4649
    %v4688 = vunpack.c.l.b16 %v4650
    %v4689 = vunpack.c.l.b16 %v4651
    %v4690 = vunpack.c.l.b16 %v4652
    %v4691 = vunpack.c.l.b16 %v4653
    %v4692 = vunpack.c.l.b16 %v4654
    %v4693 = vpack.c.b16 %v4678, %v4677
    %v4694 = vpack.c.b16 %v4680, %v4679
    %v4695 = vpack.c.b16 %v4682, %v4681
    %v4696 = vpack.c.b16 %v4684, %v4683
    %v4697 = vpack.c.b16 %v4686, %v4685
    %v4698 = vpack.c.b16 %v4688, %v4687
    %v4699 = vpack.c.b16 %v4690, %v4689
    %v4700 = vpack.c.b16 %v4692, %v4691
    %4709 = vmatprep.subr.bf16.mxu0 0
    %4710 = vmatpush1.bf16.msra.mxu0 %v4700
    %4711 = vmatprep.subr.bf16.mxu0 0
    %4712 = vmatpush1.bf16.msra.mxu0 %v4699
    %4713 = vmatprep.subr.bf16.mxu0 0
    %4714 = vmatpush1.bf16.msra.mxu0 %v4698
    %4715 = vmatprep.subr.bf16.mxu0 0
    %4716 = vmatpush1.bf16.msra.mxu0 %v4697
    %4717 = vmatprep.subr.bf16.mxu0 0
    %4718 = vmatpush1.bf16.msra.mxu0 %v4696
    %4719 = vmatprep.subr.bf16.mxu0 0
    %4720 = vmatpush1.bf16.msra.mxu0 %v4695
    %4721 = vmatprep.subr.bf16.mxu0 0
    %4722 = vmatpush1.bf16.msra.mxu0 %v4694
    %4723 = vmatprep.subr.bf16.mxu0 0
    %4724 = vmatpush1.bf16.msra.mxu0 %v4693
    %4725 = vmatprep.subr.bf16.mxu0 0
    %4726 = vmatpush2.bf16.msra.mxu0 0
    %4727 = vmatprep.subr.bf16.mxu0 0
    %4728 = vmatpush2.bf16.msra.mxu0 0
    %4729 = vmatprep.subr.bf16.mxu0 0
    %4730 = vmatpush2.bf16.msra.mxu0 0
    %4731 = vmatprep.subr.bf16.mxu0 0
    %4732 = vmatpush2.bf16.msra.mxu0 0
    %4733 = vmatprep.subr.bf16.mxu0 0
    %4734 = vmatpush2.bf16.msra.mxu0 0
    %4735 = vmatprep.subr.bf16.mxu0 0
    %4736 = vmatpush2.bf16.msra.mxu0 0
    %4737 = vmatprep.subr.bf16.mxu0 0
    %4738 = vmatpush2.bf16.msra.mxu0 0
    %4739 = vmatprep.subr.bf16.mxu0 0
    %4740 = vmatpush2.bf16.msra.mxu0 0
    %4741 = vmatprep.mubr.bf16.mxu0 0
    %4742 = vmatmul.mubr.bf16.gmra.mxu0 %v3418
    %v4743 = vpop.f32.mrf.mxu0
    %v4744 = vadd.f32 0.0, %v4743
    %v4745 = vpop.f32.mrf.mxu0
    %v4746 = vpop.f32.mrf.mxu0
    %v4747 = vadd.f32 0.0, %v4746
    %v4748 = vpop.f32.mrf.mxu0
    %4749 = vmatprep.mubr.bf16.mxu0 0
    %4750 = vmatmul.mubr.bf16.gmra.mxu0 %v3419
    %v4751 = vpop.f32.mrf.mxu0
    %v4752 = vadd.f32 0.0, %v4751
    %v4753 = vpop.f32.mrf.mxu0
    %v4754 = vpop.f32.mrf.mxu0
    %v4755 = vadd.f32 0.0, %v4754
    %v4756 = vpop.f32.mrf.mxu0
    %4757 = vmatprep.mubr.bf16.mxu0 0
    %4758 = vmatmul.mubr.bf16.gmra.mxu0 %v3420
    %v4759 = vpop.f32.mrf.mxu0
    %v4760 = vadd.f32 0.0, %v4759
    %v4761 = vpop.f32.mrf.mxu0
    %v4762 = vpop.f32.mrf.mxu0
    %v4763 = vadd.f32 0.0, %v4762
    %v4764 = vpop.f32.mrf.mxu0
    %4765 = vmatprep.mubr.bf16.mxu0 0
    %4766 = vmatmul.mubr.bf16.gmra.mxu0 %v4657
    %v4767 = vpop.f32.mrf.mxu0
    %v4768 = vadd.f32 0.0, %v4767
    %v4769 = vpop.f32.mrf.mxu0
    %v4770 = vpop.f32.mrf.mxu0
    %v4771 = vadd.f32 0.0, %v4770
    %v4772 = vpop.f32.mrf.mxu0
    %4773 = vmatprep.mubr.bf16.mxu0 0
    %4774 = vmatmul.mubr.bf16.gmra.mxu0 %v3422
    %v4775 = vpop.f32.mrf.mxu0
    %v4776 = vadd.f32 0.0, %v4775
    %v4777 = vpop.f32.mrf.mxu0
    %v4778 = vpop.f32.mrf.mxu0
    %v4779 = vadd.f32 0.0, %v4778
    %v4780 = vpop.f32.mrf.mxu0
    %4781 = vmatprep.mubr.bf16.mxu0 0
    %4782 = vmatmul.mubr.bf16.gmra.mxu0 %v3423
    %v4783 = vpop.f32.mrf.mxu0
    %v4784 = vadd.f32 0.0, %v4783
    %v4785 = vpop.f32.mrf.mxu0
    %v4786 = vpop.f32.mrf.mxu0
    %v4787 = vadd.f32 0.0, %v4786
    %v4788 = vpop.f32.mrf.mxu0
    %4789 = vmatprep.mubr.bf16.mxu0 0
    %4790 = vmatmul.mubr.bf16.gmra.mxu0 %v3424
    %v4791 = vpop.f32.mrf.mxu0
    %v4792 = vadd.f32 0.0, %v4791
    %v4793 = vpop.f32.mrf.mxu0
    %v4794 = vpop.f32.mrf.mxu0
    %v4795 = vadd.f32 0.0, %v4794
    %v4796 = vpop.f32.mrf.mxu0
    %4797 = vmatprep.mubr.bf16.mxu0 0
    %4798 = vmatmul.mubr.bf16.gmra.mxu0 %v4658
    %v4799 = vpop.f32.mrf.mxu0
    %v4800 = vadd.f32 0.0, %v4799
    %v4801 = vpop.f32.mrf.mxu0
    %v4802 = vpop.f32.mrf.mxu0
    %v4803 = vadd.f32 0.0, %v4802
    %v4804 = vpop.f32.mrf.mxu0
    %4805 = vdwg.mxu0
    %v4806 = vadd.f32 %v4614, %v4744
    %v4807 = vadd.f32 %v4615, %v4747
    %v4808 = vadd.f32 %v4616, %v4752
    %v4809 = vadd.f32 %v4617, %v4755
    %v4810 = vadd.f32 %v4618, %v4760
    %v4811 = vadd.f32 %v4619, %v4763
    %v4812 = vadd.f32 %v4620, %v4768
    %v4813 = vadd.f32 %v4621, %v4771
    %v4814 = vadd.f32 %v4622, %v4776
    %v4815 = vadd.f32 %v4623, %v4779
    %v4816 = vadd.f32 %v4624, %v4784
    %v4817 = vadd.f32 %v4625, %v4787
    %v4818 = vadd.f32 %v4626, %v4792
    %v4819 = vadd.f32 %v4627, %v4795
    %v4820 = vadd.f32 %v4628, %v4800
    %v4821 = vadd.f32 %v4629, %v4803
    %v4822 = vadd.f32 %v4806, %v4807
    %v4823 = vadd.f32 %v4822, %v4808
    %v4824 = vadd.f32 %v4823, %v4809
    %v4825 = vadd.f32 %v4824, %v4810
    %v4826 = vadd.f32 %v4825, %v4811
    %v4827 = vadd.f32 %v4826, %v4812
    %v4828 = vadd.f32 %v4827, %v4813
    %v4829 = vadd.f32 %v4828, %v4814
    %v4830 = vadd.f32 %v4829, %v4815
    %v4831 = vadd.f32 %v4830, %v4816
    %v4832 = vadd.f32 %v4831, %v4817
    %v4833 = vadd.f32 %v4832, %v4818
    %v4834 = vadd.f32 %v4833, %v4819
    %v4835 = vadd.f32 %v4834, %v4820
    %v4836 = vadd.f32 %v4835, %v4821
    %v4837 = vrot.slane %v4836, 4
    %v4838 = vadd.f32 %v4836, %v4837
    %v4839 = vrot.slane %v4838, 2
    %v4840 = vadd.f32 %v4838, %v4839
    %v4841 = vrot.slane %v4840, 1
    %v4842 = vadd.f32 %v4840, %v4841
    %v4843 = vmul.f32 %v4842, %v2389
    %v4844 = vmul.f32 %v4806, %v4806
    %v4845 = vmul.f32 %v4807, %v4807
    %v4846 = vmul.f32 %v4808, %v4808
    %v4847 = vmul.f32 %v4809, %v4809
    %v4848 = vmul.f32 %v4810, %v4810
    %v4849 = vmul.f32 %v4811, %v4811
    %v4850 = vmul.f32 %v4812, %v4812
    %v4851 = vmul.f32 %v4813, %v4813
    %v4852 = vmul.f32 %v4814, %v4814
    %v4853 = vmul.f32 %v4815, %v4815
    %v4854 = vmul.f32 %v4816, %v4816
    %v4855 = vmul.f32 %v4817, %v4817
    %v4856 = vmul.f32 %v4818, %v4818
    %v4857 = vmul.f32 %v4819, %v4819
    %v4858 = vmul.f32 %v4820, %v4820
    %v4859 = vmul.f32 %v4821, %v4821
    %v4860 = vadd.f32 %v4844, %v4845
    %v4861 = vadd.f32 %v4860, %v4846
    %v4862 = vadd.f32 %v4861, %v4847
    %v4863 = vadd.f32 %v4862, %v4848
    %v4864 = vadd.f32 %v4863, %v4849
    %v4865 = vadd.f32 %v4864, %v4850
    %v4866 = vadd.f32 %v4865, %v4851
    %v4867 = vadd.f32 %v4866, %v4852
    %v4868 = vadd.f32 %v4867, %v4853
    %v4869 = vadd.f32 %v4868, %v4854
    %v4870 = vadd.f32 %v4869, %v4855
    %v4871 = vadd.f32 %v4870, %v4856
    %v4872 = vadd.f32 %v4871, %v4857
    %v4873 = vadd.f32 %v4872, %v4858
    %v4874 = vadd.f32 %v4873, %v4859
    %v4875 = vrot.slane %v4874, 4
    %v4876 = vadd.f32 %v4874, %v4875
    %v4877 = vrot.slane %v4876, 2
    %v4878 = vadd.f32 %v4876, %v4877
    %v4879 = vrot.slane %v4878, 1
    %v4880 = vadd.f32 %v4878, %v4879
    %v4881 = vmul.f32 %v4880, %v2389
    %v4882 = vmul.f32 %v4843, %v4843
    %v4883 = vsub.f32 %v4881, %v4882
    %v4884 = vmax.f32 %v4883, 0.0
    %v4885 = vsub.f32 %v4806, %v4843
    %v4886 = vsub.f32 %v4807, %v4843
    %v4887 = vsub.f32 %v4808, %v4843
    %v4888 = vsub.f32 %v4809, %v4843
    %v4889 = vsub.f32 %v4810, %v4843
    %v4890 = vsub.f32 %v4811, %v4843
    %v4891 = vsub.f32 %v4812, %v4843
    %v4892 = vsub.f32 %v4813, %v4843
    %v4893 = vsub.f32 %v4814, %v4843
    %v4894 = vsub.f32 %v4815, %v4843
    %v4895 = vsub.f32 %v4816, %v4843
    %v4896 = vsub.f32 %v4817, %v4843
    %v4897 = vsub.f32 %v4818, %v4843
    %v4898 = vsub.f32 %v4819, %v4843
    %v4899 = vsub.f32 %v4820, %v4843
    %v4900 = vsub.f32 %v4821, %v4843
    %v4901 = vadd.f32 %v4884, 1e-05
    %v4902 = vrsqrt.pop %v4901
    %v4903 = vmul.f32 %v4885, %v4902
    %v4904 = vmul.f32 %v4886, %v4902
    %v4905 = vmul.f32 %v4887, %v4902
    %v4906 = vmul.f32 %v4888, %v4902
    %v4907 = vmul.f32 %v4889, %v4902
    %v4908 = vmul.f32 %v4890, %v4902
    %v4909 = vmul.f32 %v4891, %v4902
    %v4910 = vmul.f32 %v4892, %v4902
    %v4911 = vmul.f32 %v4893, %v4902
    %v4912 = vmul.f32 %v4894, %v4902
    %v4913 = vmul.f32 %v4895, %v4902
    %v4914 = vmul.f32 %v4896, %v4902
    %v4915 = vmul.f32 %v4897, %v4902
    %v4916 = vmul.f32 %v4898, %v4902
    %v4917 = vmul.f32 %v4899, %v4902
    %v4918 = vmul.f32 %v4900, %v4902
    %v4919 = vld [vmem:[%s5] sm:$0x1]
    %v4921 = vlaneseq
    %v4922 = vshrl.u32 %v4921, 7
    %v4923 = vsub.s32 0, %v4922
    %v4924 = vrot.slane %v4919, %v4923
    %v4926 = vmul.f32 %v4903, %v4924
    %v4927 = vmul.f32 %v4904, %v4924
    %v4928 = vmul.f32 %v4905, %v4924
    %v4929 = vmul.f32 %v4906, %v4924
    %v4930 = vmul.f32 %v4907, %v4924
    %v4931 = vmul.f32 %v4908, %v4924
    %v4932 = vmul.f32 %v4909, %v4924
    %v4933 = vmul.f32 %v4910, %v4924
    %v4934 = vmul.f32 %v4911, %v4924
    %v4935 = vmul.f32 %v4912, %v4924
    %v4936 = vmul.f32 %v4913, %v4924
    %v4937 = vmul.f32 %v4914, %v4924
    %v4938 = vmul.f32 %v4915, %v4924
    %v4939 = vmul.f32 %v4916, %v4924
    %v4940 = vmul.f32 %v4917, %v4924
    %v4941 = vmul.f32 %v4918, %v4924
    %v4942 = vld [vmem:[%s6] sm:$0x1]
    %v4944 = vlaneseq
    %v4945 = vshrl.u32 %v4944, 7
    %v4946 = vsub.s32 0, %v4945
    %v4947 = vrot.slane %v4942, %v4946
    %v4949 = vadd.f32 %v4926, %v4947
    %v4950 = vadd.f32 %v4927, %v4947
    %v4951 = vadd.f32 %v4928, %v4947
    %v4952 = vadd.f32 %v4929, %v4947
    %v4953 = vadd.f32 %v4930, %v4947
    %v4954 = vadd.f32 %v4931, %v4947
    %v4955 = vadd.f32 %v4932, %v4947
    %v4956 = vadd.f32 %v4933, %v4947
    %v4957 = vadd.f32 %v4934, %v4947
    %v4958 = vadd.f32 %v4935, %v4947
    %v4959 = vadd.f32 %v4936, %v4947
    %v4960 = vadd.f32 %v4937, %v4947
    %v4961 = vadd.f32 %v4938, %v4947
    %v4962 = vadd.f32 %v4939, %v4947
    %v4963 = vadd.f32 %v4940, %v4947
    %v4964 = vadd.f32 %v4941, %v4947
    %v4965 = vadd.f32 %v4949, %v103
    %v4966 = vadd.f32 %v4950, %v106
    %v4967 = vadd.f32 %v4951, %v109
    %v4968 = vadd.f32 %v4952, %v112
    %v4969 = vadd.f32 %v4953, %v115
    %v4970 = vadd.f32 %v4954, %v118
    %v4971 = vadd.f32 %v4955, %v121
    %v4972 = vadd.f32 %v4956, %v124
    %v4973 = vadd.f32 %v4957, %v127
    %v4974 = vadd.f32 %v4958, %v130
    %v4975 = vadd.f32 %v4959, %v133
    %v4976 = vadd.f32 %v4960, %v136
    %v4977 = vadd.f32 %v4961, %v139
    %v4978 = vadd.f32 %v4962, %v142
    %v4979 = vadd.f32 %v4963, %v145
    %v4980 = vadd.f32 %v4964, %v148
    %v4981 = vmax.f32 %v4965, 0.0
    %v4982 = vmax.f32 %v4966, 0.0
    %v4983 = vmax.f32 %v4967, 0.0
    %v4984 = vmax.f32 %v4968, 0.0
    %v4985 = vmax.f32 %v4969, 0.0
    %v4986 = vmax.f32 %v4970, 0.0
    %v4987 = vmax.f32 %v4971, 0.0
    %v4988 = vmax.f32 %v4972, 0.0
    %v4989 = vmax.f32 %v4973, 0.0
    %v4990 = vmax.f32 %v4974, 0.0
    %v4991 = vmax.f32 %v4975, 0.0
    %v4992 = vmax.f32 %v4976, 0.0
    %v4993 = vmax.f32 %v4977, 0.0
    %v4994 = vmax.f32 %v4978, 0.0
    %v4995 = vmax.f32 %v4979, 0.0
    %v4996 = vmax.f32 %v4980, 0.0
    %4997 = vst [vmem:[#allocation3] sm:$0xff] %v4981
    %4998 = vst [vmem:[#allocation3 + $0x8] sm:$0xff] %v4982
    %4999 = vst [vmem:[#allocation3 + $0x10] sm:$0xff] %v4983
    %5000 = vst [vmem:[#allocation3 + $0x18] sm:$0xff] %v4984
    %5001 = vst [vmem:[#allocation3 + $0x20] sm:$0xff] %v4985
    %5002 = vst [vmem:[#allocation3 + $0x28] sm:$0xff] %v4986
    %5003 = vst [vmem:[#allocation3 + $0x30] sm:$0xff] %v4987
    %5004 = vst [vmem:[#allocation3 + $0x38] sm:$0xff] %v4988
    %5005 = vst [vmem:[#allocation3 + $0x40] sm:$0xff] %v4989
    %5006 = vst [vmem:[#allocation3 + $0x48] sm:$0xff] %v4990
    %5007 = vst [vmem:[#allocation3 + $0x50] sm:$0xff] %v4991
    %5008 = vst [vmem:[#allocation3 + $0x58] sm:$0xff] %v4992
    %5009 = vst [vmem:[#allocation3 + $0x60] sm:$0xff] %v4993
    %5010 = vst [vmem:[#allocation3 + $0x68] sm:$0xff] %v4994
    %5011 = vst [vmem:[#allocation3 + $0x70] sm:$0xff] %v4995
    %5012 = vst [vmem:[#allocation3 + $0x78] sm:$0xff] %v4996
    // Predicated region
    $region30: #{resblock_forward.1} parent=1 // pred_check
      _
    $region31: #{resblock_forward.1} parent=1 // pred_check_branch
      %5014 = sbr.rel (0) target = $region33
    $region32: #{resblock_forward.1} parent=1 // pred_region
      %s5016 = ssub.s32 2048, 2048
      %5017 = vsyncadd [#allocation4], %s5016
      %s5018 = sshll.u32 [#allocation3], 4
      %s5019 = int_to_ptr.vmem [resolvable:$true] %s5018
      %5024 = dma.vmem_to_hbm [thread:$0]  %s5019, 2048, %s7, [#allocation4], 128, 128, 8
    $region33: #{resblock_forward.1} parent=1 // pred_fallthru
      _
    // Predicated region
    $region34: #{resblock_forward.1} parent=1 // pred_check
      _
    $region35: #{resblock_forward.1} parent=1 // pred_check_branch
      %5026 = sbr.rel (0) target = $region37
    $region36: #{resblock_forward.1} parent=1 // pred_region
      %5027 = dma.done [#allocation4], 2048
    $region37: #{resblock_forward.1} parent=1 // pred_fallthru
      _
    %5028 = vsyncpa [#allocation4], 1

</llo_original>
